<compile_context>
chip_gen: v6e
topology: v6e:2x2x1
jax: 0.10.0
libtpu: 0.0.40
codegen_flags: <defaults>
</compile_context>

<pallas_src>
import jax
import jax.numpy as jnp
from jax.experimental import pallas as pl
from jax.experimental.pallas import tpu as pltpu


def _round_up(x, m):
    return ((x + m - 1) // m) * m


# ----------------------------------------------------------------------------
# Fused kernel: state seed prologue + multi-layer LSTM over a time block +
# deferred (one block behind) batched vocab projection.
# ----------------------------------------------------------------------------
def _make_kernel(depth):
    nd1 = depth - 1

    def kernel(*refs):
        (h0_ref, c0_ref, x_ref, emb_t_ref,
         w_ih0_ref, w_hh0_ref, b0_ref) = refs[:7]
        wcat_refs = refs[7:7 + nd1]
        bias_refs = refs[7 + nd1:7 + 2 * nd1]
        logits_ref = refs[7 + 2 * nd1]
        h_state_ref, c_state_ref, h_top_ref = refs[7 + 2 * nd1 + 1:]

        f32 = jnp.float32
        B, TB, Ein = x_ref.shape            # Ein == Lp (lane-padded)
        Lp = w_hh0_ref.shape[0]
        Vp = emb_t_ref.shape[1]
        t_blk = pl.program_id(0)

        # ---- prologue (grid step 0 only): seed state, zero the read slot -----
        @pl.when(t_blk == 0)
        def _init():
            h_state_ref[...] = h0_ref[...]
            c_state_ref[...] = c0_ref[...]
            h_top_ref[1] = jnp.zeros(h_top_ref.shape[1:], h_top_ref.dtype)

        wslot = t_blk % 2                    # h_top slot written by this block
        rslot = 1 - wslot                    # previous block's h_top

        # ---- VMEM-resident weights -------------------------------------------
        w_ih0 = w_ih0_ref[...]
        w_hh0 = w_hh0_ref[...]
        wdt = w_hh0.dtype
        b0 = b0_ref[...]                                         # (1, 4Lp) f32
        wcat = [r[...] for r in wcat_refs]                       # (2Lp, 4Lp)
        bias_bc = [jnp.broadcast_to(r[...], (B, r.shape[1]))     # hoisted bcast
                   for r in bias_refs]
        emb_t = emb_t_ref[...]                                   # (Lp, Vp)

        # ---- deferred vocab projection of the PREVIOUS block ------------------
        # Independent of this block's recurrence -> the scheduler interleaves
        # this large matmul into the MXU bubbles of the serial chain below.
        h_prev = h_top_ref[rslot]                                # (B, TB, Lp) f32
        proj = jnp.dot(h_prev.reshape(B * TB, Lp).astype(wdt), emb_t,
                       preferred_element_type=f32)
        logits_ref[...] = proj.reshape(B, TB, Vp)

        # ---- hoisted layer-0 input->hidden matmul (whole block at once) -------
        x = x_ref[...]                                           # (B, TB, Lp)
        xg0 = (jnp.dot(x.reshape(B * TB, Ein), w_ih0,
                       preferred_element_type=f32)
               .reshape(B, TB, 4 * Lp) + b0)                     # (B, TB, 4Lp) f32

        hs = [h_state_ref[d] for d in range(depth)]
        cs = [c_state_ref[d] for d in range(depth)]
        h_tops = []

        # ---- recurrence over the time block (fully unrolled, static) ----------
        for t in range(TB):
            inp = None
            for d in range(depth):
                if d == 0:
                    gates = xg0[:, t, :] + jnp.dot(
                        hs[0].astype(wdt), w_hh0, preferred_element_type=f32)
                else:
                    # fused ih/hh matmul: one MXU dot per cell
                    cat = jnp.concatenate([inp, hs[d]], axis=-1).astype(wdt)
                    gates = jnp.dot(cat, wcat[d - 1],
                                    preferred_element_type=f32) + bias_bc[d - 1]
                # slice BEFORE the activations (lane-aligned, Lp % 128 == 0)
                sig_if = jax.nn.sigmoid(gates[:, :2 * Lp])
                g_g = jnp.tanh(gates[:, 2 * Lp:3 * Lp])
                o_g = jax.nn.sigmoid(gates[:, 3 * Lp:])
                i_g = sig_if[:, :Lp]
                f_g = sig_if[:, Lp:]
                c_new = f_g * cs[d] + i_g * g_g
                h_new = o_g * jnp.tanh(c_new)
                cs[d] = c_new
                hs[d] = h_new
                inp = h_new
            h_tops.append(inp)

        # ---- write carries + stage this block's top-layer h (one dense store) -
        for d in range(depth):
            h_state_ref[d] = hs[d]
            c_state_ref[d] = cs[d]
        h_top_ref[wslot] = jnp.stack(h_tops, axis=1)             # (B, TB, Lp)

    return kernel


# ----------------------------------------------------------------------------
# Wrapper: parameter padding/fusing + one pallas_call gridded over time blocks.
# ----------------------------------------------------------------------------
def lstm_sender_agent_forward(img_data, seq_data, params, *,
                              mxu_dtype=jnp.float32, time_block=8):
    B, N, F = img_data.shape
    depth = len(params['wc'])
    L = params['wc'][0].shape[0]
    V, E = params['emb'].shape
    assert E == L, "lstm_size must equal text_embedding_size (torch module requirement)"

    f32 = jnp.float32
    wdt = mxu_dtype
    TB = int(time_block)
    assert TB % 8 == 0, "time_block must be a multiple of 8 (layout-free collapses)"

    Lp = _round_up(L, 128)                    # lane-pad hidden / embedding dim
    Vp = _round_up(V, 128)                    # lane-pad vocab (unmasked logits vst)

    T = seq_data.shape[1]
    T_pad = _round_up(T, TB)
    if T_pad != T:
        # causal LSTM: padded trailing steps never affect the first T outputs
        # (their LSTM + projection work is executed and then discarded).
        seq_data = jnp.pad(seq_data, ((0, 0), (0, T_pad - T)))
    nblk = T_pad // TB

    # ---- initial (h0, c0): one-time work in XLA, keeps the image features and
    #      state-projection weights out of per-iteration VMEM --------------------
    f_emb = jnp.tanh(img_data @ params['w_hid'].T + params['b_hid'])   # (B, N, Hf)
    fbar = jnp.mean(f_emb, axis=1)            # mean over regions commutes w/ affine
    h0 = jnp.stack([fbar @ params['wh'][d].T + params['bh'][d] for d in range(depth)])
    c0 = jnp.stack([fbar @ params['wc'][d].T + params['bc'][d] for d in range(depth)])
    h0 = jnp.zeros((depth, B, Lp), f32).at[:, :, :L].set(h0.astype(f32))
    c0 = jnp.zeros((depth, B, Lp), f32).at[:, :, :L].set(c0.astype(f32))

    # ---- gate-blockwise padded, transposed weights -----------------------------
    def pad_w(w):                 # torch (4L, in) -> transposed, padded (Lp, 4Lp)
        out = jnp.zeros((Lp, 4 * Lp), f32)
        for g in range(4):
            out = out.at[:w.shape[1], g * Lp:g * Lp + L].set(
                w[g * L:(g + 1) * L, :].T)
        return out

    def pad_b(bv):                # (4L,) -> (1, 4Lp), per-gate padded
        out = jnp.zeros((4 * Lp,), f32)
        for g in range(4):
            out = out.at[g * Lp:g * Lp + L].set(bv[g * L:(g + 1) * L])
        return out[None, :]

    w_ih0 = pad_w(params['w_ih'][0]).astype(wdt)                  # (Lp, 4Lp)
    w_hh0 = pad_w(params['w_hh'][0]).astype(wdt)                  # (Lp, 4Lp)
    biases = [pad_b(params['b_ih'][d] + params['b_hh'][d]) for d in range(depth)]
    # layers > 0: fuse ih/hh into one (2Lp, 4Lp) matrix -> one MXU dot per cell
    wcats = [jnp.concatenate([pad_w(params['w_ih'][d]), pad_w(params['w_hh'][d])],
                             axis=0).astype(wdt) for d in range(1, depth)]

    # ---- embeddings -------------------------------------------------------------
    emb = params['emb'].astype(f32)
    emb_lookup = jnp.zeros((V, Lp), f32).at[:, :E].set(emb)
    s_emb = emb_lookup[seq_data].astype(wdt)                      # (B, T_pad, Lp)
    emb_t = jnp.zeros((Lp, Vp), f32).at[:E, :V].set(emb.T).astype(wdt)

    # ---- BlockSpecs -------------------------------------------------------------
    def const_spec(arr):
        nd = arr.ndim
        idx = lambda t, _n=nd: (0,) * _n
        # constant-index inputs: single-buffer to halve resident weight footprint
        if hasattr(pl, "Buffered"):
            try:
                return pl.BlockSpec(arr.shape, idx, pipeline_mode=pl.Buffered(1))
            except (TypeError, ValueError):
                pass
        return pl.BlockSpec(arr.shape, idx)

    x_spec = pl.BlockSpec((B, TB, Lp), lambda t: (0, jnp.minimum(t, nblk - 1), 0))
    # deferred projection: logits for block t-1 are produced at grid step t
    out_spec = pl.BlockSpec((B, TB, Vp), lambda t: (0, jnp.maximum(t - 1, 0), 0))

    tail_consts = [emb_t, w_ih0, w_hh0, biases[0]] + wcats + biases[1:]
    in_specs = ([const_spec(h0), const_spec(c0), x_spec]
                + [const_spec(a) for a in tail_consts])

    itemsize = jnp.dtype(wdt).itemsize
    const_bytes = sum(int(a.size) * a.dtype.itemsize for a in [h0, c0] + tail_consts)
    stream_bytes = 2 * (B * TB * Lp * itemsize + B * TB * Vp * 4)
    scratch_bytes = 4 * (2 * depth * B * Lp + 2 * B * TB * Lp)
    vmem_limit = int(min(max(2 * const_bytes + stream_bytes + scratch_bytes
                             + (8 << 20), 32 << 20), 100 << 20))

    logits = pl.pallas_call(
        _make_kernel(depth),
        out_shape=jax.ShapeDtypeStruct((B, T_pad, Vp), f32),
        grid_spec=pltpu.PrefetchScalarGridSpec(
            num_scalar_prefetch=0,
            grid=(nblk + 1,),                 # +1 step flushes the deferred proj
            in_specs=in_specs,
            out_specs=out_spec,
            scratch_shapes=[
                pltpu.VMEM((depth, B, Lp), f32),     # h carry
                pltpu.VMEM((depth, B, Lp), f32),     # c carry
                pltpu.VMEM((2, B, TB, Lp), f32),     # double-buffered top-layer h
            ]),
        compiler_params=pltpu.CompilerParams(
            dimension_semantics=("arbitrary",),
            vmem_limit_bytes=vmem_limit),
    )(h0, c0, s_emb, emb_t, w_ih0, w_hh0, biases[0], *wcats, *biases[1:])

    return logits[:, :T, :V]                                       # (B, T, V)


# ----------------------------------------------------------------------------
# Pure-JAX reference (mirrors the PyTorch forward exactly) for validation
# ----------------------------------------------------------------------------
def reference_forward(img_data, seq_data, params):
    depth = len(params['wc'])
    L = params['wc'][0].shape[0]
    f_emb = jnp.tanh(img_data @ params['w_hid'].T + params['b_hid'])
    c_state = [jnp.mean(f_emb @ params['wc'][d].T + params['bc'][d], axis=1)
               for d in range(depth)]
    h_state = [jnp.mean(f_emb @ params['wh'][d].T + params['bh'][d], axis=1)
               for d in range(depth)]
    s_emb = params['emb'][seq_data]                  # (B, T, E)
    T = s_emb.shape[1]
    outs = []
    hs, cs = list(h_state), list(c_state)
    for t in range(T):
        inp = s_emb[:, t, :]
        for d in range(depth):
            gates = (inp @ params['w_ih'][d].T + hs[d] @ params['w_hh'][d].T
                     + params['b_ih'][d] + params['b_hh'][d])
            i_g = jax.nn.sigmoid(gates[:, 0 * L:1 * L])
            f_g = jax.nn.sigmoid(gates[:, 1 * L:2 * L])
            g_g = jnp.tanh(gates[:, 2 * L:3 * L])
            o_g = jax.nn.sigmoid(gates[:, 3 * L:4 * L])
            cs[d] = f_g * cs[d] + i_g * g_g
            hs[d] = o_g * jnp.tanh(cs[d])
            inp = hs[d]
        outs.append(inp @ params['emb'].T)
    return jnp.stack(outs, axis=1)                   # (B, T, V)


if __name__ == "__main__":
    # Small, deterministic setup
    B, N = 2, 5
    FEATURE = 12
    HF = 24                 # feature_embedding_hidden_size
    L = 32                  # lstm_size == text_embedding_size
    E = 32
    DEPTH = 2
    VOCAB = 20
    T = 16                  # two time blocks of 8 -> exercises carry + deferral

    key = jax.random.PRNGKey(0)
    ks = iter(jax.random.split(key, 64))

    def u(shape, scale):
        return jax.random.uniform(next(ks), shape, jnp.float32, -scale, scale)

    params = {
        'w_hid': u((HF, FEATURE), 1.0 / FEATURE ** 0.5),
        'b_hid': u((HF,), 1.0 / FEATURE ** 0.5),
        'wc': [u((L, HF), 1.0 / HF ** 0.5) for _ in range(DEPTH)],
        'bc': [u((L,), 1.0 / HF ** 0.5) for _ in range(DEPTH)],
        'wh': [u((L, HF), 1.0 / HF ** 0.5) for _ in range(DEPTH)],
        'bh': [u((L,), 1.0 / HF ** 0.5) for _ in range(DEPTH)],
        'w_ih': [u((4 * L, E if d == 0 else L), 1.0 / L ** 0.5) for d in range(DEPTH)],
        'w_hh': [u((4 * L, L), 1.0 / L ** 0.5) for d in range(DEPTH)],
        'b_ih': [u((4 * L,), 1.0 / L ** 0.5) for _ in range(DEPTH)],
        'b_hh': [u((4 * L,), 1.0 / L ** 0.5) for _ in range(DEPTH)],
        'emb': jax.random.normal(next(ks), (VOCAB, E), jnp.float32),
    }

    img_data = jax.random.normal(next(ks), (B, N, FEATURE), jnp.float32)
    seq_data = jax.random.randint(next(ks), (B, T), 0, VOCAB, jnp.int32)

    ref = reference_forward(img_data, seq_data, params)

    # f32 MXU operands: close match with the reference
    logits = lstm_sender_agent_forward(img_data, seq_data, params)
    logits = jax.block_until_ready(logits)
    assert logits.shape == (B, T, VOCAB)
    assert jnp.allclose(logits, ref, atol=1e-3, rtol=1e-3), (
        float(jnp.max(jnp.abs(logits - ref))))

    # non-multiple-of-TB sequence length exercises the time-padding path
    logits_13 = lstm_sender_agent_forward(img_data, seq_data[:, :13], params)
    logits_13 = jax.block_until_ready(logits_13)
    assert logits_13.shape == (B, 13, VOCAB)
    assert jnp.allclose(logits_13, ref[:, :13], atol=1e-3, rtol=1e-3), (
        float(jnp.max(jnp.abs(logits_13 - ref[:, :13]))))

    # bf16 MXU operands (v5e/v6e/v7x-friendly), f32 accumulation + f32 gate math
    logits_bf16 = lstm_sender_agent_forward(img_data, seq_data, params,
                                            mxu_dtype=jnp.bfloat16)
    logits_bf16 = jax.block_until_ready(logits_bf16)
    assert logits_bf16.shape == (B, T, VOCAB)
    assert bool(jnp.all(jnp.isfinite(logits_bf16)))
    assert float(jnp.max(jnp.abs(logits_bf16 - ref))) < 0.5

    print("KERNEL_OK")
</pallas_src>

<mosaic_0001>
module attributes {stable_mosaic.version = 11 : i64} {
  func.func @kernel(%arg0: i32, %arg1: memref<2x2x128xf32, #tpu.memory_space<vmem>>, %arg2: memref<2x2x128xf32, #tpu.memory_space<vmem>>, %arg3: memref<2x8x128xf32, #tpu.memory_space<vmem>>, %arg4: memref<128x128xf32, #tpu.memory_space<vmem>>, %arg5: memref<128x512xf32, #tpu.memory_space<vmem>>, %arg6: memref<128x512xf32, #tpu.memory_space<vmem>>, %arg7: memref<1x512xf32, #tpu.memory_space<vmem>>, %arg8: memref<256x512xf32, #tpu.memory_space<vmem>>, %arg9: memref<1x512xf32, #tpu.memory_space<vmem>>, %arg10: memref<2x8x128xf32, #tpu.memory_space<vmem>>, %arg11: memref<2x2x128xf32, #tpu.memory_space<vmem>>, %arg12: memref<2x2x128xf32, #tpu.memory_space<vmem>>, %arg13: memref<2x2x8x128xf32, #tpu.memory_space<vmem>>) attributes {dimension_semantics = [#tpu.dimension_semantics<arbitrary>], iteration_bounds = array<i64: 3>, scalar_prefetch = 0 : i64, scratch_operands = 3 : i64, tpu.core_type = #tpu.core_type<tc>, window_params = [{pipeline_mode = #tpu.pipeline_mode<synchronous>, transform_indices = @transform_0, window_bounds = array<i64: 2, 2, 128>}, {pipeline_mode = #tpu.pipeline_mode<synchronous>, transform_indices = @transform_1, window_bounds = array<i64: 2, 2, 128>}, {transform_indices = @transform_2, window_bounds = array<i64: 2, 8, 128>}, {pipeline_mode = #tpu.pipeline_mode<synchronous>, transform_indices = @transform_3, window_bounds = array<i64: 128, 128>}, {pipeline_mode = #tpu.pipeline_mode<synchronous>, transform_indices = @transform_4, window_bounds = array<i64: 128, 512>}, {pipeline_mode = #tpu.pipeline_mode<synchronous>, transform_indices = @transform_5, window_bounds = array<i64: 128, 512>}, {pipeline_mode = #tpu.pipeline_mode<synchronous>, transform_indices = @transform_6, window_bounds = array<i64: 1, 512>}, {pipeline_mode = #tpu.pipeline_mode<synchronous>, transform_indices = @transform_7, window_bounds = array<i64: 256, 512>}, {pipeline_mode = #tpu.pipeline_mode<synchronous>, transform_indices = @transform_8, window_bounds = array<i64: 1, 512>}, {transform_indices = @transform_9, window_bounds = array<i64: 2, 8, 128>}]} {
    %c0_i32 = arith.constant 0 : i32
    %0 = arith.cmpi eq, %arg0, %c0_i32 : i32
    %1 = arith.extui %0 : i1 to i32
    %c0_i32_0 = arith.constant 0 : i32
    %2 = arith.cmpi ne, %1, %c0_i32_0 : i32
    scf.if %2 {
      %c0_101 = arith.constant 0 : index
      %c0_102 = arith.constant 0 : index
      %c0_103 = arith.constant 0 : index
      %461 = vector.load %arg1[%c0_101, %c0_102, %c0_103] : memref<2x2x128xf32, #tpu.memory_space<vmem>>, vector<2x2x128xf32>
      %c0_104 = arith.constant 0 : index
      %c0_105 = arith.constant 0 : index
      %c0_106 = arith.constant 0 : index
      %462 = vector.load %arg11[%c0_104, %c0_105, %c0_106] : memref<2x2x128xf32, #tpu.memory_space<vmem>>, vector<2x2x128xf32>
      tpu.vector_store %arg11[%c0_104, %c0_105, %c0_106], %461 {strides = array<i32>} : memref<2x2x128xf32, #tpu.memory_space<vmem>>, vector<2x2x128xf32>,
      %c0_107 = arith.constant 0 : index
      %c0_108 = arith.constant 0 : index
      %c0_109 = arith.constant 0 : index
      %463 = vector.load %arg2[%c0_107, %c0_108, %c0_109] : memref<2x2x128xf32, #tpu.memory_space<vmem>>, vector<2x2x128xf32>
      %c0_110 = arith.constant 0 : index
      %c0_111 = arith.constant 0 : index
      %c0_112 = arith.constant 0 : index
      %464 = vector.load %arg12[%c0_110, %c0_111, %c0_112] : memref<2x2x128xf32, #tpu.memory_space<vmem>>, vector<2x2x128xf32>
      tpu.vector_store %arg12[%c0_110, %c0_111, %c0_112], %463 {strides = array<i32>} : memref<2x2x128xf32, #tpu.memory_space<vmem>>, vector<2x2x128xf32>,
      %cst_113 = arith.constant 0.000000e+00 : f32
      %465 = vector.broadcast %cst_113 : f32 to vector<2x8x128xf32>
      %c1_114 = arith.constant 1 : index
      %c0_115 = arith.constant 0 : index
      %c0_116 = arith.constant 0 : index
      %c0_117 = arith.constant 0 : index
      %466 = vector.load %arg13[%c1_114, %c0_115, %c0_116, %c0_117] : memref<2x2x8x128xf32, #tpu.memory_space<vmem>>, vector<1x2x8x128xf32>
      %467 = vector.shape_cast %466 : vector<1x2x8x128xf32> to vector<2x8x128xf32>
      %468 = vector.shape_cast %465 : vector<2x8x128xf32> to vector<1x2x8x128xf32>
      tpu.vector_store %arg13[%c1_114, %c0_115, %c0_116, %c0_117], %468 {strides = array<i32>} : memref<2x2x8x128xf32, #tpu.memory_space<vmem>>, vector<1x2x8x128xf32>,
    } else {
    }
    %c2_i32 = arith.constant 2 : i32
    %c0_i32_1 = arith.constant 0 : i32
    %3 = arith.cmpi eq, %c2_i32, %c0_i32_1 : i32
    %c1_i32 = arith.constant 1 : i32
    %4 = arith.select %3, %c1_i32, %c2_i32 : i32
    %5 = arith.remsi %arg0, %4 : i32
    %c0_i32_2 = arith.constant 0 : i32
    %6 = arith.cmpi ne, %5, %c0_i32_2 : i32
    %c0_i32_3 = arith.constant 0 : i32
    %7 = arith.cmpi slt, %5, %c0_i32_3 : i32
    %c0_i32_4 = arith.constant 0 : i32
    %8 = arith.cmpi slt, %4, %c0_i32_4 : i32
    %9 = arith.xori %7, %8 : i1
    %10 = arith.andi %9, %6 : i1
    %11 = arith.addi %5, %4 : i32
    %12 = arith.select %10, %11, %5 : i32
    %c1_i32_5 = arith.constant 1 : i32
    %13 = arith.subi %c1_i32_5, %12 : i32
    %c0 = arith.constant 0 : index
    %c0_6 = arith.constant 0 : index
    %14 = vector.load %arg5[%c0, %c0_6] : memref<128x512xf32, #tpu.memory_space<vmem>>, vector<128x512xf32>
    %c0_7 = arith.constant 0 : index
    %c0_8 = arith.constant 0 : index
    %15 = vector.load %arg6[%c0_7, %c0_8] : memref<128x512xf32, #tpu.memory_space<vmem>>, vector<128x512xf32>
    %c0_9 = arith.constant 0 : index
    %c0_10 = arith.constant 0 : index
    %16 = vector.load %arg7[%c0_9, %c0_10] : memref<1x512xf32, #tpu.memory_space<vmem>>, vector<1x512xf32>
    %c0_11 = arith.constant 0 : index
    %c0_12 = arith.constant 0 : index
    %17 = vector.load %arg8[%c0_11, %c0_12] : memref<256x512xf32, #tpu.memory_space<vmem>>, vector<256x512xf32>
    %c0_13 = arith.constant 0 : index
    %c0_14 = arith.constant 0 : index
    %18 = vector.load %arg9[%c0_13, %c0_14] : memref<1x512xf32, #tpu.memory_space<vmem>>, vector<1x512xf32>
    %19 = vector.shape_cast %18 : vector<1x512xf32> to vector<1x512xf32>
    %20 = vector.broadcast %19 : vector<1x512xf32> to vector<2x512xf32>
    %c0_15 = arith.constant 0 : index
    %c0_16 = arith.constant 0 : index
    %21 = vector.load %arg4[%c0_15, %c0_16] : memref<128x128xf32, #tpu.memory_space<vmem>>, vector<128x128xf32>
    %22 = arith.index_cast %13 : i32 to index
    %c0_17 = arith.constant 0 : index
    %c0_18 = arith.constant 0 : index
    %c0_19 = arith.constant 0 : index
    %23 = vector.load %arg13[%22, %c0_17, %c0_18, %c0_19] : memref<2x2x8x128xf32, #tpu.memory_space<vmem>>, vector<1x2x8x128xf32>
    %24 = vector.shape_cast %23 : vector<1x2x8x128xf32> to vector<2x8x128xf32>
    %25 = vector.shape_cast %24 : vector<2x8x128xf32> to vector<16x128xf32>
    %cst = arith.constant dense<0.000000e+00> : vector<16x128xf32>
    %26 = tpu.matmul %25, %21, %cst {dimension_numbers = #tpu.dot_dimension_numbers<[1], [0], [0], [1], [0, 0, 1, 1], [], []>} : vector<16x128xf32>, vector<128x128xf32>, vector<16x128xf32> -> vector<16x128xf32>
    %27 = vector.shape_cast %26 : vector<16x128xf32> to vector<2x8x128xf32>
    %c0_20 = arith.constant 0 : index
    %c0_21 = arith.constant 0 : index
    %c0_22 = arith.constant 0 : index
    %28 = vector.load %arg10[%c0_20, %c0_21, %c0_22] : memref<2x8x128xf32, #tpu.memory_space<vmem>>, vector<2x8x128xf32>
    tpu.vector_store %arg10[%c0_20, %c0_21, %c0_22], %27 {strides = array<i32>} : memref<2x8x128xf32, #tpu.memory_space<vmem>>, vector<2x8x128xf32>,
    %c0_23 = arith.constant 0 : index
    %c0_24 = arith.constant 0 : index
    %c0_25 = arith.constant 0 : index
    %29 = vector.load %arg3[%c0_23, %c0_24, %c0_25] : memref<2x8x128xf32, #tpu.memory_space<vmem>>, vector<2x8x128xf32>
    %30 = vector.shape_cast %29 : vector<2x8x128xf32> to vector<16x128xf32>
    %cst_26 = arith.constant dense<0.000000e+00> : vector<16x512xf32>
    %31 = tpu.matmul %30, %14, %cst_26 {dimension_numbers = #tpu.dot_dimension_numbers<[1], [0], [0], [1], [0, 0, 1, 1], [], []>} : vector<16x128xf32>, vector<128x512xf32>, vector<16x512xf32> -> vector<16x512xf32>
    %32 = vector.shape_cast %31 : vector<16x512xf32> to vector<2x8x512xf32>
    %33 = vector.shape_cast %16 : vector<1x512xf32> to vector<1x1x512xf32>
    %34 = vector.broadcast %33 : vector<1x1x512xf32> to vector<2x8x512xf32>
    %35 = arith.addf %32, %34 : vector<2x8x512xf32>
    %c0_27 = arith.constant 0 : index
    %c0_28 = arith.constant 0 : index
    %c0_29 = arith.constant 0 : index
    %36 = vector.load %arg11[%c0_27, %c0_28, %c0_29] : memref<2x2x128xf32, #tpu.memory_space<vmem>>, vector<1x2x128xf32>
    %37 = vector.shape_cast %36 : vector<1x2x128xf32> to vector<2x128xf32>
    %c1 = arith.constant 1 : index
    %c0_30 = arith.constant 0 : index
    %c0_31 = arith.constant 0 : index
    %38 = vector.load %arg11[%c1, %c0_30, %c0_31] : memref<2x2x128xf32, #tpu.memory_space<vmem>>, vector<1x2x128xf32>
    %39 = vector.shape_cast %38 : vector<1x2x128xf32> to vector<2x128xf32>
    %c0_32 = arith.constant 0 : index
    %c0_33 = arith.constant 0 : index
    %c0_34 = arith.constant 0 : index
    %40 = vector.load %arg12[%c0_32, %c0_33, %c0_34] : memref<2x2x128xf32, #tpu.memory_space<vmem>>, vector<1x2x128xf32>
    %41 = vector.shape_cast %40 : vector<1x2x128xf32> to vector<2x128xf32>
    %c1_35 = arith.constant 1 : index
    %c0_36 = arith.constant 0 : index
    %c0_37 = arith.constant 0 : index
    %42 = vector.load %arg12[%c1_35, %c0_36, %c0_37] : memref<2x2x128xf32, #tpu.memory_space<vmem>>, vector<1x2x128xf32>
    %43 = vector.shape_cast %42 : vector<1x2x128xf32> to vector<2x128xf32>
    %44 = vector.extract_strided_slice %35 {offsets = [0, 0, 0], sizes = [2, 1, 512], strides = [1, 1, 1]} : vector<2x8x512xf32> to vector<2x1x512xf32>
    %45 = vector.shape_cast %44 : vector<2x1x512xf32> to vector<2x512xf32>
    %cst_38 = arith.constant dense<0.000000e+00> : vector<2x512xf32>
    %46 = tpu.matmul %37, %15, %cst_38 {dimension_numbers = #tpu.dot_dimension_numbers<[1], [0], [0], [1], [0, 0, 1, 1], [], []>} : vector<2x128xf32>, vector<128x512xf32>, vector<2x512xf32> -> vector<2x512xf32>
    %47 = arith.addf %45, %46 : vector<2x512xf32>
    %48 = vector.extract_strided_slice %47 {offsets = [0, 0], sizes = [2, 256], strides = [1, 1]} : vector<2x512xf32> to vector<2x256xf32>
    %49 = arith.negf %48 : vector<2x256xf32>
    %50 = math.exp %49 : vector<2x256xf32>
    %cst_39 = arith.constant 1.000000e+00 : f32
    %51 = vector.broadcast %cst_39 : f32 to vector<2x256xf32>
    %52 = arith.addf %51, %50 : vector<2x256xf32>
    %53 = arith.divf %51, %52 : vector<2x256xf32>
    %54 = vector.extract_strided_slice %47 {offsets = [0, 256], sizes = [2, 128], strides = [1, 1]} : vector<2x512xf32> to vector<2x128xf32>
    %55 = math.tanh %54 : vector<2x128xf32>
    %56 = vector.extract_strided_slice %47 {offsets = [0, 384], sizes = [2, 128], strides = [1, 1]} : vector<2x512xf32> to vector<2x128xf32>
    %57 = arith.negf %56 : vector<2x128xf32>
    %58 = math.exp %57 : vector<2x128xf32>
    %cst_40 = arith.constant 1.000000e+00 : f32
    %59 = vector.broadcast %cst_40 : f32 to vector<2x128xf32>
    %60 = arith.addf %59, %58 : vector<2x128xf32>
    %61 = arith.divf %59, %60 : vector<2x128xf32>
    %62 = vector.extract_strided_slice %53 {offsets = [0, 0], sizes = [2, 128], strides = [1, 1]} : vector<2x256xf32> to vector<2x128xf32>
    %63 = vector.extract_strided_slice %53 {offsets = [0, 128], sizes = [2, 128], strides = [1, 1]} : vector<2x256xf32> to vector<2x128xf32>
    %64 = arith.mulf %63, %41 : vector<2x128xf32>
    %65 = arith.mulf %62, %55 : vector<2x128xf32>
    %66 = arith.addf %64, %65 : vector<2x128xf32>
    %67 = math.tanh %66 : vector<2x128xf32>
    %68 = arith.mulf %61, %67 : vector<2x128xf32>
    %69 = tpu.concatenate %68, %39 in 1 : vector<2x128xf32>, vector<2x128xf32> -> vector<2x256xf32>
    %cst_41 = arith.constant dense<0.000000e+00> : vector<2x512xf32>
    %70 = tpu.matmul %69, %17, %cst_41 {dimension_numbers = #tpu.dot_dimension_numbers<[1], [0], [0], [1], [0, 0, 1, 1], [], []>} : vector<2x256xf32>, vector<256x512xf32>, vector<2x512xf32> -> vector<2x512xf32>
    %71 = arith.addf %70, %20 : vector<2x512xf32>
    %72 = vector.extract_strided_slice %71 {offsets = [0, 0], sizes = [2, 256], strides = [1, 1]} : vector<2x512xf32> to vector<2x256xf32>
    %73 = arith.negf %72 : vector<2x256xf32>
    %74 = math.exp %73 : vector<2x256xf32>
    %cst_42 = arith.constant 1.000000e+00 : f32
    %75 = vector.broadcast %cst_42 : f32 to vector<2x256xf32>
    %76 = arith.addf %75, %74 : vector<2x256xf32>
    %77 = arith.divf %75, %76 : vector<2x256xf32>
    %78 = vector.extract_strided_slice %71 {offsets = [0, 256], sizes = [2, 128], strides = [1, 1]} : vector<2x512xf32> to vector<2x128xf32>
    %79 = math.tanh %78 : vector<2x128xf32>
    %80 = vector.extract_strided_slice %71 {offsets = [0, 384], sizes = [2, 128], strides = [1, 1]} : vector<2x512xf32> to vector<2x128xf32>
    %81 = arith.negf %80 : vector<2x128xf32>
    %82 = math.exp %81 : vector<2x128xf32>
    %cst_43 = arith.constant 1.000000e+00 : f32
    %83 = vector.broadcast %cst_43 : f32 to vector<2x128xf32>
    %84 = arith.addf %83, %82 : vector<2x128xf32>
    %85 = arith.divf %83, %84 : vector<2x128xf32>
    %86 = vector.extract_strided_slice %77 {offsets = [0, 0], sizes = [2, 128], strides = [1, 1]} : vector<2x256xf32> to vector<2x128xf32>
    %87 = vector.extract_strided_slice %77 {offsets = [0, 128], sizes = [2, 128], strides = [1, 1]} : vector<2x256xf32> to vector<2x128xf32>
    %88 = arith.mulf %87, %43 : vector<2x128xf32>
    %89 = arith.mulf %86, %79 : vector<2x128xf32>
    %90 = arith.addf %88, %89 : vector<2x128xf32>
    %91 = math.tanh %90 : vector<2x128xf32>
    %92 = arith.mulf %85, %91 : vector<2x128xf32>
    %93 = vector.extract_strided_slice %35 {offsets = [0, 1, 0], sizes = [2, 1, 512], strides = [1, 1, 1]} : vector<2x8x512xf32> to vector<2x1x512xf32>
    %94 = vector.shape_cast %93 : vector<2x1x512xf32> to vector<2x512xf32>
    %cst_44 = arith.constant dense<0.000000e+00> : vector<2x512xf32>
    %95 = tpu.matmul %68, %15, %cst_44 {dimension_numbers = #tpu.dot_dimension_numbers<[1], [0], [0], [1], [0, 0, 1, 1], [], []>} : vector<2x128xf32>, vector<128x512xf32>, vector<2x512xf32> -> vector<2x512xf32>
    %96 = arith.addf %94, %95 : vector<2x512xf32>
    %97 = vector.extract_strided_slice %96 {offsets = [0, 0], sizes = [2, 256], strides = [1, 1]} : vector<2x512xf32> to vector<2x256xf32>
    %98 = arith.negf %97 : vector<2x256xf32>
    %99 = math.exp %98 : vector<2x256xf32>
    %cst_45 = arith.constant 1.000000e+00 : f32
    %100 = vector.broadcast %cst_45 : f32 to vector<2x256xf32>
    %101 = arith.addf %100, %99 : vector<2x256xf32>
    %102 = arith.divf %100, %101 : vector<2x256xf32>
    %103 = vector.extract_strided_slice %96 {offsets = [0, 256], sizes = [2, 128], strides = [1, 1]} : vector<2x512xf32> to vector<2x128xf32>
    %104 = math.tanh %103 : vector<2x128xf32>
    %105 = vector.extract_strided_slice %96 {offsets = [0, 384], sizes = [2, 128], strides = [1, 1]} : vector<2x512xf32> to vector<2x128xf32>
    %106 = arith.negf %105 : vector<2x128xf32>
    %107 = math.exp %106 : vector<2x128xf32>
    %cst_46 = arith.constant 1.000000e+00 : f32
    %108 = vector.broadcast %cst_46 : f32 to vector<2x128xf32>
    %109 = arith.addf %108, %107 : vector<2x128xf32>
    %110 = arith.divf %108, %109 : vector<2x128xf32>
    %111 = vector.extract_strided_slice %102 {offsets = [0, 0], sizes = [2, 128], strides = [1, 1]} : vector<2x256xf32> to vector<2x128xf32>
    %112 = vector.extract_strided_slice %102 {offsets = [0, 128], sizes = [2, 128], strides = [1, 1]} : vector<2x256xf32> to vector<2x128xf32>
    %113 = arith.mulf %112, %66 : vector<2x128xf32>
    %114 = arith.mulf %111, %104 : vector<2x128xf32>
    %115 = arith.addf %113, %114 : vector<2x128xf32>
    %116 = math.tanh %115 : vector<2x128xf32>
    %117 = arith.mulf %110, %116 : vector<2x128xf32>
    %118 = tpu.concatenate %117, %92 in 1 : vector<2x128xf32>, vector<2x128xf32> -> vector<2x256xf32>
    %cst_47 = arith.constant dense<0.000000e+00> : vector<2x512xf32>
    %119 = tpu.matmul %118, %17, %cst_47 {dimension_numbers = #tpu.dot_dimension_numbers<[1], [0], [0], [1], [0, 0, 1, 1], [], []>} : vector<2x256xf32>, vector<256x512xf32>, vector<2x512xf32> -> vector<2x512xf32>
    %120 = arith.addf %119, %20 : vector<2x512xf32>
    %121 = vector.extract_strided_slice %120 {offsets = [0, 0], sizes = [2, 256], strides = [1, 1]} : vector<2x512xf32> to vector<2x256xf32>
    %122 = arith.negf %121 : vector<2x256xf32>
    %123 = math.exp %122 : vector<2x256xf32>
    %cst_48 = arith.constant 1.000000e+00 : f32
    %124 = vector.broadcast %cst_48 : f32 to vector<2x256xf32>
    %125 = arith.addf %124, %123 : vector<2x256xf32>
    %126 = arith.divf %124, %125 : vector<2x256xf32>
    %127 = vector.extract_strided_slice %120 {offsets = [0, 256], sizes = [2, 128], strides = [1, 1]} : vector<2x512xf32> to vector<2x128xf32>
    %128 = math.tanh %127 : vector<2x128xf32>
    %129 = vector.extract_strided_slice %120 {offsets = [0, 384], sizes = [2, 128], strides = [1, 1]} : vector<2x512xf32> to vector<2x128xf32>
    %130 = arith.negf %129 : vector<2x128xf32>
    %131 = math.exp %130 : vector<2x128xf32>
    %cst_49 = arith.constant 1.000000e+00 : f32
    %132 = vector.broadcast %cst_49 : f32 to vector<2x128xf32>
    %133 = arith.addf %132, %131 : vector<2x128xf32>
    %134 = arith.divf %132, %133 : vector<2x128xf32>
    %135 = vector.extract_strided_slice %126 {offsets = [0, 0], sizes = [2, 128], strides = [1, 1]} : vector<2x256xf32> to vector<2x128xf32>
    %136 = vector.extract_strided_slice %126 {offsets = [0, 128], sizes = [2, 128], strides = [1, 1]} : vector<2x256xf32> to vector<2x128xf32>
    %137 = arith.mulf %136, %90 : vector<2x128xf32>
    %138 = arith.mulf %135, %128 : vector<2x128xf32>
    %139 = arith.addf %137, %138 : vector<2x128xf32>
    %140 = math.tanh %139 : vector<2x128xf32>
    %141 = arith.mulf %134, %140 : vector<2x128xf32>
    %142 = vector.extract_strided_slice %35 {offsets = [0, 2, 0], sizes = [2, 1, 512], strides = [1, 1, 1]} : vector<2x8x512xf32> to vector<2x1x512xf32>
    %143 = vector.shape_cast %142 : vector<2x1x512xf32> to vector<2x512xf32>
    %cst_50 = arith.constant dense<0.000000e+00> : vector<2x512xf32>
    %144 = tpu.matmul %117, %15, %cst_50 {dimension_numbers = #tpu.dot_dimension_numbers<[1], [0], [0], [1], [0, 0, 1, 1], [], []>} : vector<2x128xf32>, vector<128x512xf32>, vector<2x512xf32> -> vector<2x512xf32>
    %145 = arith.addf %143, %144 : vector<2x512xf32>
    %146 = vector.extract_strided_slice %145 {offsets = [0, 0], sizes = [2, 256], strides = [1, 1]} : vector<2x512xf32> to vector<2x256xf32>
    %147 = arith.negf %146 : vector<2x256xf32>
    %148 = math.exp %147 : vector<2x256xf32>
    %cst_51 = arith.constant 1.000000e+00 : f32
    %149 = vector.broadcast %cst_51 : f32 to vector<2x256xf32>
    %150 = arith.addf %149, %148 : vector<2x256xf32>
    %151 = arith.divf %149, %150 : vector<2x256xf32>
    %152 = vector.extract_strided_slice %145 {offsets = [0, 256], sizes = [2, 128], strides = [1, 1]} : vector<2x512xf32> to vector<2x128xf32>
    %153 = math.tanh %152 : vector<2x128xf32>
    %154 = vector.extract_strided_slice %145 {offsets = [0, 384], sizes = [2, 128], strides = [1, 1]} : vector<2x512xf32> to vector<2x128xf32>
    %155 = arith.negf %154 : vector<2x128xf32>
    %156 = math.exp %155 : vector<2x128xf32>
    %cst_52 = arith.constant 1.000000e+00 : f32
    %157 = vector.broadcast %cst_52 : f32 to vector<2x128xf32>
    %158 = arith.addf %157, %156 : vector<2x128xf32>
    %159 = arith.divf %157, %158 : vector<2x128xf32>
    %160 = vector.extract_strided_slice %151 {offsets = [0, 0], sizes = [2, 128], strides = [1, 1]} : vector<2x256xf32> to vector<2x128xf32>
    %161 = vector.extract_strided_slice %151 {offsets = [0, 128], sizes = [2, 128], strides = [1, 1]} : vector<2x256xf32> to vector<2x128xf32>
    %162 = arith.mulf %161, %115 : vector<2x128xf32>
    %163 = arith.mulf %160, %153 : vector<2x128xf32>
    %164 = arith.addf %162, %163 : vector<2x128xf32>
    %165 = math.tanh %164 : vector<2x128xf32>
    %166 = arith.mulf %159, %165 : vector<2x128xf32>
    %167 = tpu.concatenate %166, %141 in 1 : vector<2x128xf32>, vector<2x128xf32> -> vector<2x256xf32>
    %cst_53 = arith.constant dense<0.000000e+00> : vector<2x512xf32>
    %168 = tpu.matmul %167, %17, %cst_53 {dimension_numbers = #tpu.dot_dimension_numbers<[1], [0], [0], [1], [0, 0, 1, 1], [], []>} : vector<2x256xf32>, vector<256x512xf32>, vector<2x512xf32> -> vector<2x512xf32>
    %169 = arith.addf %168, %20 : vector<2x512xf32>
    %170 = vector.extract_strided_slice %169 {offsets = [0, 0], sizes = [2, 256], strides = [1, 1]} : vector<2x512xf32> to vector<2x256xf32>
    %171 = arith.negf %170 : vector<2x256xf32>
    %172 = math.exp %171 : vector<2x256xf32>
    %cst_54 = arith.constant 1.000000e+00 : f32
    %173 = vector.broadcast %cst_54 : f32 to vector<2x256xf32>
    %174 = arith.addf %173, %172 : vector<2x256xf32>
    %175 = arith.divf %173, %174 : vector<2x256xf32>
    %176 = vector.extract_strided_slice %169 {offsets = [0, 256], sizes = [2, 128], strides = [1, 1]} : vector<2x512xf32> to vector<2x128xf32>
    %177 = math.tanh %176 : vector<2x128xf32>
    %178 = vector.extract_strided_slice %169 {offsets = [0, 384], sizes = [2, 128], strides = [1, 1]} : vector<2x512xf32> to vector<2x128xf32>
    %179 = arith.negf %178 : vector<2x128xf32>
    %180 = math.exp %179 : vector<2x128xf32>
    %cst_55 = arith.constant 1.000000e+00 : f32
    %181 = vector.broadcast %cst_55 : f32 to vector<2x128xf32>
    %182 = arith.addf %181, %180 : vector<2x128xf32>
    %183 = arith.divf %181, %182 : vector<2x128xf32>
    %184 = vector.extract_strided_slice %175 {offsets = [0, 0], sizes = [2, 128], strides = [1, 1]} : vector<2x256xf32> to vector<2x128xf32>
    %185 = vector.extract_strided_slice %175 {offsets = [0, 128], sizes = [2, 128], strides = [1, 1]} : vector<2x256xf32> to vector<2x128xf32>
    %186 = arith.mulf %185, %139 : vector<2x128xf32>
    %187 = arith.mulf %184, %177 : vector<2x128xf32>
    %188 = arith.addf %186, %187 : vector<2x128xf32>
    %189 = math.tanh %188 : vector<2x128xf32>
    %190 = arith.mulf %183, %189 : vector<2x128xf32>
    %191 = vector.extract_strided_slice %35 {offsets = [0, 3, 0], sizes = [2, 1, 512], strides = [1, 1, 1]} : vector<2x8x512xf32> to vector<2x1x512xf32>
    %192 = vector.shape_cast %191 : vector<2x1x512xf32> to vector<2x512xf32>
    %cst_56 = arith.constant dense<0.000000e+00> : vector<2x512xf32>
    %193 = tpu.matmul %166, %15, %cst_56 {dimension_numbers = #tpu.dot_dimension_numbers<[1], [0], [0], [1], [0, 0, 1, 1], [], []>} : vector<2x128xf32>, vector<128x512xf32>, vector<2x512xf32> -> vector<2x512xf32>
    %194 = arith.addf %192, %193 : vector<2x512xf32>
    %195 = vector.extract_strided_slice %194 {offsets = [0, 0], sizes = [2, 256], strides = [1, 1]} : vector<2x512xf32> to vector<2x256xf32>
    %196 = arith.negf %195 : vector<2x256xf32>
    %197 = math.exp %196 : vector<2x256xf32>
    %cst_57 = arith.constant 1.000000e+00 : f32
    %198 = vector.broadcast %cst_57 : f32 to vector<2x256xf32>
    %199 = arith.addf %198, %197 : vector<2x256xf32>
    %200 = arith.divf %198, %199 : vector<2x256xf32>
    %201 = vector.extract_strided_slice %194 {offsets = [0, 256], sizes = [2, 128], strides = [1, 1]} : vector<2x512xf32> to vector<2x128xf32>
    %202 = math.tanh %201 : vector<2x128xf32>
    %203 = vector.extract_strided_slice %194 {offsets = [0, 384], sizes = [2, 128], strides = [1, 1]} : vector<2x512xf32> to vector<2x128xf32>
    %204 = arith.negf %203 : vector<2x128xf32>
    %205 = math.exp %204 : vector<2x128xf32>
    %cst_58 = arith.constant 1.000000e+00 : f32
    %206 = vector.broadcast %cst_58 : f32 to vector<2x128xf32>
    %207 = arith.addf %206, %205 : vector<2x128xf32>
    %208 = arith.divf %206, %207 : vector<2x128xf32>
    %209 = vector.extract_strided_slice %200 {offsets = [0, 0], sizes = [2, 128], strides = [1, 1]} : vector<2x256xf32> to vector<2x128xf32>
    %210 = vector.extract_strided_slice %200 {offsets = [0, 128], sizes = [2, 128], strides = [1, 1]} : vector<2x256xf32> to vector<2x128xf32>
    %211 = arith.mulf %210, %164 : vector<2x128xf32>
    %212 = arith.mulf %209, %202 : vector<2x128xf32>
    %213 = arith.addf %211, %212 : vector<2x128xf32>
    %214 = math.tanh %213 : vector<2x128xf32>
    %215 = arith.mulf %208, %214 : vector<2x128xf32>
    %216 = tpu.concatenate %215, %190 in 1 : vector<2x128xf32>, vector<2x128xf32> -> vector<2x256xf32>
    %cst_59 = arith.constant dense<0.000000e+00> : vector<2x512xf32>
    %217 = tpu.matmul %216, %17, %cst_59 {dimension_numbers = #tpu.dot_dimension_numbers<[1], [0], [0], [1], [0, 0, 1, 1], [], []>} : vector<2x256xf32>, vector<256x512xf32>, vector<2x512xf32> -> vector<2x512xf32>
    %218 = arith.addf %217, %20 : vector<2x512xf32>
    %219 = vector.extract_strided_slice %218 {offsets = [0, 0], sizes = [2, 256], strides = [1, 1]} : vector<2x512xf32> to vector<2x256xf32>
    %220 = arith.negf %219 : vector<2x256xf32>
    %221 = math.exp %220 : vector<2x256xf32>
    %cst_60 = arith.constant 1.000000e+00 : f32
    %222 = vector.broadcast %cst_60 : f32 to vector<2x256xf32>
    %223 = arith.addf %222, %221 : vector<2x256xf32>
    %224 = arith.divf %222, %223 : vector<2x256xf32>
    %225 = vector.extract_strided_slice %218 {offsets = [0, 256], sizes = [2, 128], strides = [1, 1]} : vector<2x512xf32> to vector<2x128xf32>
    %226 = math.tanh %225 : vector<2x128xf32>
    %227 = vector.extract_strided_slice %218 {offsets = [0, 384], sizes = [2, 128], strides = [1, 1]} : vector<2x512xf32> to vector<2x128xf32>
    %228 = arith.negf %227 : vector<2x128xf32>
    %229 = math.exp %228 : vector<2x128xf32>
    %cst_61 = arith.constant 1.000000e+00 : f32
    %230 = vector.broadcast %cst_61 : f32 to vector<2x128xf32>
    %231 = arith.addf %230, %229 : vector<2x128xf32>
    %232 = arith.divf %230, %231 : vector<2x128xf32>
    %233 = vector.extract_strided_slice %224 {offsets = [0, 0], sizes = [2, 128], strides = [1, 1]} : vector<2x256xf32> to vector<2x128xf32>
    %234 = vector.extract_strided_slice %224 {offsets = [0, 128], sizes = [2, 128], strides = [1, 1]} : vector<2x256xf32> to vector<2x128xf32>
    %235 = arith.mulf %234, %188 : vector<2x128xf32>
    %236 = arith.mulf %233, %226 : vector<2x128xf32>
    %237 = arith.addf %235, %236 : vector<2x128xf32>
    %238 = math.tanh %237 : vector<2x128xf32>
    %239 = arith.mulf %232, %238 : vector<2x128xf32>
    %240 = vector.extract_strided_slice %35 {offsets = [0, 4, 0], sizes = [2, 1, 512], strides = [1, 1, 1]} : vector<2x8x512xf32> to vector<2x1x512xf32>
    %241 = vector.shape_cast %240 : vector<2x1x512xf32> to vector<2x512xf32>
    %cst_62 = arith.constant dense<0.000000e+00> : vector<2x512xf32>
    %242 = tpu.matmul %215, %15, %cst_62 {dimension_numbers = #tpu.dot_dimension_numbers<[1], [0], [0], [1], [0, 0, 1, 1], [], []>} : vector<2x128xf32>, vector<128x512xf32>, vector<2x512xf32> -> vector<2x512xf32>
    %243 = arith.addf %241, %242 : vector<2x512xf32>
    %244 = vector.extract_strided_slice %243 {offsets = [0, 0], sizes = [2, 256], strides = [1, 1]} : vector<2x512xf32> to vector<2x256xf32>
    %245 = arith.negf %244 : vector<2x256xf32>
    %246 = math.exp %245 : vector<2x256xf32>
    %cst_63 = arith.constant 1.000000e+00 : f32
    %247 = vector.broadcast %cst_63 : f32 to vector<2x256xf32>
    %248 = arith.addf %247, %246 : vector<2x256xf32>
    %249 = arith.divf %247, %248 : vector<2x256xf32>
    %250 = vector.extract_strided_slice %243 {offsets = [0, 256], sizes = [2, 128], strides = [1, 1]} : vector<2x512xf32> to vector<2x128xf32>
    %251 = math.tanh %250 : vector<2x128xf32>
    %252 = vector.extract_strided_slice %243 {offsets = [0, 384], sizes = [2, 128], strides = [1, 1]} : vector<2x512xf32> to vector<2x128xf32>
    %253 = arith.negf %252 : vector<2x128xf32>
    %254 = math.exp %253 : vector<2x128xf32>
    %cst_64 = arith.constant 1.000000e+00 : f32
    %255 = vector.broadcast %cst_64 : f32 to vector<2x128xf32>
    %256 = arith.addf %255, %254 : vector<2x128xf32>
    %257 = arith.divf %255, %256 : vector<2x128xf32>
    %258 = vector.extract_strided_slice %249 {offsets = [0, 0], sizes = [2, 128], strides = [1, 1]} : vector<2x256xf32> to vector<2x128xf32>
    %259 = vector.extract_strided_slice %249 {offsets = [0, 128], sizes = [2, 128], strides = [1, 1]} : vector<2x256xf32> to vector<2x128xf32>
    %260 = arith.mulf %259, %213 : vector<2x128xf32>
    %261 = arith.mulf %258, %251 : vector<2x128xf32>
    %262 = arith.addf %260, %261 : vector<2x128xf32>
    %263 = math.tanh %262 : vector<2x128xf32>
    %264 = arith.mulf %257, %263 : vector<2x128xf32>
    %265 = tpu.concatenate %264, %239 in 1 : vector<2x128xf32>, vector<2x128xf32> -> vector<2x256xf32>
    %cst_65 = arith.constant dense<0.000000e+00> : vector<2x512xf32>
    %266 = tpu.matmul %265, %17, %cst_65 {dimension_numbers = #tpu.dot_dimension_numbers<[1], [0], [0], [1], [0, 0, 1, 1], [], []>} : vector<2x256xf32>, vector<256x512xf32>, vector<2x512xf32> -> vector<2x512xf32>
    %267 = arith.addf %266, %20 : vector<2x512xf32>
    %268 = vector.extract_strided_slice %267 {offsets = [0, 0], sizes = [2, 256], strides = [1, 1]} : vector<2x512xf32> to vector<2x256xf32>
    %269 = arith.negf %268 : vector<2x256xf32>
    %270 = math.exp %269 : vector<2x256xf32>
    %cst_66 = arith.constant 1.000000e+00 : f32
    %271 = vector.broadcast %cst_66 : f32 to vector<2x256xf32>
    %272 = arith.addf %271, %270 : vector<2x256xf32>
    %273 = arith.divf %271, %272 : vector<2x256xf32>
    %274 = vector.extract_strided_slice %267 {offsets = [0, 256], sizes = [2, 128], strides = [1, 1]} : vector<2x512xf32> to vector<2x128xf32>
    %275 = math.tanh %274 : vector<2x128xf32>
    %276 = vector.extract_strided_slice %267 {offsets = [0, 384], sizes = [2, 128], strides = [1, 1]} : vector<2x512xf32> to vector<2x128xf32>
    %277 = arith.negf %276 : vector<2x128xf32>
    %278 = math.exp %277 : vector<2x128xf32>
    %cst_67 = arith.constant 1.000000e+00 : f32
    %279 = vector.broadcast %cst_67 : f32 to vector<2x128xf32>
    %280 = arith.addf %279, %278 : vector<2x128xf32>
    %281 = arith.divf %279, %280 : vector<2x128xf32>
    %282 = vector.extract_strided_slice %273 {offsets = [0, 0], sizes = [2, 128], strides = [1, 1]} : vector<2x256xf32> to vector<2x128xf32>
    %283 = vector.extract_strided_slice %273 {offsets = [0, 128], sizes = [2, 128], strides = [1, 1]} : vector<2x256xf32> to vector<2x128xf32>
    %284 = arith.mulf %283, %237 : vector<2x128xf32>
    %285 = arith.mulf %282, %275 : vector<2x128xf32>
    %286 = arith.addf %284, %285 : vector<2x128xf32>
    %287 = math.tanh %286 : vector<2x128xf32>
    %288 = arith.mulf %281, %287 : vector<2x128xf32>
    %289 = vector.extract_strided_slice %35 {offsets = [0, 5, 0], sizes = [2, 1, 512], strides = [1, 1, 1]} : vector<2x8x512xf32> to vector<2x1x512xf32>
    %290 = vector.shape_cast %289 : vector<2x1x512xf32> to vector<2x512xf32>
    %cst_68 = arith.constant dense<0.000000e+00> : vector<2x512xf32>
    %291 = tpu.matmul %264, %15, %cst_68 {dimension_numbers = #tpu.dot_dimension_numbers<[1], [0], [0], [1], [0, 0, 1, 1], [], []>} : vector<2x128xf32>, vector<128x512xf32>, vector<2x512xf32> -> vector<2x512xf32>
    %292 = arith.addf %290, %291 : vector<2x512xf32>
    %293 = vector.extract_strided_slice %292 {offsets = [0, 0], sizes = [2, 256], strides = [1, 1]} : vector<2x512xf32> to vector<2x256xf32>
    %294 = arith.negf %293 : vector<2x256xf32>
    %295 = math.exp %294 : vector<2x256xf32>
    %cst_69 = arith.constant 1.000000e+00 : f32
    %296 = vector.broadcast %cst_69 : f32 to vector<2x256xf32>
    %297 = arith.addf %296, %295 : vector<2x256xf32>
    %298 = arith.divf %296, %297 : vector<2x256xf32>
    %299 = vector.extract_strided_slice %292 {offsets = [0, 256], sizes = [2, 128], strides = [1, 1]} : vector<2x512xf32> to vector<2x128xf32>
    %300 = math.tanh %299 : vector<2x128xf32>
    %301 = vector.extract_strided_slice %292 {offsets = [0, 384], sizes = [2, 128], strides = [1, 1]} : vector<2x512xf32> to vector<2x128xf32>
    %302 = arith.negf %301 : vector<2x128xf32>
    %303 = math.exp %302 : vector<2x128xf32>
    %cst_70 = arith.constant 1.000000e+00 : f32
    %304 = vector.broadcast %cst_70 : f32 to vector<2x128xf32>
    %305 = arith.addf %304, %303 : vector<2x128xf32>
    %306 = arith.divf %304, %305 : vector<2x128xf32>
    %307 = vector.extract_strided_slice %298 {offsets = [0, 0], sizes = [2, 128], strides = [1, 1]} : vector<2x256xf32> to vector<2x128xf32>
    %308 = vector.extract_strided_slice %298 {offsets = [0, 128], sizes = [2, 128], strides = [1, 1]} : vector<2x256xf32> to vector<2x128xf32>
    %309 = arith.mulf %308, %262 : vector<2x128xf32>
    %310 = arith.mulf %307, %300 : vector<2x128xf32>
    %311 = arith.addf %309, %310 : vector<2x128xf32>
    %312 = math.tanh %311 : vector<2x128xf32>
    %313 = arith.mulf %306, %312 : vector<2x128xf32>
    %314 = tpu.concatenate %313, %288 in 1 : vector<2x128xf32>, vector<2x128xf32> -> vector<2x256xf32>
    %cst_71 = arith.constant dense<0.000000e+00> : vector<2x512xf32>
    %315 = tpu.matmul %314, %17, %cst_71 {dimension_numbers = #tpu.dot_dimension_numbers<[1], [0], [0], [1], [0, 0, 1, 1], [], []>} : vector<2x256xf32>, vector<256x512xf32>, vector<2x512xf32> -> vector<2x512xf32>
    %316 = arith.addf %315, %20 : vector<2x512xf32>
    %317 = vector.extract_strided_slice %316 {offsets = [0, 0], sizes = [2, 256], strides = [1, 1]} : vector<2x512xf32> to vector<2x256xf32>
    %318 = arith.negf %317 : vector<2x256xf32>
    %319 = math.exp %318 : vector<2x256xf32>
    %cst_72 = arith.constant 1.000000e+00 : f32
    %320 = vector.broadcast %cst_72 : f32 to vector<2x256xf32>
    %321 = arith.addf %320, %319 : vector<2x256xf32>
    %322 = arith.divf %320, %321 : vector<2x256xf32>
    %323 = vector.extract_strided_slice %316 {offsets = [0, 256], sizes = [2, 128], strides = [1, 1]} : vector<2x512xf32> to vector<2x128xf32>
    %324 = math.tanh %323 : vector<2x128xf32>
    %325 = vector.extract_strided_slice %316 {offsets = [0, 384], sizes = [2, 128], strides = [1, 1]} : vector<2x512xf32> to vector<2x128xf32>
    %326 = arith.negf %325 : vector<2x128xf32>
    %327 = math.exp %326 : vector<2x128xf32>
    %cst_73 = arith.constant 1.000000e+00 : f32
    %328 = vector.broadcast %cst_73 : f32 to vector<2x128xf32>
    %329 = arith.addf %328, %327 : vector<2x128xf32>
    %330 = arith.divf %328, %329 : vector<2x128xf32>
    %331 = vector.extract_strided_slice %322 {offsets = [0, 0], sizes = [2, 128], strides = [1, 1]} : vector<2x256xf32> to vector<2x128xf32>
    %332 = vector.extract_strided_slice %322 {offsets = [0, 128], sizes = [2, 128], strides = [1, 1]} : vector<2x256xf32> to vector<2x128xf32>
    %333 = arith.mulf %332, %286 : vector<2x128xf32>
    %334 = arith.mulf %331, %324 : vector<2x128xf32>
    %335 = arith.addf %333, %334 : vector<2x128xf32>
    %336 = math.tanh %335 : vector<2x128xf32>
    %337 = arith.mulf %330, %336 : vector<2x128xf32>
    %338 = vector.extract_strided_slice %35 {offsets = [0, 6, 0], sizes = [2, 1, 512], strides = [1, 1, 1]} : vector<2x8x512xf32> to vector<2x1x512xf32>
    %339 = vector.shape_cast %338 : vector<2x1x512xf32> to vector<2x512xf32>
    %cst_74 = arith.constant dense<0.000000e+00> : vector<2x512xf32>
    %340 = tpu.matmul %313, %15, %cst_74 {dimension_numbers = #tpu.dot_dimension_numbers<[1], [0], [0], [1], [0, 0, 1, 1], [], []>} : vector<2x128xf32>, vector<128x512xf32>, vector<2x512xf32> -> vector<2x512xf32>
    %341 = arith.addf %339, %340 : vector<2x512xf32>
    %342 = vector.extract_strided_slice %341 {offsets = [0, 0], sizes = [2, 256], strides = [1, 1]} : vector<2x512xf32> to vector<2x256xf32>
    %343 = arith.negf %342 : vector<2x256xf32>
    %344 = math.exp %343 : vector<2x256xf32>
    %cst_75 = arith.constant 1.000000e+00 : f32
    %345 = vector.broadcast %cst_75 : f32 to vector<2x256xf32>
    %346 = arith.addf %345, %344 : vector<2x256xf32>
    %347 = arith.divf %345, %346 : vector<2x256xf32>
    %348 = vector.extract_strided_slice %341 {offsets = [0, 256], sizes = [2, 128], strides = [1, 1]} : vector<2x512xf32> to vector<2x128xf32>
    %349 = math.tanh %348 : vector<2x128xf32>
    %350 = vector.extract_strided_slice %341 {offsets = [0, 384], sizes = [2, 128], strides = [1, 1]} : vector<2x512xf32> to vector<2x128xf32>
    %351 = arith.negf %350 : vector<2x128xf32>
    %352 = math.exp %351 : vector<2x128xf32>
    %cst_76 = arith.constant 1.000000e+00 : f32
    %353 = vector.broadcast %cst_76 : f32 to vector<2x128xf32>
    %354 = arith.addf %353, %352 : vector<2x128xf32>
    %355 = arith.divf %353, %354 : vector<2x128xf32>
    %356 = vector.extract_strided_slice %347 {offsets = [0, 0], sizes = [2, 128], strides = [1, 1]} : vector<2x256xf32> to vector<2x128xf32>
    %357 = vector.extract_strided_slice %347 {offsets = [0, 128], sizes = [2, 128], strides = [1, 1]} : vector<2x256xf32> to vector<2x128xf32>
    %358 = arith.mulf %357, %311 : vector<2x128xf32>
    %359 = arith.mulf %356, %349 : vector<2x128xf32>
    %360 = arith.addf %358, %359 : vector<2x128xf32>
    %361 = math.tanh %360 : vector<2x128xf32>
    %362 = arith.mulf %355, %361 : vector<2x128xf32>
    %363 = tpu.concatenate %362, %337 in 1 : vector<2x128xf32>, vector<2x128xf32> -> vector<2x256xf32>
    %cst_77 = arith.constant dense<0.000000e+00> : vector<2x512xf32>
    %364 = tpu.matmul %363, %17, %cst_77 {dimension_numbers = #tpu.dot_dimension_numbers<[1], [0], [0], [1], [0, 0, 1, 1], [], []>} : vector<2x256xf32>, vector<256x512xf32>, vector<2x512xf32> -> vector<2x512xf32>
    %365 = arith.addf %364, %20 : vector<2x512xf32>
    %366 = vector.extract_strided_slice %365 {offsets = [0, 0], sizes = [2, 256], strides = [1, 1]} : vector<2x512xf32> to vector<2x256xf32>
    %367 = arith.negf %366 : vector<2x256xf32>
    %368 = math.exp %367 : vector<2x256xf32>
    %cst_78 = arith.constant 1.000000e+00 : f32
    %369 = vector.broadcast %cst_78 : f32 to vector<2x256xf32>
    %370 = arith.addf %369, %368 : vector<2x256xf32>
    %371 = arith.divf %369, %370 : vector<2x256xf32>
    %372 = vector.extract_strided_slice %365 {offsets = [0, 256], sizes = [2, 128], strides = [1, 1]} : vector<2x512xf32> to vector<2x128xf32>
    %373 = math.tanh %372 : vector<2x128xf32>
    %374 = vector.extract_strided_slice %365 {offsets = [0, 384], sizes = [2, 128], strides = [1, 1]} : vector<2x512xf32> to vector<2x128xf32>
    %375 = arith.negf %374 : vector<2x128xf32>
    %376 = math.exp %375 : vector<2x128xf32>
    %cst_79 = arith.constant 1.000000e+00 : f32
    %377 = vector.broadcast %cst_79 : f32 to vector<2x128xf32>
    %378 = arith.addf %377, %376 : vector<2x128xf32>
    %379 = arith.divf %377, %378 : vector<2x128xf32>
    %380 = vector.extract_strided_slice %371 {offsets = [0, 0], sizes = [2, 128], strides = [1, 1]} : vector<2x256xf32> to vector<2x128xf32>
    %381 = vector.extract_strided_slice %371 {offsets = [0, 128], sizes = [2, 128], strides = [1, 1]} : vector<2x256xf32> to vector<2x128xf32>
    %382 = arith.mulf %381, %335 : vector<2x128xf32>
    %383 = arith.mulf %380, %373 : vector<2x128xf32>
    %384 = arith.addf %382, %383 : vector<2x128xf32>
    %385 = math.tanh %384 : vector<2x128xf32>
    %386 = arith.mulf %379, %385 : vector<2x128xf32>
    %387 = vector.extract_strided_slice %35 {offsets = [0, 7, 0], sizes = [2, 1, 512], strides = [1, 1, 1]} : vector<2x8x512xf32> to vector<2x1x512xf32>
    %388 = vector.shape_cast %387 : vector<2x1x512xf32> to vector<2x512xf32>
    %cst_80 = arith.constant dense<0.000000e+00> : vector<2x512xf32>
    %389 = tpu.matmul %362, %15, %cst_80 {dimension_numbers = #tpu.dot_dimension_numbers<[1], [0], [0], [1], [0, 0, 1, 1], [], []>} : vector<2x128xf32>, vector<128x512xf32>, vector<2x512xf32> -> vector<2x512xf32>
    %390 = arith.addf %388, %389 : vector<2x512xf32>
    %391 = vector.extract_strided_slice %390 {offsets = [0, 0], sizes = [2, 256], strides = [1, 1]} : vector<2x512xf32> to vector<2x256xf32>
    %392 = arith.negf %391 : vector<2x256xf32>
    %393 = math.exp %392 : vector<2x256xf32>
    %cst_81 = arith.constant 1.000000e+00 : f32
    %394 = vector.broadcast %cst_81 : f32 to vector<2x256xf32>
    %395 = arith.addf %394, %393 : vector<2x256xf32>
    %396 = arith.divf %394, %395 : vector<2x256xf32>
    %397 = vector.extract_strided_slice %390 {offsets = [0, 256], sizes = [2, 128], strides = [1, 1]} : vector<2x512xf32> to vector<2x128xf32>
    %398 = math.tanh %397 : vector<2x128xf32>
    %399 = vector.extract_strided_slice %390 {offsets = [0, 384], sizes = [2, 128], strides = [1, 1]} : vector<2x512xf32> to vector<2x128xf32>
    %400 = arith.negf %399 : vector<2x128xf32>
    %401 = math.exp %400 : vector<2x128xf32>
    %cst_82 = arith.constant 1.000000e+00 : f32
    %402 = vector.broadcast %cst_82 : f32 to vector<2x128xf32>
    %403 = arith.addf %402, %401 : vector<2x128xf32>
    %404 = arith.divf %402, %403 : vector<2x128xf32>
    %405 = vector.extract_strided_slice %396 {offsets = [0, 0], sizes = [2, 128], strides = [1, 1]} : vector<2x256xf32> to vector<2x128xf32>
    %406 = vector.extract_strided_slice %396 {offsets = [0, 128], sizes = [2, 128], strides = [1, 1]} : vector<2x256xf32> to vector<2x128xf32>
    %407 = arith.mulf %406, %360 : vector<2x128xf32>
    %408 = arith.mulf %405, %398 : vector<2x128xf32>
    %409 = arith.addf %407, %408 : vector<2x128xf32>
    %410 = math.tanh %409 : vector<2x128xf32>
    %411 = arith.mulf %404, %410 : vector<2x128xf32>
    %412 = tpu.concatenate %411, %386 in 1 : vector<2x128xf32>, vector<2x128xf32> -> vector<2x256xf32>
    %cst_83 = arith.constant dense<0.000000e+00> : vector<2x512xf32>
    %413 = tpu.matmul %412, %17, %cst_83 {dimension_numbers = #tpu.dot_dimension_numbers<[1], [0], [0], [1], [0, 0, 1, 1], [], []>} : vector<2x256xf32>, vector<256x512xf32>, vector<2x512xf32> -> vector<2x512xf32>
    %414 = arith.addf %413, %20 : vector<2x512xf32>
    %415 = vector.extract_strided_slice %414 {offsets = [0, 0], sizes = [2, 256], strides = [1, 1]} : vector<2x512xf32> to vector<2x256xf32>
    %416 = arith.negf %415 : vector<2x256xf32>
    %417 = math.exp %416 : vector<2x256xf32>
    %cst_84 = arith.constant 1.000000e+00 : f32
    %418 = vector.broadcast %cst_84 : f32 to vector<2x256xf32>
    %419 = arith.addf %418, %417 : vector<2x256xf32>
    %420 = arith.divf %418, %419 : vector<2x256xf32>
    %421 = vector.extract_strided_slice %414 {offsets = [0, 256], sizes = [2, 128], strides = [1, 1]} : vector<2x512xf32> to vector<2x128xf32>
    %422 = math.tanh %421 : vector<2x128xf32>
    %423 = vector.extract_strided_slice %414 {offsets = [0, 384], sizes = [2, 128], strides = [1, 1]} : vector<2x512xf32> to vector<2x128xf32>
    %424 = arith.negf %423 : vector<2x128xf32>
    %425 = math.exp %424 : vector<2x128xf32>
    %cst_85 = arith.constant 1.000000e+00 : f32
    %426 = vector.broadcast %cst_85 : f32 to vector<2x128xf32>
    %427 = arith.addf %426, %425 : vector<2x128xf32>
    %428 = arith.divf %426, %427 : vector<2x128xf32>
    %429 = vector.extract_strided_slice %420 {offsets = [0, 0], sizes = [2, 128], strides = [1, 1]} : vector<2x256xf32> to vector<2x128xf32>
    %430 = vector.extract_strided_slice %420 {offsets = [0, 128], sizes = [2, 128], strides = [1, 1]} : vector<2x256xf32> to vector<2x128xf32>
    %431 = arith.mulf %430, %384 : vector<2x128xf32>
    %432 = arith.mulf %429, %422 : vector<2x128xf32>
    %433 = arith.addf %431, %432 : vector<2x128xf32>
    %434 = math.tanh %433 : vector<2x128xf32>
    %435 = arith.mulf %428, %434 : vector<2x128xf32>
    %c0_86 = arith.constant 0 : index
    %c0_87 = arith.constant 0 : index
    %c0_88 = arith.constant 0 : index
    %436 = vector.load %arg11[%c0_86, %c0_87, %c0_88] : memref<2x2x128xf32, #tpu.memory_space<vmem>>, vector<1x2x128xf32>
    %437 = vector.shape_cast %436 : vector<1x2x128xf32> to vector<2x128xf32>
    %438 = vector.shape_cast %411 : vector<2x128xf32> to vector<1x2x128xf32>
    tpu.vector_store %arg11[%c0_86, %c0_87, %c0_88], %438 {strides = array<i32>} : memref<2x2x128xf32, #tpu.memory_space<vmem>>, vector<1x2x128xf32>,
    %c0_89 = arith.constant 0 : index
    %c0_90 = arith.constant 0 : index
    %c0_91 = arith.constant 0 : index
    %439 = vector.load %arg12[%c0_89, %c0_90, %c0_91] : memref<2x2x128xf32, #tpu.memory_space<vmem>>, vector<1x2x128xf32>
    %440 = vector.shape_cast %439 : vector<1x2x128xf32> to vector<2x128xf32>
    %441 = vector.shape_cast %409 : vector<2x128xf32> to vector<1x2x128xf32>
    tpu.vector_store %arg12[%c0_89, %c0_90, %c0_91], %441 {strides = array<i32>} : memref<2x2x128xf32, #tpu.memory_space<vmem>>, vector<1x2x128xf32>,
    %c1_92 = arith.constant 1 : index
    %c0_93 = arith.constant 0 : index
    %c0_94 = arith.constant 0 : index
    %442 = vector.load %arg11[%c1_92, %c0_93, %c0_94] : memref<2x2x128xf32, #tpu.memory_space<vmem>>, vector<1x2x128xf32>
    %443 = vector.shape_cast %442 : vector<1x2x128xf32> to vector<2x128xf32>
    %444 = vector.shape_cast %435 : vector<2x128xf32> to vector<1x2x128xf32>
    tpu.vector_store %arg11[%c1_92, %c0_93, %c0_94], %444 {strides = array<i32>} : memref<2x2x128xf32, #tpu.memory_space<vmem>>, vector<1x2x128xf32>,
    %c1_95 = arith.constant 1 : index
    %c0_96 = arith.constant 0 : index
    %c0_97 = arith.constant 0 : index
    %445 = vector.load %arg12[%c1_95, %c0_96, %c0_97] : memref<2x2x128xf32, #tpu.memory_space<vmem>>, vector<1x2x128xf32>
    %446 = vector.shape_cast %445 : vector<1x2x128xf32> to vector<2x128xf32>
    %447 = vector.shape_cast %433 : vector<2x128xf32> to vector<1x2x128xf32>
    tpu.vector_store %arg12[%c1_95, %c0_96, %c0_97], %447 {strides = array<i32>} : memref<2x2x128xf32, #tpu.memory_space<vmem>>, vector<1x2x128xf32>,
    %448 = vector.shape_cast %92 : vector<2x128xf32> to vector<2x1x128xf32>
    %449 = vector.shape_cast %141 : vector<2x128xf32> to vector<2x1x128xf32>
    %450 = vector.shape_cast %190 : vector<2x128xf32> to vector<2x1x128xf32>
    %451 = vector.shape_cast %239 : vector<2x128xf32> to vector<2x1x128xf32>
    %452 = vector.shape_cast %288 : vector<2x128xf32> to vector<2x1x128xf32>
    %453 = vector.shape_cast %337 : vector<2x128xf32> to vector<2x1x128xf32>
    %454 = vector.shape_cast %386 : vector<2x128xf32> to vector<2x1x128xf32>
    %455 = vector.shape_cast %435 : vector<2x128xf32> to vector<2x1x128xf32>
    %456 = tpu.concatenate %448, %449, %450, %451, %452, %453, %454, %455 in 1 : vector<2x1x128xf32>, vector<2x1x128xf32>, vector<2x1x128xf32>, vector<2x1x128xf32>, vector<2x1x128xf32>, vector<2x1x128xf32>, vector<2x1x128xf32>, vector<2x1x128xf32> -> vector<2x8x128xf32>
    %457 = arith.index_cast %12 : i32 to index
    %c0_98 = arith.constant 0 : index
    %c0_99 = arith.constant 0 : index
    %c0_100 = arith.constant 0 : index
    %458 = vector.load %arg13[%457, %c0_98, %c0_99, %c0_100] : memref<2x2x8x128xf32, #tpu.memory_space<vmem>>, vector<1x2x8x128xf32>
    %459 = vector.shape_cast %458 : vector<1x2x8x128xf32> to vector<2x8x128xf32>
    %460 = vector.shape_cast %456 : vector<2x8x128xf32> to vector<1x2x8x128xf32>
    tpu.vector_store %arg13[%457, %c0_98, %c0_99, %c0_100], %460 {strides = array<i32>} : memref<2x2x8x128xf32, #tpu.memory_space<vmem>>, vector<1x2x8x128xf32>,
    return
  }
  func.func @transform_0(%arg0: i32) -> (i32, i32, i32) {
    %c0_i32 = arith.constant 0 : i32
    %c0_i32_0 = arith.constant 0 : i32
    %c0_i32_1 = arith.constant 0 : i32
    %c0_i32_2 = arith.constant 0 : i32
    return %c0_i32, %c0_i32_0, %c0_i32_1 : i32, i32, i32
  }
  func.func @transform_1(%arg0: i32) -> (i32, i32, i32) {
    %c0_i32 = arith.constant 0 : i32
    %c0_i32_0 = arith.constant 0 : i32
    %c0_i32_1 = arith.constant 0 : i32
    %c0_i32_2 = arith.constant 0 : i32
    return %c0_i32, %c0_i32_0, %c0_i32_1 : i32, i32, i32
  }
  func.func @transform_2(%arg0: i32) -> (i32, i32, i32) {
    %c1_i32 = arith.constant 1 : i32
    %0 = arith.minsi %arg0, %c1_i32 : i32
    %c0_i32 = arith.constant 0 : i32
    %c0_i32_0 = arith.constant 0 : i32
    %c0_i32_1 = arith.constant 0 : i32
    return %c0_i32, %0, %c0_i32_0 : i32, i32, i32
  }
  func.func @transform_3(%arg0: i32) -> (i32, i32) {
    %c0_i32 = arith.constant 0 : i32
    %c0_i32_0 = arith.constant 0 : i32
    %c0_i32_1 = arith.constant 0 : i32
    return %c0_i32, %c0_i32_0 : i32, i32
  }
  func.func @transform_4(%arg0: i32) -> (i32, i32) {
    %c0_i32 = arith.constant 0 : i32
    %c0_i32_0 = arith.constant 0 : i32
    %c0_i32_1 = arith.constant 0 : i32
    return %c0_i32, %c0_i32_0 : i32, i32
  }
  func.func @transform_5(%arg0: i32) -> (i32, i32) {
    %c0_i32 = arith.constant 0 : i32
    %c0_i32_0 = arith.constant 0 : i32
    %c0_i32_1 = arith.constant 0 : i32
    return %c0_i32, %c0_i32_0 : i32, i32
  }
  func.func @transform_6(%arg0: i32) -> (i32, i32) {
    %c0_i32 = arith.constant 0 : i32
    %c0_i32_0 = arith.constant 0 : i32
    %c0_i32_1 = arith.constant 0 : i32
    return %c0_i32, %c0_i32_0 : i32, i32
  }
  func.func @transform_7(%arg0: i32) -> (i32, i32) {
    %c0_i32 = arith.constant 0 : i32
    %c0_i32_0 = arith.constant 0 : i32
    %c0_i32_1 = arith.constant 0 : i32
    return %c0_i32, %c0_i32_0 : i32, i32
  }
  func.func @transform_8(%arg0: i32) -> (i32, i32) {
    %c0_i32 = arith.constant 0 : i32
    %c0_i32_0 = arith.constant 0 : i32
    %c0_i32_1 = arith.constant 0 : i32
    return %c0_i32, %c0_i32_0 : i32, i32
  }
  func.func @transform_9(%arg0: i32) -> (i32, i32, i32) {
    %c1_i32 = arith.constant 1 : i32
    %0 = arith.subi %arg0, %c1_i32 : i32
    %c0_i32 = arith.constant 0 : i32
    %1 = arith.maxsi %0, %c0_i32 : i32
    %c0_i32_0 = arith.constant 0 : i32
    %c0_i32_1 = arith.constant 0 : i32
    %c0_i32_2 = arith.constant 0 : i32
    return %c0_i32_0, %1, %c0_i32_1 : i32, i32, i32
  }
}

</mosaic_0001>

<llo_original>
// kernel: tpu_custom_call.1
$region0: #{tpu_custom_call.1}
  #allocation0 [shape = 'u32[]', space=smem, size = 0x4, offset = 0x4, fixed_abs, tag = 'smem constant byte address 0x4 - core index']
  #allocation1 [shape = 'u32[144,128]{1,0:T(1,128)}', space=vmem, size = 0x12000, scoped, tag = 'internal scratch']
  #allocation2 [shape = 'f32[2,2,128]{2,1,0:T(2,128)}', space=vmem, size = 0x800, scoped, tag = 'scratch operand']
  #allocation3 [shape = 'f32[2,2,128]{2,1,0:T(2,128)}', space=vmem, size = 0x800, scoped, tag = 'scratch operand']
  #allocation4 [shape = 'f32[2,2,8,128]{3,2,1,0:T(8,128)}', space=vmem, size = 0x4000, scoped, tag = 'scratch operand']
  %s0 = inlined_call_operand.hbm [shape: f32[2,2,128], index: 0, kind: input, shape index: {}]
  %s1 = inlined_call_operand.hbm [shape: f32[2,2,128], index: 1, kind: input, shape index: {}]
  %s2 = inlined_call_operand.hbm [shape: f32[2,16,128], index: 2, kind: input, shape index: {}]
  %s3 = inlined_call_operand.hbm [shape: f32[128,128], index: 3, kind: input, shape index: {}]
  %s4 = inlined_call_operand.hbm [shape: f32[128,512], index: 4, kind: input, shape index: {}]
  %s5 = inlined_call_operand.hbm [shape: f32[128,512], index: 5, kind: input, shape index: {}]
  %s6 = inlined_call_operand.vmem [shape: f32[1,512], index: 6, kind: input, shape index: {}]
  %s7 = inlined_call_operand.hbm [shape: f32[256,512], index: 7, kind: input, shape index: {}]
  %s8 = inlined_call_operand.vmem [shape: f32[1,512], index: 8, kind: input, shape index: {}]
  %s9 = inlined_call_operand.hbm [shape: f32[2,16,128], index: 9, kind: output, shape index: {}]
  %s10 = sld [smem:[#allocation0]]
  $region101: #{tpu_custom_call.1} parent=0
    _
  %s12 = ssub.s32 1, %s10
  %s13 = scalar_select 0, %s12, %s10
  $region1: #{tpu_custom_call.1} parent=0
    #allocation5 [shape = 'u8[2048]{0}', space=vmem, size = 0x800, scoped, tag = 'input window, operand 0, single buffered']
    #allocation6 [shape = 's32[2]{0}', space=sflag, size = 0x8, scoped, tag = 'scoped memory for tpu_custom_call.1']
    #allocation7 [shape = 's32[2]{0}', space=sflag, size = 0x8, scoped, tag = 'scoped memory for tpu_custom_call.1']
    #allocation8 [shape = 'u8[2048]{0}', space=vmem, size = 0x800, scoped, tag = 'input window, operand 1, single buffered']
    #allocation9 [shape = 's32[1]{0}', space=sflag, size = 0x4, scoped, tag = 'scoped memory for tpu_custom_call.1']
    #allocation10 [shape = 'u8[16384]{0}', space=vmem, size = 0x4000, scoped, tag = 'input window, operand 2']
    #allocation11 [shape = 'u8[65536]{0}', space=vmem, size = 0x10000, scoped, tag = 'input window, operand 3, single buffered']
    #allocation12 [shape = 'u8[262144]{0}', space=vmem, size = 0x40000, scoped, tag = 'input window, operand 4, single buffered']
    #allocation13 [shape = 's32[1]{0}', space=sflag, size = 0x4, scoped, tag = 'scoped memory for tpu_custom_call.1']
    #allocation14 [shape = 'u8[262144]{0}', space=vmem, size = 0x40000, scoped, tag = 'input window, operand 5, single buffered']
    #allocation15 [shape = 'u8[524288]{0}', space=vmem, size = 0x80000, scoped, tag = 'input window, operand 7, single buffered']
    #allocation16 [shape = 's32[1]{0}', space=sflag, size = 0x4, scoped, tag = 'scoped memory for tpu_custom_call.1']
    #allocation17 [shape = 'u8[16384]{0}', space=vmem, size = 0x4000, scoped, tag = 'output window, operand 0']
    %14 = vsyncpa [#allocation6], 0
    %15 = vsyncpa [#allocation9], 0
    %16 = vsyncpa [#allocation13], 0
    %17 = vsyncpa [#allocation16], 0
    %18 = vsyncpa [#allocation7], 0
    %s19 = scalar_lea.sflag [#allocation7], 1
    %20 = vsyncpa %s19, 0
    loop: start=0, step=1, limit=5
    $region2: #{tpu_custom_call.1} parent=1 // loop_pre_header
      _
    $region3: #{tpu_custom_call.1} parent=1 // loop_header
      %s22 = sphi 0, %s26
      %p23 = scmp.ge.s32.totalorder %s22, 5
      %s30 = sphi 0, %s30
      %s32 = sphi 0, %s30
      %s33 = sphi 0, %s32
      %s47 = sphi 0, %s33
      %s51 = sphi 0, %s51
      %s53 = sphi 0, %s51
      %s54 = sphi 0, %s53
      %s68 = sphi 0, %s54
      %s78 = sphi 0, %s80
      %s81 = sphi 0, %s78
      %s82 = sphi 0, %s81
      %s98 = sphi 0, %s82
      %s102 = sphi 0, %s102
      %s104 = sphi 0, %s102
      %s105 = sphi 0, %s104
      %s119 = sphi 0, %s105
      %s123 = sphi 0, %s123
      %s125 = sphi 0, %s123
      %s126 = sphi 0, %s125
      %s140 = sphi 0, %s126
      %s144 = sphi 0, %s144
      %s146 = sphi 0, %s144
      %s147 = sphi 0, %s146
      %s161 = sphi 0, %s147
      %s165 = sphi 0, %s165
      %s167 = sphi 0, %s165
      %s168 = sphi 0, %s167
      %s182 = sphi 0, %s168
      %s186 = sphi 0, %s186
      %s188 = sphi 0, %s186
      %s189 = sphi 0, %s188
      %s203 = sphi 0, %s189
      %s207 = sphi 0, %s207
      %s209 = sphi 0, %s207
      %s210 = sphi 0, %s209
      %s224 = sphi 0, %s210
      %s236 = sphi 0, %s238
      %s239 = sphi 0, %s236
      %s240 = sphi 0, %s239
      %s256 = sphi 0, %s240
    $region4: #{tpu_custom_call.1} parent=1 // loop_header_branch
      %25 = sbr.rel (%p23) target = $region8
    $region5: #{tpu_custom_call.1} parent=1 // loop_body
      %s27 = ssub.s32 %s22, 1
      %s28 = ssub.s32 %s22, 2
      %s29 = sadd.s32 %s22, 1
      %s31 = sadd.s32 %s30, 1
      %p34 = scmp.eq.s32.totalorder %s22, 2
      %p35 = scmp.ne.s32.totalorder %s30, %s32
      %p36 = scmp.eq.s32.totalorder %s22, 0
      %p37 = por %p35, %p36
      %p38 = scmp.ne.s32.totalorder %s30, %s32
      %p39 = scmp.eq.s32.totalorder %s27, 2
      %p40 = por %p38, %p39
      %p41 = scmp.ne.s32.totalorder %s32, %s33
      %p42 = scmp.eq.s32.totalorder %s27, 0
      %p43 = por %p41, %p42
      %p44 = scmp.ne.s32.totalorder %s32, %s33
      %p45 = scmp.eq.s32.totalorder %s28, 2
      %p46 = por %p44, %p45
      %p48 = scmp.ne.s32.totalorder %s33, %s47
      %p49 = scmp.eq.s32.totalorder %s28, 0
      %p50 = por %p48, %p49
      %s52 = sadd.s32 %s51, 1
      %p55 = scmp.eq.s32.totalorder %s22, 2
      %p56 = scmp.ne.s32.totalorder %s51, %s53
      %p57 = scmp.eq.s32.totalorder %s22, 0
      %p58 = por %p56, %p57
      %p59 = scmp.ne.s32.totalorder %s51, %s53
      %p60 = scmp.eq.s32.totalorder %s27, 2
      %p61 = por %p59, %p60
      %p62 = scmp.ne.s32.totalorder %s53, %s54
      %p63 = scmp.eq.s32.totalorder %s27, 0
      %p64 = por %p62, %p63
      %p65 = scmp.ne.s32.totalorder %s53, %s54
      %p66 = scmp.eq.s32.totalorder %s28, 2
      %p67 = por %p65, %p66
      %p69 = scmp.ne.s32.totalorder %s54, %s68
      %p70 = scmp.eq.s32.totalorder %s28, 0
      %p71 = por %p69, %p70
      %p72 = scmp.lt.s32.totalorder %s22, 1
      %s73 = scalar_select %p72, %s22, 1
      %p74 = scmp.lt.s32.totalorder %s29, 1
      %s75 = scalar_select %p74, %s29, 1
      %s76 = ssub.s32 %s73, %s75
      %p77 = scmp.eq.s32.totalorder %s76, 0
      %s79 = sadd.s32 %s78, 1
      %s80 = scalar_select %p77, %s78, %s79
      %p83 = pneg %p77
      %p84 = scmp.eq.s32.totalorder %s22, 2
      %p85 = por %p83, %p84
      %p86 = scmp.ne.s32.totalorder %s78, %s81
      %p87 = scmp.eq.s32.totalorder %s22, 0
      %p88 = por %p86, %p87
      %p89 = scmp.ne.s32.totalorder %s78, %s81
      %p90 = scmp.eq.s32.totalorder %s27, 2
      %p91 = por %p89, %p90
      %p92 = scmp.ne.s32.totalorder %s81, %s82
      %p93 = scmp.eq.s32.totalorder %s27, 0
      %p94 = por %p92, %p93
      %p95 = scmp.ne.s32.totalorder %s81, %s82
      %p96 = scmp.eq.s32.totalorder %s28, 2
      %p97 = por %p95, %p96
      %p99 = scmp.ne.s32.totalorder %s82, %s98
      %p100 = scmp.eq.s32.totalorder %s28, 0
      %p101 = por %p99, %p100
      %s103 = sadd.s32 %s102, 1
      %p106 = scmp.eq.s32.totalorder %s22, 2
      %p107 = scmp.ne.s32.totalorder %s102, %s104
      %p108 = scmp.eq.s32.totalorder %s22, 0
      %p109 = por %p107, %p108
      %p110 = scmp.ne.s32.totalorder %s102, %s104
      %p111 = scmp.eq.s32.totalorder %s27, 2
      %p112 = por %p110, %p111
      %p113 = scmp.ne.s32.totalorder %s104, %s105
      %p114 = scmp.eq.s32.totalorder %s27, 0
      %p115 = por %p113, %p114
      %p116 = scmp.ne.s32.totalorder %s104, %s105
      %p117 = scmp.eq.s32.totalorder %s28, 2
      %p118 = por %p116, %p117
      %p120 = scmp.ne.s32.totalorder %s105, %s119
      %p121 = scmp.eq.s32.totalorder %s28, 0
      %p122 = por %p120, %p121
      %s124 = sadd.s32 %s123, 1
      %p127 = scmp.eq.s32.totalorder %s22, 2
      %p128 = scmp.ne.s32.totalorder %s123, %s125
      %p129 = scmp.eq.s32.totalorder %s22, 0
      %p130 = por %p128, %p129
      %p131 = scmp.ne.s32.totalorder %s123, %s125
      %p132 = scmp.eq.s32.totalorder %s27, 2
      %p133 = por %p131, %p132
      %p134 = scmp.ne.s32.totalorder %s125, %s126
      %p135 = scmp.eq.s32.totalorder %s27, 0
      %p136 = por %p134, %p135
      %p137 = scmp.ne.s32.totalorder %s125, %s126
      %p138 = scmp.eq.s32.totalorder %s28, 2
      %p139 = por %p137, %p138
      %p141 = scmp.ne.s32.totalorder %s126, %s140
      %p142 = scmp.eq.s32.totalorder %s28, 0
      %p143 = por %p141, %p142
      %s145 = sadd.s32 %s144, 1
      %p148 = scmp.eq.s32.totalorder %s22, 2
      %p149 = scmp.ne.s32.totalorder %s144, %s146
      %p150 = scmp.eq.s32.totalorder %s22, 0
      %p151 = por %p149, %p150
      %p152 = scmp.ne.s32.totalorder %s144, %s146
      %p153 = scmp.eq.s32.totalorder %s27, 2
      %p154 = por %p152, %p153
      %p155 = scmp.ne.s32.totalorder %s146, %s147
      %p156 = scmp.eq.s32.totalorder %s27, 0
      %p157 = por %p155, %p156
      %p158 = scmp.ne.s32.totalorder %s146, %s147
      %p159 = scmp.eq.s32.totalorder %s28, 2
      %p160 = por %p158, %p159
      %p162 = scmp.ne.s32.totalorder %s147, %s161
      %p163 = scmp.eq.s32.totalorder %s28, 0
      %p164 = por %p162, %p163
      %s166 = sadd.s32 %s165, 1
      %p169 = scmp.eq.s32.totalorder %s22, 2
      %p170 = scmp.ne.s32.totalorder %s165, %s167
      %p171 = scmp.eq.s32.totalorder %s22, 0
      %p172 = por %p170, %p171
      %p173 = scmp.ne.s32.totalorder %s165, %s167
      %p174 = scmp.eq.s32.totalorder %s27, 2
      %p175 = por %p173, %p174
      %p176 = scmp.ne.s32.totalorder %s167, %s168
      %p177 = scmp.eq.s32.totalorder %s27, 0
      %p178 = por %p176, %p177
      %p179 = scmp.ne.s32.totalorder %s167, %s168
      %p180 = scmp.eq.s32.totalorder %s28, 2
      %p181 = por %p179, %p180
      %p183 = scmp.ne.s32.totalorder %s168, %s182
      %p184 = scmp.eq.s32.totalorder %s28, 0
      %p185 = por %p183, %p184
      %s187 = sadd.s32 %s186, 1
      %p190 = scmp.eq.s32.totalorder %s22, 2
      %p191 = scmp.ne.s32.totalorder %s186, %s188
      %p192 = scmp.eq.s32.totalorder %s22, 0
      %p193 = por %p191, %p192
      %p194 = scmp.ne.s32.totalorder %s186, %s188
      %p195 = scmp.eq.s32.totalorder %s27, 2
      %p196 = por %p194, %p195
      %p197 = scmp.ne.s32.totalorder %s188, %s189
      %p198 = scmp.eq.s32.totalorder %s27, 0
      %p199 = por %p197, %p198
      %p200 = scmp.ne.s32.totalorder %s188, %s189
      %p201 = scmp.eq.s32.totalorder %s28, 2
      %p202 = por %p200, %p201
      %p204 = scmp.ne.s32.totalorder %s189, %s203
      %p205 = scmp.eq.s32.totalorder %s28, 0
      %p206 = por %p204, %p205
      %s208 = sadd.s32 %s207, 1
      %p211 = scmp.eq.s32.totalorder %s22, 2
      %p212 = scmp.ne.s32.totalorder %s207, %s209
      %p213 = scmp.eq.s32.totalorder %s22, 0
      %p214 = por %p212, %p213
      %p215 = scmp.ne.s32.totalorder %s207, %s209
      %p216 = scmp.eq.s32.totalorder %s27, 2
      %p217 = por %p215, %p216
      %p218 = scmp.ne.s32.totalorder %s209, %s210
      %p219 = scmp.eq.s32.totalorder %s27, 0
      %p220 = por %p218, %p219
      %p221 = scmp.ne.s32.totalorder %s209, %s210
      %p222 = scmp.eq.s32.totalorder %s28, 2
      %p223 = por %p221, %p222
      %p225 = scmp.ne.s32.totalorder %s210, %s224
      %p226 = scmp.eq.s32.totalorder %s28, 0
      %p227 = por %p225, %p226
      %s228 = ssub.s32 %s22, 1
      %p229 = scmp.gt.s32.totalorder %s228, 0
      %s230 = scalar_select %p229, %s228, 0
      %s231 = ssub.s32 %s29, 1
      %p232 = scmp.gt.s32.totalorder %s231, 0
      %s233 = scalar_select %p232, %s231, 0
      %s234 = ssub.s32 %s230, %s233
      %p235 = scmp.eq.s32.totalorder %s234, 0
      %s237 = sadd.s32 %s236, 1
      %s238 = scalar_select %p235, %s236, %s237
      %p241 = pneg %p235
      %p242 = scmp.eq.s32.totalorder %s22, 2
      %p243 = por %p241, %p242
      %p244 = scmp.ne.s32.totalorder %s236, %s239
      %p245 = scmp.eq.s32.totalorder %s22, 0
      %p246 = por %p244, %p245
      %p247 = scmp.ne.s32.totalorder %s236, %s239
      %p248 = scmp.eq.s32.totalorder %s27, 2
      %p249 = por %p247, %p248
      %p250 = scmp.ne.s32.totalorder %s239, %s240
      %p251 = scmp.eq.s32.totalorder %s27, 0
      %p252 = por %p250, %p251
      %p253 = scmp.ne.s32.totalorder %s239, %s240
      %p254 = scmp.eq.s32.totalorder %s28, 2
      %p255 = por %p253, %p254
      %p257 = scmp.ne.s32.totalorder %s240, %s256
      %p258 = scmp.eq.s32.totalorder %s28, 0
      %p259 = por %p257, %p258
      %p260 = scmp.le.s32.totalorder 1, %s22
      %p261 = scmp.lt.s32.totalorder %s22, 4
      %p262 = pnand %p260, %p261
      %p263 = pneg %p262
      // Predicated region
      $region9: #{tpu_custom_call.1} parent=5 // pred_check
        _
      $region10: #{tpu_custom_call.1} parent=5 // pred_check_branch
        %265 = sbr.rel (%p262) target = $region12
      $region11: #{tpu_custom_call.1} parent=5 // pred_region
        %s266 = ssub.s32 %s22, 1
        // Predicated region
        $region13: #{tpu_custom_call.1} parent=11 // pred_check
          %p267 = pneg %p43
        $region14: #{tpu_custom_call.1} parent=11 // pred_check_branch
          %269 = sbr.rel (%p267) target = $region16
        $region15: #{tpu_custom_call.1} parent=11 // pred_region
          %s271 = ssub.s32 64, 64
          %272 = vsyncadd [#allocation6], %s271
          %s273 = sshll.u32 [#allocation5], 4
          %s274 = int_to_ptr.vmem [resolvable:$true] %s273
          %279 = dma.hbm_to_vmem [thread:$0]  %s0, 64, %s274, [#allocation6], 32, 32, 2
        $region16: #{tpu_custom_call.1} parent=11 // pred_fallthru
          _
        // Predicated region
        $region17: #{tpu_custom_call.1} parent=11 // pred_check
          %p280 = pneg %p64
        $region18: #{tpu_custom_call.1} parent=11 // pred_check_branch
          %282 = sbr.rel (%p280) target = $region20
        $region19: #{tpu_custom_call.1} parent=11 // pred_region
          %s284 = ssub.s32 64, 64
          %285 = vsyncadd [#allocation9], %s284
          %s286 = sshll.u32 [#allocation8], 4
          %s287 = int_to_ptr.vmem [resolvable:$true] %s286
          %292 = dma.hbm_to_vmem [thread:$0]  %s1, 64, %s287, [#allocation9], 32, 32, 2
        $region20: #{tpu_custom_call.1} parent=11 // pred_fallthru
          _
        // Predicated region
        $region21: #{tpu_custom_call.1} parent=11 // pred_check
          %p293 = pneg %p115
        $region22: #{tpu_custom_call.1} parent=11 // pred_check_branch
          %295 = sbr.rel (%p293) target = $region24
        $region23: #{tpu_custom_call.1} parent=11 // pred_region
          %s297 = ssub.s32 2048, 2048
          %298 = vsyncadd [#allocation9], %s297
          %s299 = sshll.u32 [#allocation11], 4
          %s300 = int_to_ptr.vmem [resolvable:$true] %s299
          %305 = dma.hbm_to_vmem [thread:$0]  %s3, 2048, %s300, [#allocation9], 128, 128, 8
        $region24: #{tpu_custom_call.1} parent=11 // pred_fallthru
          _
        // Predicated region
        $region25: #{tpu_custom_call.1} parent=11 // pred_check
          %p306 = pneg %p136
        $region26: #{tpu_custom_call.1} parent=11 // pred_check_branch
          %308 = sbr.rel (%p306) target = $region28
        $region27: #{tpu_custom_call.1} parent=11 // pred_region
          %s310 = ssub.s32 8192, 8192
          %311 = vsyncadd [#allocation13], %s310
          %s312 = sshll.u32 [#allocation12], 4
          %s313 = int_to_ptr.vmem [resolvable:$true] %s312
          %318 = dma.hbm_to_vmem [thread:$0]  %s4, 8192, %s313, [#allocation13], 512, 512, 32
        $region28: #{tpu_custom_call.1} parent=11 // pred_fallthru
          _
        // Predicated region
        $region29: #{tpu_custom_call.1} parent=11 // pred_check
          %p319 = pneg %p157
        $region30: #{tpu_custom_call.1} parent=11 // pred_check_branch
          %321 = sbr.rel (%p319) target = $region32
        $region31: #{tpu_custom_call.1} parent=11 // pred_region
          %s323 = ssub.s32 8192, 8192
          %324 = vsyncadd [#allocation13], %s323
          %s325 = sshll.u32 [#allocation14], 4
          %s326 = int_to_ptr.vmem [resolvable:$true] %s325
          %331 = dma.hbm_to_vmem [thread:$0]  %s5, 8192, %s326, [#allocation13], 512, 512, 32
        $region32: #{tpu_custom_call.1} parent=11 // pred_fallthru
          _
        // Predicated region
        $region33: #{tpu_custom_call.1} parent=11 // pred_check
          %p332 = pneg %p178
        $region34: #{tpu_custom_call.1} parent=11 // pred_check_branch
          %334 = sbr.rel (%p332) target = $region36
        $region35: #{tpu_custom_call.1} parent=11 // pred_region
          _
        $region36: #{tpu_custom_call.1} parent=11 // pred_fallthru
          _
        // Predicated region
        $region37: #{tpu_custom_call.1} parent=11 // pred_check
          %p335 = pneg %p199
        $region38: #{tpu_custom_call.1} parent=11 // pred_check_branch
          %337 = sbr.rel (%p335) target = $region40
        $region39: #{tpu_custom_call.1} parent=11 // pred_region
          %s339 = ssub.s32 16384, 16384
          %340 = vsyncadd [#allocation16], %s339
          %s341 = sshll.u32 [#allocation15], 4
          %s342 = int_to_ptr.vmem [resolvable:$true] %s341
          %347 = dma.hbm_to_vmem [thread:$0]  %s7, 16384, %s342, [#allocation16], 512, 512, 32
        $region40: #{tpu_custom_call.1} parent=11 // pred_fallthru
          _
        // Predicated region
        $region41: #{tpu_custom_call.1} parent=11 // pred_check
          %p348 = pneg %p220
        $region42: #{tpu_custom_call.1} parent=11 // pred_check_branch
          %350 = sbr.rel (%p348) target = $region44
        $region43: #{tpu_custom_call.1} parent=11 // pred_region
          _
        $region44: #{tpu_custom_call.1} parent=11 // pred_fallthru
          _
      $region12: #{tpu_custom_call.1} parent=5 // pred_fallthru
        _
      %p351 = scmp.lt.s32.totalorder %s22, 3
      // Predicated region
      $region45: #{tpu_custom_call.1} parent=5 // pred_check
        %p352 = pneg %p351
      $region46: #{tpu_custom_call.1} parent=5 // pred_check_branch
        %354 = sbr.rel (%p352) target = $region48
      $region47: #{tpu_custom_call.1} parent=5 // pred_region
        // Predicated region
        $region49: #{tpu_custom_call.1} parent=47 // pred_check
          %p355 = pneg %p88
        $region50: #{tpu_custom_call.1} parent=47 // pred_check_branch
          %357 = sbr.rel (%p355) target = $region52
        $region51: #{tpu_custom_call.1} parent=47 // pred_region
          %s358 = sand.u32 %s22, 1
          %s359 = scalar_lea.sflag [#allocation6], %s358
          %s360 = sand.u32 %s78, 1
          %s361 = smul.addr %s360, 16
          %s362 = scalar_lea.vmem [#allocation10], %s361
          %p363 = scmp.lt.s32.totalorder %s22, 1
          %s364 = scalar_select %p363, %s22, 1
          %s366 = ssub.s32 256, 256
          %367 = vsyncadd %s359, %s366
          %s368 = smul.addr %s364, 128
          %s369 = scalar_lea.hbm %s2, %s368
          %s370 = sshll.u32 %s362, 4
          %s371 = int_to_ptr.vmem [resolvable:$true] %s370
          %376 = dma.hbm_to_vmem [thread:$0]  %s369, 256, %s371, %s359, 256, 128, 8
        $region52: #{tpu_custom_call.1} parent=47 // pred_fallthru
          _
      $region48: #{tpu_custom_call.1} parent=5 // pred_fallthru
        _
      %p377 = scmp.le.s32.totalorder 1, %s22
      %p378 = scmp.lt.s32.totalorder %s22, 4
      %p379 = pnand %p377, %p378
      %p380 = pneg %p379
      // Predicated region
      $region53: #{tpu_custom_call.1} parent=5 // pred_check
        _
      $region54: #{tpu_custom_call.1} parent=5 // pred_check_branch
        %382 = sbr.rel (%p379) target = $region56
      $region55: #{tpu_custom_call.1} parent=5 // pred_region
        %s383 = ssub.s32 %s22, 1
        // Predicated region
        $region57: #{tpu_custom_call.1} parent=55 // pred_check
          %p384 = pneg %p43
        $region58: #{tpu_custom_call.1} parent=55 // pred_check_branch
          %386 = sbr.rel (%p384) target = $region60
        $region59: #{tpu_custom_call.1} parent=55 // pred_region
          %387 = dma.done [#allocation6], 64
        $region60: #{tpu_custom_call.1} parent=55 // pred_fallthru
          _
        // Predicated region
        $region61: #{tpu_custom_call.1} parent=55 // pred_check
          %p388 = pneg %p64
        $region62: #{tpu_custom_call.1} parent=55 // pred_check_branch
          %390 = sbr.rel (%p388) target = $region64
        $region63: #{tpu_custom_call.1} parent=55 // pred_region
          %391 = dma.done [#allocation9], 64
        $region64: #{tpu_custom_call.1} parent=55 // pred_fallthru
          _
        %s392 = sand.u32 %s27, 1
        %s393 = scalar_lea.sflag [#allocation6], %s392
        %s394 = sand.u32 %s81, 1
        %s395 = smul.addr %s394, 16
        %s396 = scalar_lea.vmem [#allocation10], %s395
        // Predicated region
        $region65: #{tpu_custom_call.1} parent=55 // pred_check
          %p397 = pneg %p94
        $region66: #{tpu_custom_call.1} parent=55 // pred_check_branch
          %399 = sbr.rel (%p397) target = $region68
        $region67: #{tpu_custom_call.1} parent=55 // pred_region
          %400 = dma.done %s393, 256
        $region68: #{tpu_custom_call.1} parent=55 // pred_fallthru
          _
        // Predicated region
        $region69: #{tpu_custom_call.1} parent=55 // pred_check
          %p401 = pneg %p115
        $region70: #{tpu_custom_call.1} parent=55 // pred_check_branch
          %403 = sbr.rel (%p401) target = $region72
        $region71: #{tpu_custom_call.1} parent=55 // pred_region
          %404 = dma.done [#allocation9], 2048
        $region72: #{tpu_custom_call.1} parent=55 // pred_fallthru
          _
        // Predicated region
        $region73: #{tpu_custom_call.1} parent=55 // pred_check
          %p405 = pneg %p136
        $region74: #{tpu_custom_call.1} parent=55 // pred_check_branch
          %407 = sbr.rel (%p405) target = $region76
        $region75: #{tpu_custom_call.1} parent=55 // pred_region
          %408 = dma.done [#allocation13], 8192
        $region76: #{tpu_custom_call.1} parent=55 // pred_fallthru
          _
        // Predicated region
        $region77: #{tpu_custom_call.1} parent=55 // pred_check
          %p409 = pneg %p157
        $region78: #{tpu_custom_call.1} parent=55 // pred_check_branch
          %411 = sbr.rel (%p409) target = $region80
        $region79: #{tpu_custom_call.1} parent=55 // pred_region
          %412 = dma.done [#allocation13], 8192
        $region80: #{tpu_custom_call.1} parent=55 // pred_fallthru
          _
        // Predicated region
        $region81: #{tpu_custom_call.1} parent=55 // pred_check
          %p413 = pneg %p199
        $region82: #{tpu_custom_call.1} parent=55 // pred_check_branch
          %415 = sbr.rel (%p413) target = $region84
        $region83: #{tpu_custom_call.1} parent=55 // pred_region
          %416 = dma.done [#allocation16], 16384
        $region84: #{tpu_custom_call.1} parent=55 // pred_fallthru
          _
        %p417 = pneg %p43
        %p418 = pneg %p40
        %p419 = pneg %p64
        %p420 = pneg %p61
        %s421 = sand.u32 %s27, 1
        %s422 = scalar_lea.sflag [#allocation6], %s421
        %s423 = sand.u32 %s81, 1
        %s424 = smul.addr %s423, 16
        %s425 = scalar_lea.vmem [#allocation10], %s424
        %p426 = pneg %p94
        %p427 = pneg %p91
        %p428 = pneg %p115
        %p429 = pneg %p112
        %p430 = pneg %p136
        %p431 = pneg %p133
        %p432 = pneg %p157
        %p433 = pneg %p154
        %p434 = pneg %p178
        %p435 = pneg %p175
        %p436 = pneg %p199
        %p437 = pneg %p196
        %p438 = pneg %p220
        %p439 = pneg %p217
        %p440 = pneg %p252
        %p441 = pneg %p249
        %s442 = sand.u32 %s239, 1
        %s443 = scalar_lea.sflag [#allocation7], %s442
        %s444 = sand.u32 %s239, 1
        %s445 = smul.addr %s444, 16
        %s446 = scalar_lea.vmem [#allocation17], %s445
        %p447 = scmp.lt.s32.totalorder %s27, 1
        %s448 = scalar_select %p447, %s27, 1
        %s449 = ssub.s32 %s27, 1
        %p450 = scmp.gt.s32.totalorder %s449, 0
        %s451 = scalar_select %p450, %s449, 0
        %p452 = scmp.eq.s32.totalorder %s27, 0
        // Predicated region
        $region85: #{tpu_custom_call.1} parent=55 // pred_check
          %p453 = pneg %p452
        $region86: #{tpu_custom_call.1} parent=55 // pred_check_branch
          %455 = sbr.rel (%p453) target = $region88
        $region87: #{tpu_custom_call.1} parent=55 // pred_region
          %v456 = vld [vmem:[#allocation5] sm:$0x3]
          %v457 = vld [vmem:[#allocation5 + $0x2] sm:$0x3]
          %458 = vst [vmem:[#allocation2] sm:$0x3] %v456
          %459 = vst [vmem:[#allocation2 + $0x2] sm:$0x3] %v457
          %v460 = vld [vmem:[#allocation8] sm:$0x3]
          %v461 = vld [vmem:[#allocation8 + $0x2] sm:$0x3]
          %462 = vst [vmem:[#allocation3] sm:$0x3] %v460
          %463 = vst [vmem:[#allocation3 + $0x2] sm:$0x3] %v461
          %s464 = scalar_lea.vmem [#allocation4], 16
          %465 = vst [vmem:[%s464] sm:$0xff] 0.0
          %466 = vst [vmem:[%s464 + $0x8] sm:$0xff] 0.0
        $region88: #{tpu_custom_call.1} parent=55 // pred_fallthru
          _
        %p467 = scmp.lt.s32.totalorder %s27, 0
        %s468 = ssub.s32 0, %s27
        %s469 = scalar_select %p467, %s468, %s27
        %s470 = sand.u32 %s469, 1
        %s471 = ssub.s32 0, %s470
        %s472 = scalar_select %p467, %s471, %s470
        %p473 = scmp.ne.s32.totalorder %s472, 0
        %p474 = scmp.lt.s32.totalorder %s472, 0
        %p475 = pnand %p474, %p473
        %p476 = pneg %p475
        %s477 = sadd.s32 %s472, 2
        %s478 = scalar_select %p476, %s477, %s472
        %s479 = ssub.s32 1, %s478
        %v480 = vld [vmem:[#allocation12] sm:$0xff]
        %v481 = vld [vmem:[#allocation12 + $0x8] sm:$0xff]
        %v482 = vld [vmem:[#allocation12 + $0x10] sm:$0xff]
        %v483 = vld [vmem:[#allocation12 + $0x18] sm:$0xff]
        %v484 = vld [vmem:[#allocation12 + $0x20] sm:$0xff]
        %v485 = vld [vmem:[#allocation12 + $0x28] sm:$0xff]
        %v486 = vld [vmem:[#allocation12 + $0x30] sm:$0xff]
        %v487 = vld [vmem:[#allocation12 + $0x38] sm:$0xff]
        %v488 = vld [vmem:[#allocation12 + $0x40] sm:$0xff]
        %v489 = vld [vmem:[#allocation12 + $0x48] sm:$0xff]
        %v490 = vld [vmem:[#allocation12 + $0x50] sm:$0xff]
        %v491 = vld [vmem:[#allocation12 + $0x58] sm:$0xff]
        %v492 = vld [vmem:[#allocation12 + $0x60] sm:$0xff]
        %v493 = vld [vmem:[#allocation12 + $0x68] sm:$0xff]
        %v494 = vld [vmem:[#allocation12 + $0x70] sm:$0xff]
        %v495 = vld [vmem:[#allocation12 + $0x78] sm:$0xff]
        %v496 = vld [vmem:[#allocation12 + $0x80] sm:$0xff]
        %v497 = vld [vmem:[#allocation12 + $0x88] sm:$0xff]
        %v498 = vld [vmem:[#allocation12 + $0x90] sm:$0xff]
        %v499 = vld [vmem:[#allocation12 + $0x98] sm:$0xff]
        %v500 = vld [vmem:[#allocation12 + $0xa0] sm:$0xff]
        %v501 = vld [vmem:[#allocation12 + $0xa8] sm:$0xff]
        %v502 = vld [vmem:[#allocation12 + $0xb0] sm:$0xff]
        %v503 = vld [vmem:[#allocation12 + $0xb8] sm:$0xff]
        %v504 = vld [vmem:[#allocation12 + $0xc0] sm:$0xff]
        %v505 = vld [vmem:[#allocation12 + $0xc8] sm:$0xff]
        %v506 = vld [vmem:[#allocation12 + $0xd0] sm:$0xff]
        %v507 = vld [vmem:[#allocation12 + $0xd8] sm:$0xff]
        %v508 = vld [vmem:[#allocation12 + $0xe0] sm:$0xff]
        %v509 = vld [vmem:[#allocation12 + $0xe8] sm:$0xff]
        %v510 = vld [vmem:[#allocation12 + $0xf0] sm:$0xff]
        %v511 = vld [vmem:[#allocation12 + $0xf8] sm:$0xff]
        %v512 = vld [vmem:[#allocation12 + $0x100] sm:$0xff]
        %v513 = vld [vmem:[#allocation12 + $0x108] sm:$0xff]
        %v514 = vld [vmem:[#allocation12 + $0x110] sm:$0xff]
        %v515 = vld [vmem:[#allocation12 + $0x118] sm:$0xff]
        %v516 = vld [vmem:[#allocation12 + $0x120] sm:$0xff]
        %v517 = vld [vmem:[#allocation12 + $0x128] sm:$0xff]
        %v518 = vld [vmem:[#allocation12 + $0x130] sm:$0xff]
        %v519 = vld [vmem:[#allocation12 + $0x138] sm:$0xff]
        %v520 = vld [vmem:[#allocation12 + $0x140] sm:$0xff]
        %v521 = vld [vmem:[#allocation12 + $0x148] sm:$0xff]
        %v522 = vld [vmem:[#allocation12 + $0x150] sm:$0xff]
        %v523 = vld [vmem:[#allocation12 + $0x158] sm:$0xff]
        %v524 = vld [vmem:[#allocation12 + $0x160] sm:$0xff]
        %v525 = vld [vmem:[#allocation12 + $0x168] sm:$0xff]
        %v526 = vld [vmem:[#allocation12 + $0x170] sm:$0xff]
        %v527 = vld [vmem:[#allocation12 + $0x178] sm:$0xff]
        %v528 = vld [vmem:[#allocation12 + $0x180] sm:$0xff]
        %v529 = vld [vmem:[#allocation12 + $0x188] sm:$0xff]
        %v530 = vld [vmem:[#allocation12 + $0x190] sm:$0xff]
        %v531 = vld [vmem:[#allocation12 + $0x198] sm:$0xff]
        %v532 = vld [vmem:[#allocation12 + $0x1a0] sm:$0xff]
        %v533 = vld [vmem:[#allocation12 + $0x1a8] sm:$0xff]
        %v534 = vld [vmem:[#allocation12 + $0x1b0] sm:$0xff]
        %v535 = vld [vmem:[#allocation12 + $0x1b8] sm:$0xff]
        %v536 = vld [vmem:[#allocation12 + $0x1c0] sm:$0xff]
        %v537 = vld [vmem:[#allocation12 + $0x1c8] sm:$0xff]
        %v538 = vld [vmem:[#allocation12 + $0x1d0] sm:$0xff]
        %v539 = vld [vmem:[#allocation12 + $0x1d8] sm:$0xff]
        %v540 = vld [vmem:[#allocation12 + $0x1e0] sm:$0xff]
        %v541 = vld [vmem:[#allocation12 + $0x1e8] sm:$0xff]
        %v542 = vld [vmem:[#allocation12 + $0x1f0] sm:$0xff]
        %v543 = vld [vmem:[#allocation12 + $0x1f8] sm:$0xff]
        %v544 = vld [vmem:[#allocation14] sm:$0xff]
        %v545 = vld [vmem:[#allocation14 + $0x8] sm:$0xff]
        %v546 = vld [vmem:[#allocation14 + $0x10] sm:$0xff]
        %v547 = vld [vmem:[#allocation14 + $0x18] sm:$0xff]
        %v548 = vld [vmem:[#allocation14 + $0x20] sm:$0xff]
        %v549 = vld [vmem:[#allocation14 + $0x28] sm:$0xff]
        %v550 = vld [vmem:[#allocation14 + $0x30] sm:$0xff]
        %v551 = vld [vmem:[#allocation14 + $0x38] sm:$0xff]
        %v552 = vld [vmem:[#allocation14 + $0x40] sm:$0xff]
        %v553 = vld [vmem:[#allocation14 + $0x48] sm:$0xff]
        %v554 = vld [vmem:[#allocation14 + $0x50] sm:$0xff]
        %v555 = vld [vmem:[#allocation14 + $0x58] sm:$0xff]
        %v556 = vld [vmem:[#allocation14 + $0x60] sm:$0xff]
        %v557 = vld [vmem:[#allocation14 + $0x68] sm:$0xff]
        %v558 = vld [vmem:[#allocation14 + $0x70] sm:$0xff]
        %v559 = vld [vmem:[#allocation14 + $0x78] sm:$0xff]
        %v560 = vld [vmem:[#allocation14 + $0x80] sm:$0xff]
        %v561 = vld [vmem:[#allocation14 + $0x88] sm:$0xff]
        %v562 = vld [vmem:[#allocation14 + $0x90] sm:$0xff]
        %v563 = vld [vmem:[#allocation14 + $0x98] sm:$0xff]
        %v564 = vld [vmem:[#allocation14 + $0xa0] sm:$0xff]
        %v565 = vld [vmem:[#allocation14 + $0xa8] sm:$0xff]
        %v566 = vld [vmem:[#allocation14 + $0xb0] sm:$0xff]
        %v567 = vld [vmem:[#allocation14 + $0xb8] sm:$0xff]
        %v568 = vld [vmem:[#allocation14 + $0xc0] sm:$0xff]
        %v569 = vld [vmem:[#allocation14 + $0xc8] sm:$0xff]
        %v570 = vld [vmem:[#allocation14 + $0xd0] sm:$0xff]
        %v571 = vld [vmem:[#allocation14 + $0xd8] sm:$0xff]
        %v572 = vld [vmem:[#allocation14 + $0xe0] sm:$0xff]
        %v573 = vld [vmem:[#allocation14 + $0xe8] sm:$0xff]
        %v574 = vld [vmem:[#allocation14 + $0xf0] sm:$0xff]
        %v575 = vld [vmem:[#allocation14 + $0xf8] sm:$0xff]
        %v576 = vld [vmem:[#allocation14 + $0x100] sm:$0xff]
        %v577 = vld [vmem:[#allocation14 + $0x108] sm:$0xff]
        %v578 = vld [vmem:[#allocation14 + $0x110] sm:$0xff]
        %v579 = vld [vmem:[#allocation14 + $0x118] sm:$0xff]
        %v580 = vld [vmem:[#allocation14 + $0x120] sm:$0xff]
        %v581 = vld [vmem:[#allocation14 + $0x128] sm:$0xff]
        %v582 = vld [vmem:[#allocation14 + $0x130] sm:$0xff]
        %v583 = vld [vmem:[#allocation14 + $0x138] sm:$0xff]
        %v584 = vld [vmem:[#allocation14 + $0x140] sm:$0xff]
        %v585 = vld [vmem:[#allocation14 + $0x148] sm:$0xff]
        %v586 = vld [vmem:[#allocation14 + $0x150] sm:$0xff]
        %v587 = vld [vmem:[#allocation14 + $0x158] sm:$0xff]
        %v588 = vld [vmem:[#allocation14 + $0x160] sm:$0xff]
        %v589 = vld [vmem:[#allocation14 + $0x168] sm:$0xff]
        %v590 = vld [vmem:[#allocation14 + $0x170] sm:$0xff]
        %v591 = vld [vmem:[#allocation14 + $0x178] sm:$0xff]
        %v592 = vld [vmem:[#allocation14 + $0x180] sm:$0xff]
        %v593 = vld [vmem:[#allocation14 + $0x188] sm:$0xff]
        %v594 = vld [vmem:[#allocation14 + $0x190] sm:$0xff]
        %v595 = vld [vmem:[#allocation14 + $0x198] sm:$0xff]
        %v596 = vld [vmem:[#allocation14 + $0x1a0] sm:$0xff]
        %v597 = vld [vmem:[#allocation14 + $0x1a8] sm:$0xff]
        %v598 = vld [vmem:[#allocation14 + $0x1b0] sm:$0xff]
        %v599 = vld [vmem:[#allocation14 + $0x1b8] sm:$0xff]
        %v600 = vld [vmem:[#allocation14 + $0x1c0] sm:$0xff]
        %v601 = vld [vmem:[#allocation14 + $0x1c8] sm:$0xff]
        %v602 = vld [vmem:[#allocation14 + $0x1d0] sm:$0xff]
        %v603 = vld [vmem:[#allocation14 + $0x1d8] sm:$0xff]
        %v604 = vld [vmem:[#allocation14 + $0x1e0] sm:$0xff]
        %v605 = vld [vmem:[#allocation14 + $0x1e8] sm:$0xff]
        %v606 = vld [vmem:[#allocation14 + $0x1f0] sm:$0xff]
        %v607 = vld [vmem:[#allocation14 + $0x1f8] sm:$0xff]
        %v608 = vld [vmem:[%s6] sm:$0xf]
        %v609 = vld [vmem:[#allocation15] sm:$0xff]
        %v610 = vld [vmem:[#allocation15 + $0x8] sm:$0xff]
        %v611 = vld [vmem:[#allocation15 + $0x10] sm:$0xff]
        %v612 = vld [vmem:[#allocation15 + $0x18] sm:$0xff]
        %v613 = vld [vmem:[#allocation15 + $0x20] sm:$0xff]
        %v614 = vld [vmem:[#allocation15 + $0x28] sm:$0xff]
        %v615 = vld [vmem:[#allocation15 + $0x30] sm:$0xff]
        %v616 = vld [vmem:[#allocation15 + $0x38] sm:$0xff]
        %v617 = vld [vmem:[#allocation15 + $0x40] sm:$0xff]
        %v618 = vld [vmem:[#allocation15 + $0x48] sm:$0xff]
        %v619 = vld [vmem:[#allocation15 + $0x50] sm:$0xff]
        %v620 = vld [vmem:[#allocation15 + $0x58] sm:$0xff]
        %v621 = vld [vmem:[#allocation15 + $0x60] sm:$0xff]
        %v622 = vld [vmem:[#allocation15 + $0x68] sm:$0xff]
        %v623 = vld [vmem:[#allocation15 + $0x70] sm:$0xff]
        %v624 = vld [vmem:[#allocation15 + $0x78] sm:$0xff]
        %v625 = vld [vmem:[#allocation15 + $0x80] sm:$0xff]
        %v626 = vld [vmem:[#allocation15 + $0x88] sm:$0xff]
        %v627 = vld [vmem:[#allocation15 + $0x90] sm:$0xff]
        %v628 = vld [vmem:[#allocation15 + $0x98] sm:$0xff]
        %v629 = vld [vmem:[#allocation15 + $0xa0] sm:$0xff]
        %v630 = vld [vmem:[#allocation15 + $0xa8] sm:$0xff]
        %v631 = vld [vmem:[#allocation15 + $0xb0] sm:$0xff]
        %v632 = vld [vmem:[#allocation15 + $0xb8] sm:$0xff]
        %v633 = vld [vmem:[#allocation15 + $0xc0] sm:$0xff]
        %v634 = vld [vmem:[#allocation15 + $0xc8] sm:$0xff]
        %v635 = vld [vmem:[#allocation15 + $0xd0] sm:$0xff]
        %v636 = vld [vmem:[#allocation15 + $0xd8] sm:$0xff]
        %v637 = vld [vmem:[#allocation15 + $0xe0] sm:$0xff]
        %v638 = vld [vmem:[#allocation15 + $0xe8] sm:$0xff]
        %v639 = vld [vmem:[#allocation15 + $0xf0] sm:$0xff]
        %v640 = vld [vmem:[#allocation15 + $0xf8] sm:$0xff]
        %v641 = vld [vmem:[#allocation15 + $0x100] sm:$0xff]
        %v642 = vld [vmem:[#allocation15 + $0x108] sm:$0xff]
        %v643 = vld [vmem:[#allocation15 + $0x110] sm:$0xff]
        %v644 = vld [vmem:[#allocation15 + $0x118] sm:$0xff]
        %v645 = vld [vmem:[#allocation15 + $0x120] sm:$0xff]
        %v646 = vld [vmem:[#allocation15 + $0x128] sm:$0xff]
        %v647 = vld [vmem:[#allocation15 + $0x130] sm:$0xff]
        %v648 = vld [vmem:[#allocation15 + $0x138] sm:$0xff]
        %v649 = vld [vmem:[#allocation15 + $0x140] sm:$0xff]
        %v650 = vld [vmem:[#allocation15 + $0x148] sm:$0xff]
        %v651 = vld [vmem:[#allocation15 + $0x150] sm:$0xff]
        %v652 = vld [vmem:[#allocation15 + $0x158] sm:$0xff]
        %v653 = vld [vmem:[#allocation15 + $0x160] sm:$0xff]
        %v654 = vld [vmem:[#allocation15 + $0x168] sm:$0xff]
        %v655 = vld [vmem:[#allocation15 + $0x170] sm:$0xff]
        %v656 = vld [vmem:[#allocation15 + $0x178] sm:$0xff]
        %v657 = vld [vmem:[#allocation15 + $0x180] sm:$0xff]
        %v658 = vld [vmem:[#allocation15 + $0x188] sm:$0xff]
        %v659 = vld [vmem:[#allocation15 + $0x190] sm:$0xff]
        %v660 = vld [vmem:[#allocation15 + $0x198] sm:$0xff]
        %v661 = vld [vmem:[#allocation15 + $0x1a0] sm:$0xff]
        %v662 = vld [vmem:[#allocation15 + $0x1a8] sm:$0xff]
        %v663 = vld [vmem:[#allocation15 + $0x1b0] sm:$0xff]
        %v664 = vld [vmem:[#allocation15 + $0x1b8] sm:$0xff]
        %v665 = vld [vmem:[#allocation15 + $0x1c0] sm:$0xff]
        %v666 = vld [vmem:[#allocation15 + $0x1c8] sm:$0xff]
        %v667 = vld [vmem:[#allocation15 + $0x1d0] sm:$0xff]
        %v668 = vld [vmem:[#allocation15 + $0x1d8] sm:$0xff]
        %v669 = vld [vmem:[#allocation15 + $0x1e0] sm:$0xff]
        %v670 = vld [vmem:[#allocation15 + $0x1e8] sm:$0xff]
        %v671 = vld [vmem:[#allocation15 + $0x1f0] sm:$0xff]
        %v672 = vld [vmem:[#allocation15 + $0x1f8] sm:$0xff]
        %v673 = vld [vmem:[#allocation15 + $0x200] sm:$0xff]
        %v674 = vld [vmem:[#allocation15 + $0x208] sm:$0xff]
        %v675 = vld [vmem:[#allocation15 + $0x210] sm:$0xff]
        %v676 = vld [vmem:[#allocation15 + $0x218] sm:$0xff]
        %v677 = vld [vmem:[#allocation15 + $0x220] sm:$0xff]
        %v678 = vld [vmem:[#allocation15 + $0x228] sm:$0xff]
        %v679 = vld [vmem:[#allocation15 + $0x230] sm:$0xff]
        %v680 = vld [vmem:[#allocation15 + $0x238] sm:$0xff]
        %v681 = vld [vmem:[#allocation15 + $0x240] sm:$0xff]
        %v682 = vld [vmem:[#allocation15 + $0x248] sm:$0xff]
        %v683 = vld [vmem:[#allocation15 + $0x250] sm:$0xff]
        %v684 = vld [vmem:[#allocation15 + $0x258] sm:$0xff]
        %v685 = vld [vmem:[#allocation15 + $0x260] sm:$0xff]
        %v686 = vld [vmem:[#allocation15 + $0x268] sm:$0xff]
        %v687 = vld [vmem:[#allocation15 + $0x270] sm:$0xff]
        %v688 = vld [vmem:[#allocation15 + $0x278] sm:$0xff]
        %v689 = vld [vmem:[#allocation15 + $0x280] sm:$0xff]
        %v690 = vld [vmem:[#allocation15 + $0x288] sm:$0xff]
        %v691 = vld [vmem:[#allocation15 + $0x290] sm:$0xff]
        %v692 = vld [vmem:[#allocation15 + $0x298] sm:$0xff]
        %v693 = vld [vmem:[#allocation15 + $0x2a0] sm:$0xff]
        %v694 = vld [vmem:[#allocation15 + $0x2a8] sm:$0xff]
        %v695 = vld [vmem:[#allocation15 + $0x2b0] sm:$0xff]
        %v696 = vld [vmem:[#allocation15 + $0x2b8] sm:$0xff]
        %v697 = vld [vmem:[#allocation15 + $0x2c0] sm:$0xff]
        %v698 = vld [vmem:[#allocation15 + $0x2c8] sm:$0xff]
        %v699 = vld [vmem:[#allocation15 + $0x2d0] sm:$0xff]
        %v700 = vld [vmem:[#allocation15 + $0x2d8] sm:$0xff]
        %v701 = vld [vmem:[#allocation15 + $0x2e0] sm:$0xff]
        %v702 = vld [vmem:[#allocation15 + $0x2e8] sm:$0xff]
        %v703 = vld [vmem:[#allocation15 + $0x2f0] sm:$0xff]
        %v704 = vld [vmem:[#allocation15 + $0x2f8] sm:$0xff]
        %v705 = vld [vmem:[#allocation15 + $0x300] sm:$0xff]
        %v706 = vld [vmem:[#allocation15 + $0x308] sm:$0xff]
        %v707 = vld [vmem:[#allocation15 + $0x310] sm:$0xff]
        %v708 = vld [vmem:[#allocation15 + $0x318] sm:$0xff]
        %v709 = vld [vmem:[#allocation15 + $0x320] sm:$0xff]
        %v710 = vld [vmem:[#allocation15 + $0x328] sm:$0xff]
        %v711 = vld [vmem:[#allocation15 + $0x330] sm:$0xff]
        %v712 = vld [vmem:[#allocation15 + $0x338] sm:$0xff]
        %v713 = vld [vmem:[#allocation15 + $0x340] sm:$0xff]
        %v714 = vld [vmem:[#allocation15 + $0x348] sm:$0xff]
        %v715 = vld [vmem:[#allocation15 + $0x350] sm:$0xff]
        %v716 = vld [vmem:[#allocation15 + $0x358] sm:$0xff]
        %v717 = vld [vmem:[#allocation15 + $0x360] sm:$0xff]
        %v718 = vld [vmem:[#allocation15 + $0x368] sm:$0xff]
        %v719 = vld [vmem:[#allocation15 + $0x370] sm:$0xff]
        %v720 = vld [vmem:[#allocation15 + $0x378] sm:$0xff]
        %v721 = vld [vmem:[#allocation15 + $0x380] sm:$0xff]
        %v722 = vld [vmem:[#allocation15 + $0x388] sm:$0xff]
        %v723 = vld [vmem:[#allocation15 + $0x390] sm:$0xff]
        %v724 = vld [vmem:[#allocation15 + $0x398] sm:$0xff]
        %v725 = vld [vmem:[#allocation15 + $0x3a0] sm:$0xff]
        %v726 = vld [vmem:[#allocation15 + $0x3a8] sm:$0xff]
        %v727 = vld [vmem:[#allocation15 + $0x3b0] sm:$0xff]
        %v728 = vld [vmem:[#allocation15 + $0x3b8] sm:$0xff]
        %v729 = vld [vmem:[#allocation15 + $0x3c0] sm:$0xff]
        %v730 = vld [vmem:[#allocation15 + $0x3c8] sm:$0xff]
        %v731 = vld [vmem:[#allocation15 + $0x3d0] sm:$0xff]
        %v732 = vld [vmem:[#allocation15 + $0x3d8] sm:$0xff]
        %v733 = vld [vmem:[#allocation15 + $0x3e0] sm:$0xff]
        %v734 = vld [vmem:[#allocation15 + $0x3e8] sm:$0xff]
        %v735 = vld [vmem:[#allocation15 + $0x3f0] sm:$0xff]
        %v736 = vld [vmem:[#allocation15 + $0x3f8] sm:$0xff]
        %v737 = vld [vmem:[%s8] sm:$0xf]
        %v739 = vlaneseq
        %v740 = vshrl.u32 %v739, 7
        %v741 = vsub.s32 0, %v740
        %v742 = vrot.slane %v737, %v741
        %v743 = vlaneseq
        %v744 = vshrl.u32 %v743, 7
        %v745 = vsub.s32 1, %v744
        %v746 = vrot.slane %v737, %v745
        %v747 = vlaneseq
        %v748 = vshrl.u32 %v747, 7
        %v749 = vsub.s32 2, %v748
        %v750 = vrot.slane %v737, %v749
        %v751 = vlaneseq
        %v752 = vshrl.u32 %v751, 7
        %v753 = vsub.s32 3, %v752
        %v754 = vrot.slane %v737, %v753
        %v759 = vld [vmem:[#allocation11] sm:$0xff]
        %v760 = vld [vmem:[#allocation11 + $0x8] sm:$0xff]
        %v761 = vld [vmem:[#allocation11 + $0x10] sm:$0xff]
        %v762 = vld [vmem:[#allocation11 + $0x18] sm:$0xff]
        %v763 = vld [vmem:[#allocation11 + $0x20] sm:$0xff]
        %v764 = vld [vmem:[#allocation11 + $0x28] sm:$0xff]
        %v765 = vld [vmem:[#allocation11 + $0x30] sm:$0xff]
        %v766 = vld [vmem:[#allocation11 + $0x38] sm:$0xff]
        %v767 = vld [vmem:[#allocation11 + $0x40] sm:$0xff]
        %v768 = vld [vmem:[#allocation11 + $0x48] sm:$0xff]
        %v769 = vld [vmem:[#allocation11 + $0x50] sm:$0xff]
        %v770 = vld [vmem:[#allocation11 + $0x58] sm:$0xff]
        %v771 = vld [vmem:[#allocation11 + $0x60] sm:$0xff]
        %v772 = vld [vmem:[#allocation11 + $0x68] sm:$0xff]
        %v773 = vld [vmem:[#allocation11 + $0x70] sm:$0xff]
        %v774 = vld [vmem:[#allocation11 + $0x78] sm:$0xff]
        %s775 = smul.u32 %s479, 16
        %s776 = scalar_lea.vmem [#allocation4], %s775
        %v777 = vld [vmem:[%s776] sm:$0xff]
        %v778 = vld [vmem:[%s776 + $0x8] sm:$0xff]
        %779 = vmatprep.subr.mxu0 0.0
        %780 = vmatpush1.msra.mxu0 %v774
        %781 = vmatprep.subr.mxu0 0.0
        %782 = vmatpush1.msra.mxu0 %v773
        %783 = vmatprep.subr.mxu0 0.0
        %784 = vmatpush1.msra.mxu0 %v772
        %785 = vmatprep.subr.mxu0 0.0
        %786 = vmatpush1.msra.mxu0 %v771
        %787 = vmatprep.subr.mxu0 0.0
        %788 = vmatpush1.msra.mxu0 %v770
        %789 = vmatprep.subr.mxu0 0.0
        %790 = vmatpush1.msra.mxu0 %v769
        %791 = vmatprep.subr.mxu0 0.0
        %792 = vmatpush1.msra.mxu0 %v768
        %793 = vmatprep.subr.mxu0 0.0
        %794 = vmatpush1.msra.mxu0 %v767
        %795 = vmatprep.subr.mxu0 0.0
        %796 = vmatpush1.msra.mxu0 %v766
        %797 = vmatprep.subr.mxu0 0.0
        %798 = vmatpush1.msra.mxu0 %v765
        %799 = vmatprep.subr.mxu0 0.0
        %800 = vmatpush1.msra.mxu0 %v764
        %801 = vmatprep.subr.mxu0 0.0
        %802 = vmatpush1.msra.mxu0 %v763
        %803 = vmatprep.subr.mxu0 0.0
        %804 = vmatpush1.msra.mxu0 %v762
        %805 = vmatprep.subr.mxu0 0.0
        %806 = vmatpush1.msra.mxu0 %v761
        %807 = vmatprep.subr.mxu0 0.0
        %808 = vmatpush1.msra.mxu0 %v760
        %809 = vmatprep.subr.mxu0 0.0
        %810 = vmatpush1.msra.mxu0 %v759
        %811 = vmatprep.subr.mxu0 0.0
        %812 = vmatpush2.msra.mxu0 0.0
        %813 = vmatprep.subr.mxu0 0.0
        %814 = vmatpush2.msra.mxu0 0.0
        %815 = vmatprep.subr.mxu0 0.0
        %816 = vmatpush2.msra.mxu0 0.0
        %817 = vmatprep.subr.mxu0 0.0
        %818 = vmatpush2.msra.mxu0 0.0
        %819 = vmatprep.subr.mxu0 0.0
        %820 = vmatpush2.msra.mxu0 0.0
        %821 = vmatprep.subr.mxu0 0.0
        %822 = vmatpush2.msra.mxu0 0.0
        %823 = vmatprep.subr.mxu0 0.0
        %824 = vmatpush2.msra.mxu0 0.0
        %825 = vmatprep.subr.mxu0 0.0
        %826 = vmatpush2.msra.mxu0 0.0
        %827 = vmatprep.subr.mxu0 0.0
        %828 = vmatpush2.msra.mxu0 0.0
        %829 = vmatprep.subr.mxu0 0.0
        %830 = vmatpush2.msra.mxu0 0.0
        %831 = vmatprep.subr.mxu0 0.0
        %832 = vmatpush2.msra.mxu0 0.0
        %833 = vmatprep.subr.mxu0 0.0
        %834 = vmatpush2.msra.mxu0 0.0
        %835 = vmatprep.subr.mxu0 0.0
        %836 = vmatpush2.msra.mxu0 0.0
        %837 = vmatprep.subr.mxu0 0.0
        %838 = vmatpush2.msra.mxu0 0.0
        %839 = vmatprep.subr.mxu0 0.0
        %840 = vmatpush2.msra.mxu0 0.0
        %841 = vmatprep.subr.mxu0 0.0
        %842 = vmatpush2.msra.mxu0 0.0
        %843 = vmatprep.mubr.f32.mxu0 0.0
        %844 = vmatmul.mubr.f32.gmra.mxu0 %v777
        %v845 = vpop.f32.mrf.mxu0
        %v846 = vadd.f32 0.0, %v845
        %v847 = vpop.f32.mrf.mxu0
        %848 = vmatprep.mubr.f32.mxu0 0.0
        %849 = vmatmul.mubr.f32.gmra.mxu0 %v778
        %v850 = vpop.f32.mrf.mxu0
        %v851 = vadd.f32 0.0, %v850
        %v852 = vpop.f32.mrf.mxu0
        %853 = vdwg.mxu0
        %854 = vst [vmem:[%s446] sm:$0xff] %v846
        %855 = vst [vmem:[%s446 + $0x8] sm:$0xff] %v851
        %v856 = vld [vmem:[%s396] sm:$0xff]
        %v857 = vld [vmem:[%s396 + $0x8] sm:$0xff]
        %858 = vmatprep.subr.mxu0 %v541
        %859 = vmatpush1.msra.mxu0 %v540
        %860 = vmatprep.subr.mxu0 %v537
        %861 = vmatpush1.msra.mxu0 %v536
        %862 = vmatprep.subr.mxu0 %v533
        %863 = vmatpush1.msra.mxu0 %v532
        %864 = vmatprep.subr.mxu0 %v529
        %865 = vmatpush1.msra.mxu0 %v528
        %866 = vmatprep.subr.mxu0 %v525
        %867 = vmatpush1.msra.mxu0 %v524
        %868 = vmatprep.subr.mxu0 %v521
        %869 = vmatpush1.msra.mxu0 %v520
        %870 = vmatprep.subr.mxu0 %v517
        %871 = vmatpush1.msra.mxu0 %v516
        %872 = vmatprep.subr.mxu0 %v513
        %873 = vmatpush1.msra.mxu0 %v512
        %874 = vmatprep.subr.mxu0 %v509
        %875 = vmatpush1.msra.mxu0 %v508
        %876 = vmatprep.subr.mxu0 %v505
        %877 = vmatpush1.msra.mxu0 %v504
        %878 = vmatprep.subr.mxu0 %v501
        %879 = vmatpush1.msra.mxu0 %v500
        %880 = vmatprep.subr.mxu0 %v497
        %881 = vmatpush1.msra.mxu0 %v496
        %882 = vmatprep.subr.mxu0 %v493
        %883 = vmatpush1.msra.mxu0 %v492
        %884 = vmatprep.subr.mxu0 %v489
        %885 = vmatpush1.msra.mxu0 %v488
        %886 = vmatprep.subr.mxu0 %v485
        %887 = vmatpush1.msra.mxu0 %v484
        %888 = vmatprep.subr.mxu0 %v481
        %889 = vmatpush1.msra.mxu0 %v480
        %890 = vmatprep.subr.mxu0 0.0
        %891 = vmatpush2.msra.mxu0 0.0
        %892 = vmatprep.subr.mxu0 0.0
        %893 = vmatpush2.msra.mxu0 0.0
        %894 = vmatprep.subr.mxu0 0.0
        %895 = vmatpush2.msra.mxu0 0.0
        %896 = vmatprep.subr.mxu0 0.0
        %897 = vmatpush2.msra.mxu0 0.0
        %898 = vmatprep.subr.mxu0 0.0
        %899 = vmatpush2.msra.mxu0 0.0
        %900 = vmatprep.subr.mxu0 0.0
        %901 = vmatpush2.msra.mxu0 0.0
        %902 = vmatprep.subr.mxu0 0.0
        %903 = vmatpush2.msra.mxu0 0.0
        %904 = vmatprep.subr.mxu0 0.0
        %905 = vmatpush2.msra.mxu0 0.0
        %906 = vmatprep.subr.mxu0 0.0
        %907 = vmatpush2.msra.mxu0 0.0
        %908 = vmatprep.subr.mxu0 0.0
        %909 = vmatpush2.msra.mxu0 0.0
        %910 = vmatprep.subr.mxu0 0.0
        %911 = vmatpush2.msra.mxu0 0.0
        %912 = vmatprep.subr.mxu0 0.0
        %913 = vmatpush2.msra.mxu0 0.0
        %914 = vmatprep.subr.mxu0 0.0
        %915 = vmatpush2.msra.mxu0 0.0
        %916 = vmatprep.subr.mxu0 0.0
        %917 = vmatpush2.msra.mxu0 0.0
        %918 = vmatprep.subr.mxu0 0.0
        %919 = vmatpush2.msra.mxu0 0.0
        %920 = vmatprep.subr.mxu0 0.0
        %921 = vmatpush2.msra.mxu0 0.0
        %922 = vmatprep.mubr.f32.mxu0 0.0
        %923 = vmatmul.mubr.f32.gmra.mxu0 %v856
        %v924 = vpop.f32.mrf.mxu0
        %v925 = vadd.f32 0.0, %v924
        %v926 = vpop.f32.mrf.mxu0
        %v927 = vadd.f32 0.0, %v926
        %928 = vmatprep.mubr.f32.mxu0 0.0
        %929 = vmatmul.mubr.f32.gmra.mxu0 %v857
        %v930 = vpop.f32.mrf.mxu0
        %v931 = vadd.f32 0.0, %v930
        %v932 = vpop.f32.mrf.mxu0
        %v933 = vadd.f32 0.0, %v932
        %934 = vdwg.mxu0
        %935 = vmatprep.subr.mxu0 %v543
        %936 = vmatpush1.msra.mxu0 %v542
        %937 = vmatprep.subr.mxu0 %v539
        %938 = vmatpush1.msra.mxu0 %v538
        %939 = vmatprep.subr.mxu0 %v535
        %940 = vmatpush1.msra.mxu0 %v534
        %941 = vmatprep.subr.mxu0 %v531
        %942 = vmatpush1.msra.mxu0 %v530
        %943 = vmatprep.subr.mxu0 %v527
        %944 = vmatpush1.msra.mxu0 %v526
        %945 = vmatprep.subr.mxu0 %v523
        %946 = vmatpush1.msra.mxu0 %v522
        %947 = vmatprep.subr.mxu0 %v519
        %948 = vmatpush1.msra.mxu0 %v518
        %949 = vmatprep.subr.mxu0 %v515
        %950 = vmatpush1.msra.mxu0 %v514
        %951 = vmatprep.subr.mxu0 %v511
        %952 = vmatpush1.msra.mxu0 %v510
        %953 = vmatprep.subr.mxu0 %v507
        %954 = vmatpush1.msra.mxu0 %v506
        %955 = vmatprep.subr.mxu0 %v503
        %956 = vmatpush1.msra.mxu0 %v502
        %957 = vmatprep.subr.mxu0 %v499
        %958 = vmatpush1.msra.mxu0 %v498
        %959 = vmatprep.subr.mxu0 %v495
        %960 = vmatpush1.msra.mxu0 %v494
        %961 = vmatprep.subr.mxu0 %v491
        %962 = vmatpush1.msra.mxu0 %v490
        %963 = vmatprep.subr.mxu0 %v487
        %964 = vmatpush1.msra.mxu0 %v486
        %965 = vmatprep.subr.mxu0 %v483
        %966 = vmatpush1.msra.mxu0 %v482
        %967 = vmatprep.subr.mxu0 0.0
        %968 = vmatpush2.msra.mxu0 0.0
        %969 = vmatprep.subr.mxu0 0.0
        %970 = vmatpush2.msra.mxu0 0.0
        %971 = vmatprep.subr.mxu0 0.0
        %972 = vmatpush2.msra.mxu0 0.0
        %973 = vmatprep.subr.mxu0 0.0
        %974 = vmatpush2.msra.mxu0 0.0
        %975 = vmatprep.subr.mxu0 0.0
        %976 = vmatpush2.msra.mxu0 0.0
        %977 = vmatprep.subr.mxu0 0.0
        %978 = vmatpush2.msra.mxu0 0.0
        %979 = vmatprep.subr.mxu0 0.0
        %980 = vmatpush2.msra.mxu0 0.0
        %981 = vmatprep.subr.mxu0 0.0
        %982 = vmatpush2.msra.mxu0 0.0
        %983 = vmatprep.subr.mxu0 0.0
        %984 = vmatpush2.msra.mxu0 0.0
        %985 = vmatprep.subr.mxu0 0.0
        %986 = vmatpush2.msra.mxu0 0.0
        %987 = vmatprep.subr.mxu0 0.0
        %988 = vmatpush2.msra.mxu0 0.0
        %989 = vmatprep.subr.mxu0 0.0
        %990 = vmatpush2.msra.mxu0 0.0
        %991 = vmatprep.subr.mxu0 0.0
        %992 = vmatpush2.msra.mxu0 0.0
        %993 = vmatprep.subr.mxu0 0.0
        %994 = vmatpush2.msra.mxu0 0.0
        %995 = vmatprep.subr.mxu0 0.0
        %996 = vmatpush2.msra.mxu0 0.0
        %997 = vmatprep.subr.mxu0 0.0
        %998 = vmatpush2.msra.mxu0 0.0
        %999 = vmatprep.mubr.f32.mxu0 0.0
        %1000 = vmatmul.mubr.f32.gmra.mxu0 %v856
        %v1001 = vpop.f32.mrf.mxu0
        %v1002 = vadd.f32 0.0, %v1001
        %v1003 = vpop.f32.mrf.mxu0
        %v1004 = vadd.f32 0.0, %v1003
        %1005 = vmatprep.mubr.f32.mxu0 0.0
        %1006 = vmatmul.mubr.f32.gmra.mxu0 %v857
        %v1007 = vpop.f32.mrf.mxu0
        %v1008 = vadd.f32 0.0, %v1007
        %v1009 = vpop.f32.mrf.mxu0
        %v1010 = vadd.f32 0.0, %v1009
        %1011 = vdwg.mxu0
        %v1013 = vlaneseq
        %v1014 = vshrl.u32 %v1013, 7
        %v1015 = vsub.s32 0, %v1014
        %v1016 = vrot.slane %v608, %v1015
        %v1017 = vlaneseq
        %v1018 = vshrl.u32 %v1017, 7
        %v1019 = vsub.s32 1, %v1018
        %v1020 = vrot.slane %v608, %v1019
        %v1021 = vlaneseq
        %v1022 = vshrl.u32 %v1021, 7
        %v1023 = vsub.s32 2, %v1022
        %v1024 = vrot.slane %v608, %v1023
        %v1025 = vlaneseq
        %v1026 = vshrl.u32 %v1025, 7
        %v1027 = vsub.s32 3, %v1026
        %v1028 = vrot.slane %v608, %v1027
        %v1033 = vadd.f32 %v925, %v1016
        %v1034 = vadd.f32 %v927, %v1020
        %v1035 = vadd.f32 %v1002, %v1024
        %v1036 = vadd.f32 %v1004, %v1028
        %v1037 = vadd.f32 %v931, %v1016
        %v1038 = vadd.f32 %v933, %v1020
        %v1039 = vadd.f32 %v1008, %v1024
        %v1040 = vadd.f32 %v1010, %v1028
        %v1041 = vld [vmem:[#allocation2] sm:$0x3]
        %s1042 = scalar_lea.vmem [#allocation2], 2
        %v1043 = vld [vmem:[%s1042] sm:$0x3]
        %v1044 = vld [vmem:[#allocation3] sm:$0x3]
        %s1045 = scalar_lea.vmem [#allocation3], 2
        %v1046 = vld [vmem:[%s1045] sm:$0x3]
        %1047 = vmatprep.subr.mxu0 %v605
        %1048 = vmatpush1.msra.mxu0 %v604
        %1049 = vmatprep.subr.mxu0 %v601
        %1050 = vmatpush1.msra.mxu0 %v600
        %1051 = vmatprep.subr.mxu0 %v597
        %1052 = vmatpush1.msra.mxu0 %v596
        %1053 = vmatprep.subr.mxu0 %v593
        %1054 = vmatpush1.msra.mxu0 %v592
        %1055 = vmatprep.subr.mxu0 %v589
        %1056 = vmatpush1.msra.mxu0 %v588
        %1057 = vmatprep.subr.mxu0 %v585
        %1058 = vmatpush1.msra.mxu0 %v584
        %1059 = vmatprep.subr.mxu0 %v581
        %1060 = vmatpush1.msra.mxu0 %v580
        %1061 = vmatprep.subr.mxu0 %v577
        %1062 = vmatpush1.msra.mxu0 %v576
        %1063 = vmatprep.subr.mxu0 %v573
        %1064 = vmatpush1.msra.mxu0 %v572
        %1065 = vmatprep.subr.mxu0 %v569
        %1066 = vmatpush1.msra.mxu0 %v568
        %1067 = vmatprep.subr.mxu0 %v565
        %1068 = vmatpush1.msra.mxu0 %v564
        %1069 = vmatprep.subr.mxu0 %v561
        %1070 = vmatpush1.msra.mxu0 %v560
        %1071 = vmatprep.subr.mxu0 %v557
        %1072 = vmatpush1.msra.mxu0 %v556
        %1073 = vmatprep.subr.mxu0 %v553
        %1074 = vmatpush1.msra.mxu0 %v552
        %1075 = vmatprep.subr.mxu0 %v549
        %1076 = vmatpush1.msra.mxu0 %v548
        %1077 = vmatprep.subr.mxu0 %v545
        %1078 = vmatpush1.msra.mxu0 %v544
        %1079 = vmatprep.subr.mxu0 0.0
        %1080 = vmatpush2.msra.mxu0 0.0
        %1081 = vmatprep.subr.mxu0 0.0
        %1082 = vmatpush2.msra.mxu0 0.0
        %1083 = vmatprep.subr.mxu0 0.0
        %1084 = vmatpush2.msra.mxu0 0.0
        %1085 = vmatprep.subr.mxu0 0.0
        %1086 = vmatpush2.msra.mxu0 0.0
        %1087 = vmatprep.subr.mxu0 0.0
        %1088 = vmatpush2.msra.mxu0 0.0
        %1089 = vmatprep.subr.mxu0 0.0
        %1090 = vmatpush2.msra.mxu0 0.0
        %1091 = vmatprep.subr.mxu0 0.0
        %1092 = vmatpush2.msra.mxu0 0.0
        %1093 = vmatprep.subr.mxu0 0.0
        %1094 = vmatpush2.msra.mxu0 0.0
        %1095 = vmatprep.subr.mxu0 0.0
        %1096 = vmatpush2.msra.mxu0 0.0
        %1097 = vmatprep.subr.mxu0 0.0
        %1098 = vmatpush2.msra.mxu0 0.0
        %1099 = vmatprep.subr.mxu0 0.0
        %1100 = vmatpush2.msra.mxu0 0.0
        %1101 = vmatprep.subr.mxu0 0.0
        %1102 = vmatpush2.msra.mxu0 0.0
        %1103 = vmatprep.subr.mxu0 0.0
        %1104 = vmatpush2.msra.mxu0 0.0
        %1105 = vmatprep.subr.mxu0 0.0
        %1106 = vmatpush2.msra.mxu0 0.0
        %1107 = vmatprep.subr.mxu0 0.0
        %1108 = vmatpush2.msra.mxu0 0.0
        %1109 = vmatprep.subr.mxu0 0.0
        %1110 = vmatpush2.msra.mxu0 0.0
        %1111 = vmatprep.mubr.f32.mxu0 0.0
        %1112 = vmatmul.mubr.f32.gmra.mxu0 %v1041
        %v1113 = vpop.f32.mrf.mxu0
        %v1114 = vadd.f32 0.0, %v1113
        %v1115 = vpop.f32.mrf.mxu0
        %v1116 = vadd.f32 0.0, %v1115
        %1117 = vdwg.mxu0
        %1118 = vmatprep.subr.mxu0 %v607
        %1119 = vmatpush1.msra.mxu0 %v606
        %1120 = vmatprep.subr.mxu0 %v603
        %1121 = vmatpush1.msra.mxu0 %v602
        %1122 = vmatprep.subr.mxu0 %v599
        %1123 = vmatpush1.msra.mxu0 %v598
        %1124 = vmatprep.subr.mxu0 %v595
        %1125 = vmatpush1.msra.mxu0 %v594
        %1126 = vmatprep.subr.mxu0 %v591
        %1127 = vmatpush1.msra.mxu0 %v590
        %1128 = vmatprep.subr.mxu0 %v587
        %1129 = vmatpush1.msra.mxu0 %v586
        %1130 = vmatprep.subr.mxu0 %v583
        %1131 = vmatpush1.msra.mxu0 %v582
        %1132 = vmatprep.subr.mxu0 %v579
        %1133 = vmatpush1.msra.mxu0 %v578
        %1134 = vmatprep.subr.mxu0 %v575
        %1135 = vmatpush1.msra.mxu0 %v574
        %1136 = vmatprep.subr.mxu0 %v571
        %1137 = vmatpush1.msra.mxu0 %v570
        %1138 = vmatprep.subr.mxu0 %v567
        %1139 = vmatpush1.msra.mxu0 %v566
        %1140 = vmatprep.subr.mxu0 %v563
        %1141 = vmatpush1.msra.mxu0 %v562
        %1142 = vmatprep.subr.mxu0 %v559
        %1143 = vmatpush1.msra.mxu0 %v558
        %1144 = vmatprep.subr.mxu0 %v555
        %1145 = vmatpush1.msra.mxu0 %v554
        %1146 = vmatprep.subr.mxu0 %v551
        %1147 = vmatpush1.msra.mxu0 %v550
        %1148 = vmatprep.subr.mxu0 %v547
        %1149 = vmatpush1.msra.mxu0 %v546
        %1150 = vmatprep.subr.mxu0 0.0
        %1151 = vmatpush2.msra.mxu0 0.0
        %1152 = vmatprep.subr.mxu0 0.0
        %1153 = vmatpush2.msra.mxu0 0.0
        %1154 = vmatprep.subr.mxu0 0.0
        %1155 = vmatpush2.msra.mxu0 0.0
        %1156 = vmatprep.subr.mxu0 0.0
        %1157 = vmatpush2.msra.mxu0 0.0
        %1158 = vmatprep.subr.mxu0 0.0
        %1159 = vmatpush2.msra.mxu0 0.0
        %1160 = vmatprep.subr.mxu0 0.0
        %1161 = vmatpush2.msra.mxu0 0.0
        %1162 = vmatprep.subr.mxu0 0.0
        %1163 = vmatpush2.msra.mxu0 0.0
        %1164 = vmatprep.subr.mxu0 0.0
        %1165 = vmatpush2.msra.mxu0 0.0
        %1166 = vmatprep.subr.mxu0 0.0
        %1167 = vmatpush2.msra.mxu0 0.0
        %1168 = vmatprep.subr.mxu0 0.0
        %1169 = vmatpush2.msra.mxu0 0.0
        %1170 = vmatprep.subr.mxu0 0.0
        %1171 = vmatpush2.msra.mxu0 0.0
        %1172 = vmatprep.subr.mxu0 0.0
        %1173 = vmatpush2.msra.mxu0 0.0
        %1174 = vmatprep.subr.mxu0 0.0
        %1175 = vmatpush2.msra.mxu0 0.0
        %1176 = vmatprep.subr.mxu0 0.0
        %1177 = vmatpush2.msra.mxu0 0.0
        %1178 = vmatprep.subr.mxu0 0.0
        %1179 = vmatpush2.msra.mxu0 0.0
        %1180 = vmatprep.subr.mxu0 0.0
        %1181 = vmatpush2.msra.mxu0 0.0
        %1182 = vmatprep.mubr.f32.mxu0 0.0
        %1183 = vmatmul.mubr.f32.gmra.mxu0 %v1041
        %v1184 = vpop.f32.mrf.mxu0
        %v1185 = vadd.f32 0.0, %v1184
        %v1186 = vpop.f32.mrf.mxu0
        %v1187 = vadd.f32 0.0, %v1186
        %1188 = vdwg.mxu0
        %v1193 = vrot.slane %v1114, 1
        %v1194 = vrot.slane %v1116, 1
        %v1195 = vrot.slane %v1185, 1
        %v1196 = vrot.slane %v1187, 1
        %v1205 = vadd.f32 %v1033, %v1114
        %v1206 = vadd.f32 %v1034, %v1116
        %v1207 = vadd.f32 %v1035, %v1185
        %v1208 = vadd.f32 %v1036, %v1187
        %v1209 = vadd.f32 %v1037, %v1193
        %v1210 = vadd.f32 %v1038, %v1194
        %v1211 = vadd.f32 %v1039, %v1195
        %v1212 = vadd.f32 %v1040, %v1196
        %v1213 = vxor.u32 %v1205, 2147483648
        %v1214 = vxor.u32 %v1206, 2147483648
        %v1215 = vxor.u32 %v1209, 2147483648
        %v1216 = vxor.u32 %v1210, 2147483648
        %v1217 = vmul.f32 %v1213, 1.442695
        %v1218 = vpow.pop %v1217
        %v1219 = vmul.f32 %v1214, 1.442695
        %v1220 = vpow.pop %v1219
        %v1221 = vmul.f32 %v1215, 1.442695
        %v1222 = vpow.pop %v1221
        %v1223 = vmul.f32 %v1216, 1.442695
        %v1224 = vpow.pop %v1223
        %v1225 = vadd.f32 %v1218, 1.0
        %v1226 = vadd.f32 %v1220, 1.0
        %v1227 = vadd.f32 %v1222, 1.0
        %v1228 = vadd.f32 %v1224, 1.0
        %v1229 = vrcp.pop %v1225
        %v1230 = vmul.f32 1.0, %v1229
        %v1231 = vrcp.pop %v1226
        %v1232 = vmul.f32 1.0, %v1231
        %v1233 = vrcp.pop %v1227
        %v1234 = vmul.f32 1.0, %v1233
        %v1235 = vrcp.pop %v1228
        %v1236 = vmul.f32 1.0, %v1235
        %v1237 = vtanh.pop %v1207
        %v1238 = vtanh.pop %v1211
        %v1239 = vxor.u32 %v1208, 2147483648
        %v1240 = vxor.u32 %v1212, 2147483648
        %v1241 = vmul.f32 %v1239, 1.442695
        %v1242 = vpow.pop %v1241
        %v1243 = vmul.f32 %v1240, 1.442695
        %v1244 = vpow.pop %v1243
        %v1245 = vadd.f32 %v1242, 1.0
        %v1246 = vadd.f32 %v1244, 1.0
        %v1247 = vrcp.pop %v1245
        %v1248 = vmul.f32 1.0, %v1247
        %v1249 = vrcp.pop %v1246
        %v1250 = vmul.f32 1.0, %v1249
        %v1252 = vrot.slane %v1044, 1
        %v1255 = vmul.f32 %v1232, %v1044
        %v1256 = vmul.f32 %v1236, %v1252
        %v1257 = vmul.f32 %v1230, %v1237
        %v1258 = vmul.f32 %v1234, %v1238
        %v1259 = vadd.f32 %v1255, %v1257
        %v1260 = vadd.f32 %v1256, %v1258
        %v1261 = vtanh.pop %v1259
        %v1262 = vtanh.pop %v1260
        %v1263 = vmul.f32 %v1248, %v1261
        %v1264 = vmul.f32 %v1250, %v1262
        %v1267 = vrot.slane %v1264, 7
        %vm1268 = vcmask 1041409
        %v1269 = vsel %vm1268, %v1267, %v1263
        %1271 = vmatprep.subr.mxu0 %v670
        %1272 = vmatpush1.msra.mxu0 %v669
        %1273 = vmatprep.subr.mxu0 %v666
        %1274 = vmatpush1.msra.mxu0 %v665
        %1275 = vmatprep.subr.mxu0 %v662
        %1276 = vmatpush1.msra.mxu0 %v661
        %1277 = vmatprep.subr.mxu0 %v658
        %1278 = vmatpush1.msra.mxu0 %v657
        %1279 = vmatprep.subr.mxu0 %v654
        %1280 = vmatpush1.msra.mxu0 %v653
        %1281 = vmatprep.subr.mxu0 %v650
        %1282 = vmatpush1.msra.mxu0 %v649
        %1283 = vmatprep.subr.mxu0 %v646
        %1284 = vmatpush1.msra.mxu0 %v645
        %1285 = vmatprep.subr.mxu0 %v642
        %1286 = vmatpush1.msra.mxu0 %v641
        %1287 = vmatprep.subr.mxu0 %v638
        %1288 = vmatpush1.msra.mxu0 %v637
        %1289 = vmatprep.subr.mxu0 %v634
        %1290 = vmatpush1.msra.mxu0 %v633
        %1291 = vmatprep.subr.mxu0 %v630
        %1292 = vmatpush1.msra.mxu0 %v629
        %1293 = vmatprep.subr.mxu0 %v626
        %1294 = vmatpush1.msra.mxu0 %v625
        %1295 = vmatprep.subr.mxu0 %v622
        %1296 = vmatpush1.msra.mxu0 %v621
        %1297 = vmatprep.subr.mxu0 %v618
        %1298 = vmatpush1.msra.mxu0 %v617
        %1299 = vmatprep.subr.mxu0 %v614
        %1300 = vmatpush1.msra.mxu0 %v613
        %1301 = vmatprep.subr.mxu0 %v610
        %1302 = vmatpush1.msra.mxu0 %v609
        %1303 = vmatprep.subr.mxu0 %v734
        %1304 = vmatpush2.msra.mxu0 %v733
        %1305 = vmatprep.subr.mxu0 %v730
        %1306 = vmatpush2.msra.mxu0 %v729
        %1307 = vmatprep.subr.mxu0 %v726
        %1308 = vmatpush2.msra.mxu0 %v725
        %1309 = vmatprep.subr.mxu0 %v722
        %1310 = vmatpush2.msra.mxu0 %v721
        %1311 = vmatprep.subr.mxu0 %v718
        %1312 = vmatpush2.msra.mxu0 %v717
        %1313 = vmatprep.subr.mxu0 %v714
        %1314 = vmatpush2.msra.mxu0 %v713
        %1315 = vmatprep.subr.mxu0 %v710
        %1316 = vmatpush2.msra.mxu0 %v709
        %1317 = vmatprep.subr.mxu0 %v706
        %1318 = vmatpush2.msra.mxu0 %v705
        %1319 = vmatprep.subr.mxu0 %v702
        %1320 = vmatpush2.msra.mxu0 %v701
        %1321 = vmatprep.subr.mxu0 %v698
        %1322 = vmatpush2.msra.mxu0 %v697
        %1323 = vmatprep.subr.mxu0 %v694
        %1324 = vmatpush2.msra.mxu0 %v693
        %1325 = vmatprep.subr.mxu0 %v690
        %1326 = vmatpush2.msra.mxu0 %v689
        %1327 = vmatprep.subr.mxu0 %v686
        %1328 = vmatpush2.msra.mxu0 %v685
        %1329 = vmatprep.subr.mxu0 %v682
        %1330 = vmatpush2.msra.mxu0 %v681
        %1331 = vmatprep.subr.mxu0 %v678
        %1332 = vmatpush2.msra.mxu0 %v677
        %1333 = vmatprep.subr.mxu0 %v674
        %1334 = vmatpush2.msra.mxu0 %v673
        %1335 = vmatprep.mubr.f32.mxu0 %v1043
        %1336 = vmatmul.mubr.f32.gmra.mxu0 %v1269
        %v1337 = vpop.f32.mrf.mxu0
        %v1338 = vadd.f32 %v742, %v1337
        %v1339 = vpop.f32.mrf.mxu0
        %v1340 = vadd.f32 %v746, %v1339
        %1341 = vdwg.mxu0
        %1342 = vmatprep.subr.mxu0 %v672
        %1343 = vmatpush1.msra.mxu0 %v671
        %1344 = vmatprep.subr.mxu0 %v668
        %1345 = vmatpush1.msra.mxu0 %v667
        %1346 = vmatprep.subr.mxu0 %v664
        %1347 = vmatpush1.msra.mxu0 %v663
        %1348 = vmatprep.subr.mxu0 %v660
        %1349 = vmatpush1.msra.mxu0 %v659
        %1350 = vmatprep.subr.mxu0 %v656
        %1351 = vmatpush1.msra.mxu0 %v655
        %1352 = vmatprep.subr.mxu0 %v652
        %1353 = vmatpush1.msra.mxu0 %v651
        %1354 = vmatprep.subr.mxu0 %v648
        %1355 = vmatpush1.msra.mxu0 %v647
        %1356 = vmatprep.subr.mxu0 %v644
        %1357 = vmatpush1.msra.mxu0 %v643
        %1358 = vmatprep.subr.mxu0 %v640
        %1359 = vmatpush1.msra.mxu0 %v639
        %1360 = vmatprep.subr.mxu0 %v636
        %1361 = vmatpush1.msra.mxu0 %v635
        %1362 = vmatprep.subr.mxu0 %v632
        %1363 = vmatpush1.msra.mxu0 %v631
        %1364 = vmatprep.subr.mxu0 %v628
        %1365 = vmatpush1.msra.mxu0 %v627
        %1366 = vmatprep.subr.mxu0 %v624
        %1367 = vmatpush1.msra.mxu0 %v623
        %1368 = vmatprep.subr.mxu0 %v620
        %1369 = vmatpush1.msra.mxu0 %v619
        %1370 = vmatprep.subr.mxu0 %v616
        %1371 = vmatpush1.msra.mxu0 %v615
        %1372 = vmatprep.subr.mxu0 %v612
        %1373 = vmatpush1.msra.mxu0 %v611
        %1374 = vmatprep.subr.mxu0 %v736
        %1375 = vmatpush2.msra.mxu0 %v735
        %1376 = vmatprep.subr.mxu0 %v732
        %1377 = vmatpush2.msra.mxu0 %v731
        %1378 = vmatprep.subr.mxu0 %v728
        %1379 = vmatpush2.msra.mxu0 %v727
        %1380 = vmatprep.subr.mxu0 %v724
        %1381 = vmatpush2.msra.mxu0 %v723
        %1382 = vmatprep.subr.mxu0 %v720
        %1383 = vmatpush2.msra.mxu0 %v719
        %1384 = vmatprep.subr.mxu0 %v716
        %1385 = vmatpush2.msra.mxu0 %v715
        %1386 = vmatprep.subr.mxu0 %v712
        %1387 = vmatpush2.msra.mxu0 %v711
        %1388 = vmatprep.subr.mxu0 %v708
        %1389 = vmatpush2.msra.mxu0 %v707
        %1390 = vmatprep.subr.mxu0 %v704
        %1391 = vmatpush2.msra.mxu0 %v703
        %1392 = vmatprep.subr.mxu0 %v700
        %1393 = vmatpush2.msra.mxu0 %v699
        %1394 = vmatprep.subr.mxu0 %v696
        %1395 = vmatpush2.msra.mxu0 %v695
        %1396 = vmatprep.subr.mxu0 %v692
        %1397 = vmatpush2.msra.mxu0 %v691
        %1398 = vmatprep.subr.mxu0 %v688
        %1399 = vmatpush2.msra.mxu0 %v687
        %1400 = vmatprep.subr.mxu0 %v684
        %1401 = vmatpush2.msra.mxu0 %v683
        %1402 = vmatprep.subr.mxu0 %v680
        %1403 = vmatpush2.msra.mxu0 %v679
        %1404 = vmatprep.subr.mxu0 %v676
        %1405 = vmatpush2.msra.mxu0 %v675
        %1406 = vmatprep.mubr.f32.mxu0 %v1043
        %1407 = vmatmul.mubr.f32.gmra.mxu0 %v1269
        %v1408 = vpop.f32.mrf.mxu0
        %v1409 = vadd.f32 %v750, %v1408
        %v1410 = vpop.f32.mrf.mxu0
        %v1411 = vadd.f32 %v754, %v1410
        %1412 = vdwg.mxu0
        %v1413 = vxor.u32 %v1338, 2147483648
        %v1414 = vxor.u32 %v1340, 2147483648
        %v1415 = vmul.f32 %v1413, 1.442695
        %v1416 = vpow.pop %v1415
        %v1417 = vmul.f32 %v1414, 1.442695
        %v1418 = vpow.pop %v1417
        %v1419 = vadd.f32 %v1416, 1.0
        %v1420 = vadd.f32 %v1418, 1.0
        %v1421 = vrcp.pop %v1419
        %v1422 = vmul.f32 1.0, %v1421
        %v1423 = vrcp.pop %v1420
        %v1424 = vmul.f32 1.0, %v1423
        %v1425 = vtanh.pop %v1409
        %v1426 = vxor.u32 %v1411, 2147483648
        %v1427 = vmul.f32 %v1426, 1.442695
        %v1428 = vpow.pop %v1427
        %v1429 = vadd.f32 %v1428, 1.0
        %v1430 = vrcp.pop %v1429
        %v1431 = vmul.f32 1.0, %v1430
        %v1432 = vmul.f32 %v1424, %v1046
        %v1433 = vmul.f32 %v1422, %v1425
        %v1434 = vadd.f32 %v1432, %v1433
        %v1435 = vtanh.pop %v1434
        %v1436 = vmul.f32 %v1431, %v1435
        %1437 = vmatprep.subr.mxu0 %v605
        %1438 = vmatpush1.msra.mxu0 %v604
        %1439 = vmatprep.subr.mxu0 %v601
        %1440 = vmatpush1.msra.mxu0 %v600
        %1441 = vmatprep.subr.mxu0 %v597
        %1442 = vmatpush1.msra.mxu0 %v596
        %1443 = vmatprep.subr.mxu0 %v593
        %1444 = vmatpush1.msra.mxu0 %v592
        %1445 = vmatprep.subr.mxu0 %v589
        %1446 = vmatpush1.msra.mxu0 %v588
        %1447 = vmatprep.subr.mxu0 %v585
        %1448 = vmatpush1.msra.mxu0 %v584
        %1449 = vmatprep.subr.mxu0 %v581
        %1450 = vmatpush1.msra.mxu0 %v580
        %1451 = vmatprep.subr.mxu0 %v577
        %1452 = vmatpush1.msra.mxu0 %v576
        %1453 = vmatprep.subr.mxu0 %v573
        %1454 = vmatpush1.msra.mxu0 %v572
        %1455 = vmatprep.subr.mxu0 %v569
        %1456 = vmatpush1.msra.mxu0 %v568
        %1457 = vmatprep.subr.mxu0 %v565
        %1458 = vmatpush1.msra.mxu0 %v564
        %1459 = vmatprep.subr.mxu0 %v561
        %1460 = vmatpush1.msra.mxu0 %v560
        %1461 = vmatprep.subr.mxu0 %v557
        %1462 = vmatpush1.msra.mxu0 %v556
        %1463 = vmatprep.subr.mxu0 %v553
        %1464 = vmatpush1.msra.mxu0 %v552
        %1465 = vmatprep.subr.mxu0 %v549
        %1466 = vmatpush1.msra.mxu0 %v548
        %1467 = vmatprep.subr.mxu0 %v545
        %1468 = vmatpush1.msra.mxu0 %v544
        %1469 = vmatprep.subr.mxu0 0.0
        %1470 = vmatpush2.msra.mxu0 0.0
        %1471 = vmatprep.subr.mxu0 0.0
        %1472 = vmatpush2.msra.mxu0 0.0
        %1473 = vmatprep.subr.mxu0 0.0
        %1474 = vmatpush2.msra.mxu0 0.0
        %1475 = vmatprep.subr.mxu0 0.0
        %1476 = vmatpush2.msra.mxu0 0.0
        %1477 = vmatprep.subr.mxu0 0.0
        %1478 = vmatpush2.msra.mxu0 0.0
        %1479 = vmatprep.subr.mxu0 0.0
        %1480 = vmatpush2.msra.mxu0 0.0
        %1481 = vmatprep.subr.mxu0 0.0
        %1482 = vmatpush2.msra.mxu0 0.0
        %1483 = vmatprep.subr.mxu0 0.0
        %1484 = vmatpush2.msra.mxu0 0.0
        %1485 = vmatprep.subr.mxu0 0.0
        %1486 = vmatpush2.msra.mxu0 0.0
        %1487 = vmatprep.subr.mxu0 0.0
        %1488 = vmatpush2.msra.mxu0 0.0
        %1489 = vmatprep.subr.mxu0 0.0
        %1490 = vmatpush2.msra.mxu0 0.0
        %1491 = vmatprep.subr.mxu0 0.0
        %1492 = vmatpush2.msra.mxu0 0.0
        %1493 = vmatprep.subr.mxu0 0.0
        %1494 = vmatpush2.msra.mxu0 0.0
        %1495 = vmatprep.subr.mxu0 0.0
        %1496 = vmatpush2.msra.mxu0 0.0
        %1497 = vmatprep.subr.mxu0 0.0
        %1498 = vmatpush2.msra.mxu0 0.0
        %1499 = vmatprep.subr.mxu0 0.0
        %1500 = vmatpush2.msra.mxu0 0.0
        %1501 = vmatprep.mubr.f32.mxu0 0.0
        %1502 = vmatmul.mubr.f32.gmra.mxu0 %v1269
        %v1503 = vpop.f32.mrf.mxu0
        %v1504 = vadd.f32 0.0, %v1503
        %v1505 = vpop.f32.mrf.mxu0
        %v1506 = vadd.f32 0.0, %v1505
        %1507 = vdwg.mxu0
        %1508 = vmatprep.subr.mxu0 %v607
        %1509 = vmatpush1.msra.mxu0 %v606
        %1510 = vmatprep.subr.mxu0 %v603
        %1511 = vmatpush1.msra.mxu0 %v602
        %1512 = vmatprep.subr.mxu0 %v599
        %1513 = vmatpush1.msra.mxu0 %v598
        %1514 = vmatprep.subr.mxu0 %v595
        %1515 = vmatpush1.msra.mxu0 %v594
        %1516 = vmatprep.subr.mxu0 %v591
        %1517 = vmatpush1.msra.mxu0 %v590
        %1518 = vmatprep.subr.mxu0 %v587
        %1519 = vmatpush1.msra.mxu0 %v586
        %1520 = vmatprep.subr.mxu0 %v583
        %1521 = vmatpush1.msra.mxu0 %v582
        %1522 = vmatprep.subr.mxu0 %v579
        %1523 = vmatpush1.msra.mxu0 %v578
        %1524 = vmatprep.subr.mxu0 %v575
        %1525 = vmatpush1.msra.mxu0 %v574
        %1526 = vmatprep.subr.mxu0 %v571
        %1527 = vmatpush1.msra.mxu0 %v570
        %1528 = vmatprep.subr.mxu0 %v567
        %1529 = vmatpush1.msra.mxu0 %v566
        %1530 = vmatprep.subr.mxu0 %v563
        %1531 = vmatpush1.msra.mxu0 %v562
        %1532 = vmatprep.subr.mxu0 %v559
        %1533 = vmatpush1.msra.mxu0 %v558
        %1534 = vmatprep.subr.mxu0 %v555
        %1535 = vmatpush1.msra.mxu0 %v554
        %1536 = vmatprep.subr.mxu0 %v551
        %1537 = vmatpush1.msra.mxu0 %v550
        %1538 = vmatprep.subr.mxu0 %v547
        %1539 = vmatpush1.msra.mxu0 %v546
        %1540 = vmatprep.subr.mxu0 0.0
        %1541 = vmatpush2.msra.mxu0 0.0
        %1542 = vmatprep.subr.mxu0 0.0
        %1543 = vmatpush2.msra.mxu0 0.0
        %1544 = vmatprep.subr.mxu0 0.0
        %1545 = vmatpush2.msra.mxu0 0.0
        %1546 = vmatprep.subr.mxu0 0.0
        %1547 = vmatpush2.msra.mxu0 0.0
        %1548 = vmatprep.subr.mxu0 0.0
        %1549 = vmatpush2.msra.mxu0 0.0
        %1550 = vmatprep.subr.mxu0 0.0
        %1551 = vmatpush2.msra.mxu0 0.0
        %1552 = vmatprep.subr.mxu0 0.0
        %1553 = vmatpush2.msra.mxu0 0.0
        %1554 = vmatprep.subr.mxu0 0.0
        %1555 = vmatpush2.msra.mxu0 0.0
        %1556 = vmatprep.subr.mxu0 0.0
        %1557 = vmatpush2.msra.mxu0 0.0
        %1558 = vmatprep.subr.mxu0 0.0
        %1559 = vmatpush2.msra.mxu0 0.0
        %1560 = vmatprep.subr.mxu0 0.0
        %1561 = vmatpush2.msra.mxu0 0.0
        %1562 = vmatprep.subr.mxu0 0.0
        %1563 = vmatpush2.msra.mxu0 0.0
        %1564 = vmatprep.subr.mxu0 0.0
        %1565 = vmatpush2.msra.mxu0 0.0
        %1566 = vmatprep.subr.mxu0 0.0
        %1567 = vmatpush2.msra.mxu0 0.0
        %1568 = vmatprep.subr.mxu0 0.0
        %1569 = vmatpush2.msra.mxu0 0.0
        %1570 = vmatprep.subr.mxu0 0.0
        %1571 = vmatpush2.msra.mxu0 0.0
        %1572 = vmatprep.mubr.f32.mxu0 0.0
        %1573 = vmatmul.mubr.f32.gmra.mxu0 %v1269
        %v1574 = vpop.f32.mrf.mxu0
        %v1575 = vadd.f32 0.0, %v1574
        %v1576 = vpop.f32.mrf.mxu0
        %v1577 = vadd.f32 0.0, %v1576
        %1578 = vdwg.mxu0
        %v1583 = vrot.slane %v1504, 7
        %v1584 = vrot.slane %v1506, 7
        %v1585 = vrot.slane %v1575, 7
        %v1586 = vrot.slane %v1577, 7
        %v1595 = vadd.f32 %v1033, %v1583
        %v1596 = vadd.f32 %v1034, %v1584
        %v1597 = vadd.f32 %v1035, %v1585
        %v1598 = vadd.f32 %v1036, %v1586
        %v1599 = vadd.f32 %v1037, %v1504
        %v1600 = vadd.f32 %v1038, %v1506
        %v1601 = vadd.f32 %v1039, %v1575
        %v1602 = vadd.f32 %v1040, %v1577
        %v1603 = vxor.u32 %v1595, 2147483648
        %v1604 = vxor.u32 %v1596, 2147483648
        %v1605 = vxor.u32 %v1599, 2147483648
        %v1606 = vxor.u32 %v1600, 2147483648
        %v1607 = vmul.f32 %v1603, 1.442695
        %v1608 = vpow.pop %v1607
        %v1609 = vmul.f32 %v1604, 1.442695
        %v1610 = vpow.pop %v1609
        %v1611 = vmul.f32 %v1605, 1.442695
        %v1612 = vpow.pop %v1611
        %v1613 = vmul.f32 %v1606, 1.442695
        %v1614 = vpow.pop %v1613
        %v1615 = vadd.f32 %v1608, 1.0
        %v1616 = vadd.f32 %v1610, 1.0
        %v1617 = vadd.f32 %v1612, 1.0
        %v1618 = vadd.f32 %v1614, 1.0
        %v1619 = vrcp.pop %v1615
        %v1620 = vmul.f32 1.0, %v1619
        %v1621 = vrcp.pop %v1616
        %v1622 = vmul.f32 1.0, %v1621
        %v1623 = vrcp.pop %v1617
        %v1624 = vmul.f32 1.0, %v1623
        %v1625 = vrcp.pop %v1618
        %v1626 = vmul.f32 1.0, %v1625
        %v1627 = vtanh.pop %v1597
        %v1628 = vtanh.pop %v1601
        %v1629 = vxor.u32 %v1598, 2147483648
        %v1630 = vxor.u32 %v1602, 2147483648
        %v1631 = vmul.f32 %v1629, 1.442695
        %v1632 = vpow.pop %v1631
        %v1633 = vmul.f32 %v1630, 1.442695
        %v1634 = vpow.pop %v1633
        %v1635 = vadd.f32 %v1632, 1.0
        %v1636 = vadd.f32 %v1634, 1.0
        %v1637 = vrcp.pop %v1635
        %v1638 = vmul.f32 1.0, %v1637
        %v1639 = vrcp.pop %v1636
        %v1640 = vmul.f32 1.0, %v1639
        %v1643 = vrot.slane %v1259, 7
        %v1644 = vrot.slane %v1260, 7
        %v1647 = vmul.f32 %v1622, %v1643
        %v1648 = vmul.f32 %v1626, %v1644
        %v1649 = vmul.f32 %v1620, %v1627
        %v1650 = vmul.f32 %v1624, %v1628
        %v1651 = vadd.f32 %v1647, %v1649
        %v1652 = vadd.f32 %v1648, %v1650
        %v1653 = vtanh.pop %v1651
        %v1654 = vtanh.pop %v1652
        %v1655 = vmul.f32 %v1638, %v1653
        %v1656 = vmul.f32 %v1640, %v1654
        %v1659 = vrot.slane %v1656, 7
        %vm1660 = vcmask 1042434
        %v1661 = vsel %vm1660, %v1659, %v1655
        %v1663 = vrot.slane %v1436, 7
        %v1664 = vrot.slane %v1661, 1
        %v1665 = vrot.slane %v1663, 1
        %1668 = vmatprep.subr.mxu0 %v670
        %1669 = vmatpush1.msra.mxu0 %v669
        %1670 = vmatprep.subr.mxu0 %v666
        %1671 = vmatpush1.msra.mxu0 %v665
        %1672 = vmatprep.subr.mxu0 %v662
        %1673 = vmatpush1.msra.mxu0 %v661
        %1674 = vmatprep.subr.mxu0 %v658
        %1675 = vmatpush1.msra.mxu0 %v657
        %1676 = vmatprep.subr.mxu0 %v654
        %1677 = vmatpush1.msra.mxu0 %v653
        %1678 = vmatprep.subr.mxu0 %v650
        %1679 = vmatpush1.msra.mxu0 %v649
        %1680 = vmatprep.subr.mxu0 %v646
        %1681 = vmatpush1.msra.mxu0 %v645
        %1682 = vmatprep.subr.mxu0 %v642
        %1683 = vmatpush1.msra.mxu0 %v641
        %1684 = vmatprep.subr.mxu0 %v638
        %1685 = vmatpush1.msra.mxu0 %v637
        %1686 = vmatprep.subr.mxu0 %v634
        %1687 = vmatpush1.msra.mxu0 %v633
        %1688 = vmatprep.subr.mxu0 %v630
        %1689 = vmatpush1.msra.mxu0 %v629
        %1690 = vmatprep.subr.mxu0 %v626
        %1691 = vmatpush1.msra.mxu0 %v625
        %1692 = vmatprep.subr.mxu0 %v622
        %1693 = vmatpush1.msra.mxu0 %v621
        %1694 = vmatprep.subr.mxu0 %v618
        %1695 = vmatpush1.msra.mxu0 %v617
        %1696 = vmatprep.subr.mxu0 %v614
        %1697 = vmatpush1.msra.mxu0 %v613
        %1698 = vmatprep.subr.mxu0 %v610
        %1699 = vmatpush1.msra.mxu0 %v609
        %1700 = vmatprep.subr.mxu0 %v734
        %1701 = vmatpush2.msra.mxu0 %v733
        %1702 = vmatprep.subr.mxu0 %v730
        %1703 = vmatpush2.msra.mxu0 %v729
        %1704 = vmatprep.subr.mxu0 %v726
        %1705 = vmatpush2.msra.mxu0 %v725
        %1706 = vmatprep.subr.mxu0 %v722
        %1707 = vmatpush2.msra.mxu0 %v721
        %1708 = vmatprep.subr.mxu0 %v718
        %1709 = vmatpush2.msra.mxu0 %v717
        %1710 = vmatprep.subr.mxu0 %v714
        %1711 = vmatpush2.msra.mxu0 %v713
        %1712 = vmatprep.subr.mxu0 %v710
        %1713 = vmatpush2.msra.mxu0 %v709
        %1714 = vmatprep.subr.mxu0 %v706
        %1715 = vmatpush2.msra.mxu0 %v705
        %1716 = vmatprep.subr.mxu0 %v702
        %1717 = vmatpush2.msra.mxu0 %v701
        %1718 = vmatprep.subr.mxu0 %v698
        %1719 = vmatpush2.msra.mxu0 %v697
        %1720 = vmatprep.subr.mxu0 %v694
        %1721 = vmatpush2.msra.mxu0 %v693
        %1722 = vmatprep.subr.mxu0 %v690
        %1723 = vmatpush2.msra.mxu0 %v689
        %1724 = vmatprep.subr.mxu0 %v686
        %1725 = vmatpush2.msra.mxu0 %v685
        %1726 = vmatprep.subr.mxu0 %v682
        %1727 = vmatpush2.msra.mxu0 %v681
        %1728 = vmatprep.subr.mxu0 %v678
        %1729 = vmatpush2.msra.mxu0 %v677
        %1730 = vmatprep.subr.mxu0 %v674
        %1731 = vmatpush2.msra.mxu0 %v673
        %1732 = vmatprep.mubr.f32.mxu0 %v1665
        %1733 = vmatmul.mubr.f32.gmra.mxu0 %v1664
        %v1734 = vpop.f32.mrf.mxu0
        %v1735 = vadd.f32 %v742, %v1734
        %v1736 = vpop.f32.mrf.mxu0
        %v1737 = vadd.f32 %v746, %v1736
        %1738 = vdwg.mxu0
        %1739 = vmatprep.subr.mxu0 %v672
        %1740 = vmatpush1.msra.mxu0 %v671
        %1741 = vmatprep.subr.mxu0 %v668
        %1742 = vmatpush1.msra.mxu0 %v667
        %1743 = vmatprep.subr.mxu0 %v664
        %1744 = vmatpush1.msra.mxu0 %v663
        %1745 = vmatprep.subr.mxu0 %v660
        %1746 = vmatpush1.msra.mxu0 %v659
        %1747 = vmatprep.subr.mxu0 %v656
        %1748 = vmatpush1.msra.mxu0 %v655
        %1749 = vmatprep.subr.mxu0 %v652
        %1750 = vmatpush1.msra.mxu0 %v651
        %1751 = vmatprep.subr.mxu0 %v648
        %1752 = vmatpush1.msra.mxu0 %v647
        %1753 = vmatprep.subr.mxu0 %v644
        %1754 = vmatpush1.msra.mxu0 %v643
        %1755 = vmatprep.subr.mxu0 %v640
        %1756 = vmatpush1.msra.mxu0 %v639
        %1757 = vmatprep.subr.mxu0 %v636
        %1758 = vmatpush1.msra.mxu0 %v635
        %1759 = vmatprep.subr.mxu0 %v632
        %1760 = vmatpush1.msra.mxu0 %v631
        %1761 = vmatprep.subr.mxu0 %v628
        %1762 = vmatpush1.msra.mxu0 %v627
        %1763 = vmatprep.subr.mxu0 %v624
        %1764 = vmatpush1.msra.mxu0 %v623
        %1765 = vmatprep.subr.mxu0 %v620
        %1766 = vmatpush1.msra.mxu0 %v619
        %1767 = vmatprep.subr.mxu0 %v616
        %1768 = vmatpush1.msra.mxu0 %v615
        %1769 = vmatprep.subr.mxu0 %v612
        %1770 = vmatpush1.msra.mxu0 %v611
        %1771 = vmatprep.subr.mxu0 %v736
        %1772 = vmatpush2.msra.mxu0 %v735
        %1773 = vmatprep.subr.mxu0 %v732
        %1774 = vmatpush2.msra.mxu0 %v731
        %1775 = vmatprep.subr.mxu0 %v728
        %1776 = vmatpush2.msra.mxu0 %v727
        %1777 = vmatprep.subr.mxu0 %v724
        %1778 = vmatpush2.msra.mxu0 %v723
        %1779 = vmatprep.subr.mxu0 %v720
        %1780 = vmatpush2.msra.mxu0 %v719
        %1781 = vmatprep.subr.mxu0 %v716
        %1782 = vmatpush2.msra.mxu0 %v715
        %1783 = vmatprep.subr.mxu0 %v712
        %1784 = vmatpush2.msra.mxu0 %v711
        %1785 = vmatprep.subr.mxu0 %v708
        %1786 = vmatpush2.msra.mxu0 %v707
        %1787 = vmatprep.subr.mxu0 %v704
        %1788 = vmatpush2.msra.mxu0 %v703
        %1789 = vmatprep.subr.mxu0 %v700
        %1790 = vmatpush2.msra.mxu0 %v699
        %1791 = vmatprep.subr.mxu0 %v696
        %1792 = vmatpush2.msra.mxu0 %v695
        %1793 = vmatprep.subr.mxu0 %v692
        %1794 = vmatpush2.msra.mxu0 %v691
        %1795 = vmatprep.subr.mxu0 %v688
        %1796 = vmatpush2.msra.mxu0 %v687
        %1797 = vmatprep.subr.mxu0 %v684
        %1798 = vmatpush2.msra.mxu0 %v683
        %1799 = vmatprep.subr.mxu0 %v680
        %1800 = vmatpush2.msra.mxu0 %v679
        %1801 = vmatprep.subr.mxu0 %v676
        %1802 = vmatpush2.msra.mxu0 %v675
        %1803 = vmatprep.mubr.f32.mxu0 %v1665
        %1804 = vmatmul.mubr.f32.gmra.mxu0 %v1664
        %v1805 = vpop.f32.mrf.mxu0
        %v1806 = vadd.f32 %v750, %v1805
        %v1807 = vpop.f32.mrf.mxu0
        %v1808 = vadd.f32 %v754, %v1807
        %1809 = vdwg.mxu0
        %v1810 = vxor.u32 %v1735, 2147483648
        %v1811 = vxor.u32 %v1737, 2147483648
        %v1812 = vmul.f32 %v1810, 1.442695
        %v1813 = vpow.pop %v1812
        %v1814 = vmul.f32 %v1811, 1.442695
        %v1815 = vpow.pop %v1814
        %v1816 = vadd.f32 %v1813, 1.0
        %v1817 = vadd.f32 %v1815, 1.0
        %v1818 = vrcp.pop %v1816
        %v1819 = vmul.f32 1.0, %v1818
        %v1820 = vrcp.pop %v1817
        %v1821 = vmul.f32 1.0, %v1820
        %v1822 = vtanh.pop %v1806
        %v1823 = vxor.u32 %v1808, 2147483648
        %v1824 = vmul.f32 %v1823, 1.442695
        %v1825 = vpow.pop %v1824
        %v1826 = vadd.f32 %v1825, 1.0
        %v1827 = vrcp.pop %v1826
        %v1828 = vmul.f32 1.0, %v1827
        %v1829 = vmul.f32 %v1821, %v1434
        %v1830 = vmul.f32 %v1819, %v1822
        %v1831 = vadd.f32 %v1829, %v1830
        %v1832 = vtanh.pop %v1831
        %v1833 = vmul.f32 %v1828, %v1832
        %v1834 = vrot.slane %v1655, 1
        %v1835 = vsel %vm1268, %v1656, %v1834
        %1837 = vmatprep.subr.mxu0 %v605
        %1838 = vmatpush1.msra.mxu0 %v604
        %1839 = vmatprep.subr.mxu0 %v601
        %1840 = vmatpush1.msra.mxu0 %v600
        %1841 = vmatprep.subr.mxu0 %v597
        %1842 = vmatpush1.msra.mxu0 %v596
        %1843 = vmatprep.subr.mxu0 %v593
        %1844 = vmatpush1.msra.mxu0 %v592
        %1845 = vmatprep.subr.mxu0 %v589
        %1846 = vmatpush1.msra.mxu0 %v588
        %1847 = vmatprep.subr.mxu0 %v585
        %1848 = vmatpush1.msra.mxu0 %v584
        %1849 = vmatprep.subr.mxu0 %v581
        %1850 = vmatpush1.msra.mxu0 %v580
        %1851 = vmatprep.subr.mxu0 %v577
        %1852 = vmatpush1.msra.mxu0 %v576
        %1853 = vmatprep.subr.mxu0 %v573
        %1854 = vmatpush1.msra.mxu0 %v572
        %1855 = vmatprep.subr.mxu0 %v569
        %1856 = vmatpush1.msra.mxu0 %v568
        %1857 = vmatprep.subr.mxu0 %v565
        %1858 = vmatpush1.msra.mxu0 %v564
        %1859 = vmatprep.subr.mxu0 %v561
        %1860 = vmatpush1.msra.mxu0 %v560
        %1861 = vmatprep.subr.mxu0 %v557
        %1862 = vmatpush1.msra.mxu0 %v556
        %1863 = vmatprep.subr.mxu0 %v553
        %1864 = vmatpush1.msra.mxu0 %v552
        %1865 = vmatprep.subr.mxu0 %v549
        %1866 = vmatpush1.msra.mxu0 %v548
        %1867 = vmatprep.subr.mxu0 %v545
        %1868 = vmatpush1.msra.mxu0 %v544
        %1869 = vmatprep.subr.mxu0 0.0
        %1870 = vmatpush2.msra.mxu0 0.0
        %1871 = vmatprep.subr.mxu0 0.0
        %1872 = vmatpush2.msra.mxu0 0.0
        %1873 = vmatprep.subr.mxu0 0.0
        %1874 = vmatpush2.msra.mxu0 0.0
        %1875 = vmatprep.subr.mxu0 0.0
        %1876 = vmatpush2.msra.mxu0 0.0
        %1877 = vmatprep.subr.mxu0 0.0
        %1878 = vmatpush2.msra.mxu0 0.0
        %1879 = vmatprep.subr.mxu0 0.0
        %1880 = vmatpush2.msra.mxu0 0.0
        %1881 = vmatprep.subr.mxu0 0.0
        %1882 = vmatpush2.msra.mxu0 0.0
        %1883 = vmatprep.subr.mxu0 0.0
        %1884 = vmatpush2.msra.mxu0 0.0
        %1885 = vmatprep.subr.mxu0 0.0
        %1886 = vmatpush2.msra.mxu0 0.0
        %1887 = vmatprep.subr.mxu0 0.0
        %1888 = vmatpush2.msra.mxu0 0.0
        %1889 = vmatprep.subr.mxu0 0.0
        %1890 = vmatpush2.msra.mxu0 0.0
        %1891 = vmatprep.subr.mxu0 0.0
        %1892 = vmatpush2.msra.mxu0 0.0
        %1893 = vmatprep.subr.mxu0 0.0
        %1894 = vmatpush2.msra.mxu0 0.0
        %1895 = vmatprep.subr.mxu0 0.0
        %1896 = vmatpush2.msra.mxu0 0.0
        %1897 = vmatprep.subr.mxu0 0.0
        %1898 = vmatpush2.msra.mxu0 0.0
        %1899 = vmatprep.subr.mxu0 0.0
        %1900 = vmatpush2.msra.mxu0 0.0
        %1901 = vmatprep.mubr.f32.mxu0 0.0
        %1902 = vmatmul.mubr.f32.gmra.mxu0 %v1835
        %v1903 = vpop.f32.mrf.mxu0
        %v1904 = vadd.f32 0.0, %v1903
        %v1905 = vpop.f32.mrf.mxu0
        %v1906 = vadd.f32 0.0, %v1905
        %1907 = vdwg.mxu0
        %1908 = vmatprep.subr.mxu0 %v607
        %1909 = vmatpush1.msra.mxu0 %v606
        %1910 = vmatprep.subr.mxu0 %v603
        %1911 = vmatpush1.msra.mxu0 %v602
        %1912 = vmatprep.subr.mxu0 %v599
        %1913 = vmatpush1.msra.mxu0 %v598
        %1914 = vmatprep.subr.mxu0 %v595
        %1915 = vmatpush1.msra.mxu0 %v594
        %1916 = vmatprep.subr.mxu0 %v591
        %1917 = vmatpush1.msra.mxu0 %v590
        %1918 = vmatprep.subr.mxu0 %v587
        %1919 = vmatpush1.msra.mxu0 %v586
        %1920 = vmatprep.subr.mxu0 %v583
        %1921 = vmatpush1.msra.mxu0 %v582
        %1922 = vmatprep.subr.mxu0 %v579
        %1923 = vmatpush1.msra.mxu0 %v578
        %1924 = vmatprep.subr.mxu0 %v575
        %1925 = vmatpush1.msra.mxu0 %v574
        %1926 = vmatprep.subr.mxu0 %v571
        %1927 = vmatpush1.msra.mxu0 %v570
        %1928 = vmatprep.subr.mxu0 %v567
        %1929 = vmatpush1.msra.mxu0 %v566
        %1930 = vmatprep.subr.mxu0 %v563
        %1931 = vmatpush1.msra.mxu0 %v562
        %1932 = vmatprep.subr.mxu0 %v559
        %1933 = vmatpush1.msra.mxu0 %v558
        %1934 = vmatprep.subr.mxu0 %v555
        %1935 = vmatpush1.msra.mxu0 %v554
        %1936 = vmatprep.subr.mxu0 %v551
        %1937 = vmatpush1.msra.mxu0 %v550
        %1938 = vmatprep.subr.mxu0 %v547
        %1939 = vmatpush1.msra.mxu0 %v546
        %1940 = vmatprep.subr.mxu0 0.0
        %1941 = vmatpush2.msra.mxu0 0.0
        %1942 = vmatprep.subr.mxu0 0.0
        %1943 = vmatpush2.msra.mxu0 0.0
        %1944 = vmatprep.subr.mxu0 0.0
        %1945 = vmatpush2.msra.mxu0 0.0
        %1946 = vmatprep.subr.mxu0 0.0
        %1947 = vmatpush2.msra.mxu0 0.0
        %1948 = vmatprep.subr.mxu0 0.0
        %1949 = vmatpush2.msra.mxu0 0.0
        %1950 = vmatprep.subr.mxu0 0.0
        %1951 = vmatpush2.msra.mxu0 0.0
        %1952 = vmatprep.subr.mxu0 0.0
        %1953 = vmatpush2.msra.mxu0 0.0
        %1954 = vmatprep.subr.mxu0 0.0
        %1955 = vmatpush2.msra.mxu0 0.0
        %1956 = vmatprep.subr.mxu0 0.0
        %1957 = vmatpush2.msra.mxu0 0.0
        %1958 = vmatprep.subr.mxu0 0.0
        %1959 = vmatpush2.msra.mxu0 0.0
        %1960 = vmatprep.subr.mxu0 0.0
        %1961 = vmatpush2.msra.mxu0 0.0
        %1962 = vmatprep.subr.mxu0 0.0
        %1963 = vmatpush2.msra.mxu0 0.0
        %1964 = vmatprep.subr.mxu0 0.0
        %1965 = vmatpush2.msra.mxu0 0.0
        %1966 = vmatprep.subr.mxu0 0.0
        %1967 = vmatpush2.msra.mxu0 0.0
        %1968 = vmatprep.subr.mxu0 0.0
        %1969 = vmatpush2.msra.mxu0 0.0
        %1970 = vmatprep.subr.mxu0 0.0
        %1971 = vmatpush2.msra.mxu0 0.0
        %1972 = vmatprep.mubr.f32.mxu0 0.0
        %1973 = vmatmul.mubr.f32.gmra.mxu0 %v1835
        %v1974 = vpop.f32.mrf.mxu0
        %v1975 = vadd.f32 0.0, %v1974
        %v1976 = vpop.f32.mrf.mxu0
        %v1977 = vadd.f32 0.0, %v1976
        %1978 = vdwg.mxu0
        %v1983 = vrot.slane %v1904, 6
        %v1984 = vrot.slane %v1906, 6
        %v1985 = vrot.slane %v1975, 6
        %v1986 = vrot.slane %v1977, 6
        %v1987 = vrot.slane %v1904, 7
        %v1988 = vrot.slane %v1906, 7
        %v1989 = vrot.slane %v1975, 7
        %v1990 = vrot.slane %v1977, 7
        %v1999 = vadd.f32 %v1033, %v1983
        %v2000 = vadd.f32 %v1034, %v1984
        %v2001 = vadd.f32 %v1035, %v1985
        %v2002 = vadd.f32 %v1036, %v1986
        %v2003 = vadd.f32 %v1037, %v1987
        %v2004 = vadd.f32 %v1038, %v1988
        %v2005 = vadd.f32 %v1039, %v1989
        %v2006 = vadd.f32 %v1040, %v1990
        %v2007 = vxor.u32 %v1999, 2147483648
        %v2008 = vxor.u32 %v2000, 2147483648
        %v2009 = vxor.u32 %v2003, 2147483648
        %v2010 = vxor.u32 %v2004, 2147483648
        %v2011 = vmul.f32 %v2007, 1.442695
        %v2012 = vpow.pop %v2011
        %v2013 = vmul.f32 %v2008, 1.442695
        %v2014 = vpow.pop %v2013
        %v2015 = vmul.f32 %v2009, 1.442695
        %v2016 = vpow.pop %v2015
        %v2017 = vmul.f32 %v2010, 1.442695
        %v2018 = vpow.pop %v2017
        %v2019 = vadd.f32 %v2012, 1.0
        %v2020 = vadd.f32 %v2014, 1.0
        %v2021 = vadd.f32 %v2016, 1.0
        %v2022 = vadd.f32 %v2018, 1.0
        %v2023 = vrcp.pop %v2019
        %v2024 = vmul.f32 1.0, %v2023
        %v2025 = vrcp.pop %v2020
        %v2026 = vmul.f32 1.0, %v2025
        %v2027 = vrcp.pop %v2021
        %v2028 = vmul.f32 1.0, %v2027
        %v2029 = vrcp.pop %v2022
        %v2030 = vmul.f32 1.0, %v2029
        %v2031 = vtanh.pop %v2001
        %v2032 = vtanh.pop %v2005
        %v2033 = vxor.u32 %v2002, 2147483648
        %v2034 = vxor.u32 %v2006, 2147483648
        %v2035 = vmul.f32 %v2033, 1.442695
        %v2036 = vpow.pop %v2035
        %v2037 = vmul.f32 %v2034, 1.442695
        %v2038 = vpow.pop %v2037
        %v2039 = vadd.f32 %v2036, 1.0
        %v2040 = vadd.f32 %v2038, 1.0
        %v2041 = vrcp.pop %v2039
        %v2042 = vmul.f32 1.0, %v2041
        %v2043 = vrcp.pop %v2040
        %v2044 = vmul.f32 1.0, %v2043
        %v2047 = vrot.slane %v1651, 7
        %v2048 = vrot.slane %v1652, 7
        %v2051 = vmul.f32 %v2026, %v2047
        %v2052 = vmul.f32 %v2030, %v2048
        %v2053 = vmul.f32 %v2024, %v2031
        %v2054 = vmul.f32 %v2028, %v2032
        %v2055 = vadd.f32 %v2051, %v2053
        %v2056 = vadd.f32 %v2052, %v2054
        %v2057 = vtanh.pop %v2055
        %v2058 = vtanh.pop %v2056
        %v2059 = vmul.f32 %v2042, %v2057
        %v2060 = vmul.f32 %v2044, %v2058
        %v2063 = vrot.slane %v2060, 7
        %vm2064 = vcmask 1043459
        %v2065 = vsel %vm2064, %v2063, %v2059
        %v2067 = vrot.slane %v1833, 6
        %v2068 = vrot.slane %v2065, 2
        %v2069 = vrot.slane %v2067, 2
        %2072 = vmatprep.subr.mxu0 %v670
        %2073 = vmatpush1.msra.mxu0 %v669
        %2074 = vmatprep.subr.mxu0 %v666
        %2075 = vmatpush1.msra.mxu0 %v665
        %2076 = vmatprep.subr.mxu0 %v662
        %2077 = vmatpush1.msra.mxu0 %v661
        %2078 = vmatprep.subr.mxu0 %v658
        %2079 = vmatpush1.msra.mxu0 %v657
        %2080 = vmatprep.subr.mxu0 %v654
        %2081 = vmatpush1.msra.mxu0 %v653
        %2082 = vmatprep.subr.mxu0 %v650
        %2083 = vmatpush1.msra.mxu0 %v649
        %2084 = vmatprep.subr.mxu0 %v646
        %2085 = vmatpush1.msra.mxu0 %v645
        %2086 = vmatprep.subr.mxu0 %v642
        %2087 = vmatpush1.msra.mxu0 %v641
        %2088 = vmatprep.subr.mxu0 %v638
        %2089 = vmatpush1.msra.mxu0 %v637
        %2090 = vmatprep.subr.mxu0 %v634
        %2091 = vmatpush1.msra.mxu0 %v633
        %2092 = vmatprep.subr.mxu0 %v630
        %2093 = vmatpush1.msra.mxu0 %v629
        %2094 = vmatprep.subr.mxu0 %v626
        %2095 = vmatpush1.msra.mxu0 %v625
        %2096 = vmatprep.subr.mxu0 %v622
        %2097 = vmatpush1.msra.mxu0 %v621
        %2098 = vmatprep.subr.mxu0 %v618
        %2099 = vmatpush1.msra.mxu0 %v617
        %2100 = vmatprep.subr.mxu0 %v614
        %2101 = vmatpush1.msra.mxu0 %v613
        %2102 = vmatprep.subr.mxu0 %v610
        %2103 = vmatpush1.msra.mxu0 %v609
        %2104 = vmatprep.subr.mxu0 %v734
        %2105 = vmatpush2.msra.mxu0 %v733
        %2106 = vmatprep.subr.mxu0 %v730
        %2107 = vmatpush2.msra.mxu0 %v729
        %2108 = vmatprep.subr.mxu0 %v726
        %2109 = vmatpush2.msra.mxu0 %v725
        %2110 = vmatprep.subr.mxu0 %v722
        %2111 = vmatpush2.msra.mxu0 %v721
        %2112 = vmatprep.subr.mxu0 %v718
        %2113 = vmatpush2.msra.mxu0 %v717
        %2114 = vmatprep.subr.mxu0 %v714
        %2115 = vmatpush2.msra.mxu0 %v713
        %2116 = vmatprep.subr.mxu0 %v710
        %2117 = vmatpush2.msra.mxu0 %v709
        %2118 = vmatprep.subr.mxu0 %v706
        %2119 = vmatpush2.msra.mxu0 %v705
        %2120 = vmatprep.subr.mxu0 %v702
        %2121 = vmatpush2.msra.mxu0 %v701
        %2122 = vmatprep.subr.mxu0 %v698
        %2123 = vmatpush2.msra.mxu0 %v697
        %2124 = vmatprep.subr.mxu0 %v694
        %2125 = vmatpush2.msra.mxu0 %v693
        %2126 = vmatprep.subr.mxu0 %v690
        %2127 = vmatpush2.msra.mxu0 %v689
        %2128 = vmatprep.subr.mxu0 %v686
        %2129 = vmatpush2.msra.mxu0 %v685
        %2130 = vmatprep.subr.mxu0 %v682
        %2131 = vmatpush2.msra.mxu0 %v681
        %2132 = vmatprep.subr.mxu0 %v678
        %2133 = vmatpush2.msra.mxu0 %v677
        %2134 = vmatprep.subr.mxu0 %v674
        %2135 = vmatpush2.msra.mxu0 %v673
        %2136 = vmatprep.mubr.f32.mxu0 %v2069
        %2137 = vmatmul.mubr.f32.gmra.mxu0 %v2068
        %v2138 = vpop.f32.mrf.mxu0
        %v2139 = vadd.f32 %v742, %v2138
        %v2140 = vpop.f32.mrf.mxu0
        %v2141 = vadd.f32 %v746, %v2140
        %2142 = vdwg.mxu0
        %2143 = vmatprep.subr.mxu0 %v672
        %2144 = vmatpush1.msra.mxu0 %v671
        %2145 = vmatprep.subr.mxu0 %v668
        %2146 = vmatpush1.msra.mxu0 %v667
        %2147 = vmatprep.subr.mxu0 %v664
        %2148 = vmatpush1.msra.mxu0 %v663
        %2149 = vmatprep.subr.mxu0 %v660
        %2150 = vmatpush1.msra.mxu0 %v659
        %2151 = vmatprep.subr.mxu0 %v656
        %2152 = vmatpush1.msra.mxu0 %v655
        %2153 = vmatprep.subr.mxu0 %v652
        %2154 = vmatpush1.msra.mxu0 %v651
        %2155 = vmatprep.subr.mxu0 %v648
        %2156 = vmatpush1.msra.mxu0 %v647
        %2157 = vmatprep.subr.mxu0 %v644
        %2158 = vmatpush1.msra.mxu0 %v643
        %2159 = vmatprep.subr.mxu0 %v640
        %2160 = vmatpush1.msra.mxu0 %v639
        %2161 = vmatprep.subr.mxu0 %v636
        %2162 = vmatpush1.msra.mxu0 %v635
        %2163 = vmatprep.subr.mxu0 %v632
        %2164 = vmatpush1.msra.mxu0 %v631
        %2165 = vmatprep.subr.mxu0 %v628
        %2166 = vmatpush1.msra.mxu0 %v627
        %2167 = vmatprep.subr.mxu0 %v624
        %2168 = vmatpush1.msra.mxu0 %v623
        %2169 = vmatprep.subr.mxu0 %v620
        %2170 = vmatpush1.msra.mxu0 %v619
        %2171 = vmatprep.subr.mxu0 %v616
        %2172 = vmatpush1.msra.mxu0 %v615
        %2173 = vmatprep.subr.mxu0 %v612
        %2174 = vmatpush1.msra.mxu0 %v611
        %2175 = vmatprep.subr.mxu0 %v736
        %2176 = vmatpush2.msra.mxu0 %v735
        %2177 = vmatprep.subr.mxu0 %v732
        %2178 = vmatpush2.msra.mxu0 %v731
        %2179 = vmatprep.subr.mxu0 %v728
        %2180 = vmatpush2.msra.mxu0 %v727
        %2181 = vmatprep.subr.mxu0 %v724
        %2182 = vmatpush2.msra.mxu0 %v723
        %2183 = vmatprep.subr.mxu0 %v720
        %2184 = vmatpush2.msra.mxu0 %v719
        %2185 = vmatprep.subr.mxu0 %v716
        %2186 = vmatpush2.msra.mxu0 %v715
        %2187 = vmatprep.subr.mxu0 %v712
        %2188 = vmatpush2.msra.mxu0 %v711
        %2189 = vmatprep.subr.mxu0 %v708
        %2190 = vmatpush2.msra.mxu0 %v707
        %2191 = vmatprep.subr.mxu0 %v704
        %2192 = vmatpush2.msra.mxu0 %v703
        %2193 = vmatprep.subr.mxu0 %v700
        %2194 = vmatpush2.msra.mxu0 %v699
        %2195 = vmatprep.subr.mxu0 %v696
        %2196 = vmatpush2.msra.mxu0 %v695
        %2197 = vmatprep.subr.mxu0 %v692
        %2198 = vmatpush2.msra.mxu0 %v691
        %2199 = vmatprep.subr.mxu0 %v688
        %2200 = vmatpush2.msra.mxu0 %v687
        %2201 = vmatprep.subr.mxu0 %v684
        %2202 = vmatpush2.msra.mxu0 %v683
        %2203 = vmatprep.subr.mxu0 %v680
        %2204 = vmatpush2.msra.mxu0 %v679
        %2205 = vmatprep.subr.mxu0 %v676
        %2206 = vmatpush2.msra.mxu0 %v675
        %2207 = vmatprep.mubr.f32.mxu0 %v2069
        %2208 = vmatmul.mubr.f32.gmra.mxu0 %v2068
        %v2209 = vpop.f32.mrf.mxu0
        %v2210 = vadd.f32 %v750, %v2209
        %v2211 = vpop.f32.mrf.mxu0
        %v2212 = vadd.f32 %v754, %v2211
        %2213 = vdwg.mxu0
        %v2214 = vxor.u32 %v2139, 2147483648
        %v2215 = vxor.u32 %v2141, 2147483648
        %v2216 = vmul.f32 %v2214, 1.442695
        %v2217 = vpow.pop %v2216
        %v2218 = vmul.f32 %v2215, 1.442695
        %v2219 = vpow.pop %v2218
        %v2220 = vadd.f32 %v2217, 1.0
        %v2221 = vadd.f32 %v2219, 1.0
        %v2222 = vrcp.pop %v2220
        %v2223 = vmul.f32 1.0, %v2222
        %v2224 = vrcp.pop %v2221
        %v2225 = vmul.f32 1.0, %v2224
        %v2226 = vtanh.pop %v2210
        %v2227 = vxor.u32 %v2212, 2147483648
        %v2228 = vmul.f32 %v2227, 1.442695
        %v2229 = vpow.pop %v2228
        %v2230 = vadd.f32 %v2229, 1.0
        %v2231 = vrcp.pop %v2230
        %v2232 = vmul.f32 1.0, %v2231
        %v2233 = vmul.f32 %v2225, %v1831
        %v2234 = vmul.f32 %v2223, %v2226
        %v2235 = vadd.f32 %v2233, %v2234
        %v2236 = vtanh.pop %v2235
        %v2237 = vmul.f32 %v2232, %v2236
        %v2238 = vrot.slane %v2059, 2
        %v2239 = vrot.slane %v2060, 1
        %v2240 = vsel %vm1268, %v2239, %v2238
        %2242 = vmatprep.subr.mxu0 %v605
        %2243 = vmatpush1.msra.mxu0 %v604
        %2244 = vmatprep.subr.mxu0 %v601
        %2245 = vmatpush1.msra.mxu0 %v600
        %2246 = vmatprep.subr.mxu0 %v597
        %2247 = vmatpush1.msra.mxu0 %v596
        %2248 = vmatprep.subr.mxu0 %v593
        %2249 = vmatpush1.msra.mxu0 %v592
        %2250 = vmatprep.subr.mxu0 %v589
        %2251 = vmatpush1.msra.mxu0 %v588
        %2252 = vmatprep.subr.mxu0 %v585
        %2253 = vmatpush1.msra.mxu0 %v584
        %2254 = vmatprep.subr.mxu0 %v581
        %2255 = vmatpush1.msra.mxu0 %v580
        %2256 = vmatprep.subr.mxu0 %v577
        %2257 = vmatpush1.msra.mxu0 %v576
        %2258 = vmatprep.subr.mxu0 %v573
        %2259 = vmatpush1.msra.mxu0 %v572
        %2260 = vmatprep.subr.mxu0 %v569
        %2261 = vmatpush1.msra.mxu0 %v568
        %2262 = vmatprep.subr.mxu0 %v565
        %2263 = vmatpush1.msra.mxu0 %v564
        %2264 = vmatprep.subr.mxu0 %v561
        %2265 = vmatpush1.msra.mxu0 %v560
        %2266 = vmatprep.subr.mxu0 %v557
        %2267 = vmatpush1.msra.mxu0 %v556
        %2268 = vmatprep.subr.mxu0 %v553
        %2269 = vmatpush1.msra.mxu0 %v552
        %2270 = vmatprep.subr.mxu0 %v549
        %2271 = vmatpush1.msra.mxu0 %v548
        %2272 = vmatprep.subr.mxu0 %v545
        %2273 = vmatpush1.msra.mxu0 %v544
        %2274 = vmatprep.subr.mxu0 0.0
        %2275 = vmatpush2.msra.mxu0 0.0
        %2276 = vmatprep.subr.mxu0 0.0
        %2277 = vmatpush2.msra.mxu0 0.0
        %2278 = vmatprep.subr.mxu0 0.0
        %2279 = vmatpush2.msra.mxu0 0.0
        %2280 = vmatprep.subr.mxu0 0.0
        %2281 = vmatpush2.msra.mxu0 0.0
        %2282 = vmatprep.subr.mxu0 0.0
        %2283 = vmatpush2.msra.mxu0 0.0
        %2284 = vmatprep.subr.mxu0 0.0
        %2285 = vmatpush2.msra.mxu0 0.0
        %2286 = vmatprep.subr.mxu0 0.0
        %2287 = vmatpush2.msra.mxu0 0.0
        %2288 = vmatprep.subr.mxu0 0.0
        %2289 = vmatpush2.msra.mxu0 0.0
        %2290 = vmatprep.subr.mxu0 0.0
        %2291 = vmatpush2.msra.mxu0 0.0
        %2292 = vmatprep.subr.mxu0 0.0
        %2293 = vmatpush2.msra.mxu0 0.0
        %2294 = vmatprep.subr.mxu0 0.0
        %2295 = vmatpush2.msra.mxu0 0.0
        %2296 = vmatprep.subr.mxu0 0.0
        %2297 = vmatpush2.msra.mxu0 0.0
        %2298 = vmatprep.subr.mxu0 0.0
        %2299 = vmatpush2.msra.mxu0 0.0
        %2300 = vmatprep.subr.mxu0 0.0
        %2301 = vmatpush2.msra.mxu0 0.0
        %2302 = vmatprep.subr.mxu0 0.0
        %2303 = vmatpush2.msra.mxu0 0.0
        %2304 = vmatprep.subr.mxu0 0.0
        %2305 = vmatpush2.msra.mxu0 0.0
        %2306 = vmatprep.mubr.f32.mxu0 0.0
        %2307 = vmatmul.mubr.f32.gmra.mxu0 %v2240
        %v2308 = vpop.f32.mrf.mxu0
        %v2309 = vadd.f32 0.0, %v2308
        %v2310 = vpop.f32.mrf.mxu0
        %v2311 = vadd.f32 0.0, %v2310
        %2312 = vdwg.mxu0
        %2313 = vmatprep.subr.mxu0 %v607
        %2314 = vmatpush1.msra.mxu0 %v606
        %2315 = vmatprep.subr.mxu0 %v603
        %2316 = vmatpush1.msra.mxu0 %v602
        %2317 = vmatprep.subr.mxu0 %v599
        %2318 = vmatpush1.msra.mxu0 %v598
        %2319 = vmatprep.subr.mxu0 %v595
        %2320 = vmatpush1.msra.mxu0 %v594
        %2321 = vmatprep.subr.mxu0 %v591
        %2322 = vmatpush1.msra.mxu0 %v590
        %2323 = vmatprep.subr.mxu0 %v587
        %2324 = vmatpush1.msra.mxu0 %v586
        %2325 = vmatprep.subr.mxu0 %v583
        %2326 = vmatpush1.msra.mxu0 %v582
        %2327 = vmatprep.subr.mxu0 %v579
        %2328 = vmatpush1.msra.mxu0 %v578
        %2329 = vmatprep.subr.mxu0 %v575
        %2330 = vmatpush1.msra.mxu0 %v574
        %2331 = vmatprep.subr.mxu0 %v571
        %2332 = vmatpush1.msra.mxu0 %v570
        %2333 = vmatprep.subr.mxu0 %v567
        %2334 = vmatpush1.msra.mxu0 %v566
        %2335 = vmatprep.subr.mxu0 %v563
        %2336 = vmatpush1.msra.mxu0 %v562
        %2337 = vmatprep.subr.mxu0 %v559
        %2338 = vmatpush1.msra.mxu0 %v558
        %2339 = vmatprep.subr.mxu0 %v555
        %2340 = vmatpush1.msra.mxu0 %v554
        %2341 = vmatprep.subr.mxu0 %v551
        %2342 = vmatpush1.msra.mxu0 %v550
        %2343 = vmatprep.subr.mxu0 %v547
        %2344 = vmatpush1.msra.mxu0 %v546
        %2345 = vmatprep.subr.mxu0 0.0
        %2346 = vmatpush2.msra.mxu0 0.0
        %2347 = vmatprep.subr.mxu0 0.0
        %2348 = vmatpush2.msra.mxu0 0.0
        %2349 = vmatprep.subr.mxu0 0.0
        %2350 = vmatpush2.msra.mxu0 0.0
        %2351 = vmatprep.subr.mxu0 0.0
        %2352 = vmatpush2.msra.mxu0 0.0
        %2353 = vmatprep.subr.mxu0 0.0
        %2354 = vmatpush2.msra.mxu0 0.0
        %2355 = vmatprep.subr.mxu0 0.0
        %2356 = vmatpush2.msra.mxu0 0.0
        %2357 = vmatprep.subr.mxu0 0.0
        %2358 = vmatpush2.msra.mxu0 0.0
        %2359 = vmatprep.subr.mxu0 0.0
        %2360 = vmatpush2.msra.mxu0 0.0
        %2361 = vmatprep.subr.mxu0 0.0
        %2362 = vmatpush2.msra.mxu0 0.0
        %2363 = vmatprep.subr.mxu0 0.0
        %2364 = vmatpush2.msra.mxu0 0.0
        %2365 = vmatprep.subr.mxu0 0.0
        %2366 = vmatpush2.msra.mxu0 0.0
        %2367 = vmatprep.subr.mxu0 0.0
        %2368 = vmatpush2.msra.mxu0 0.0
        %2369 = vmatprep.subr.mxu0 0.0
        %2370 = vmatpush2.msra.mxu0 0.0
        %2371 = vmatprep.subr.mxu0 0.0
        %2372 = vmatpush2.msra.mxu0 0.0
        %2373 = vmatprep.subr.mxu0 0.0
        %2374 = vmatpush2.msra.mxu0 0.0
        %2375 = vmatprep.subr.mxu0 0.0
        %2376 = vmatpush2.msra.mxu0 0.0
        %2377 = vmatprep.mubr.f32.mxu0 0.0
        %2378 = vmatmul.mubr.f32.gmra.mxu0 %v2240
        %v2379 = vpop.f32.mrf.mxu0
        %v2380 = vadd.f32 0.0, %v2379
        %v2381 = vpop.f32.mrf.mxu0
        %v2382 = vadd.f32 0.0, %v2381
        %2383 = vdwg.mxu0
        %v2388 = vrot.slane %v2309, 5
        %v2389 = vrot.slane %v2311, 5
        %v2390 = vrot.slane %v2380, 5
        %v2391 = vrot.slane %v2382, 5
        %v2392 = vrot.slane %v2309, 6
        %v2393 = vrot.slane %v2311, 6
        %v2394 = vrot.slane %v2380, 6
        %v2395 = vrot.slane %v2382, 6
        %v2404 = vadd.f32 %v1033, %v2388
        %v2405 = vadd.f32 %v1034, %v2389
        %v2406 = vadd.f32 %v1035, %v2390
        %v2407 = vadd.f32 %v1036, %v2391
        %v2408 = vadd.f32 %v1037, %v2392
        %v2409 = vadd.f32 %v1038, %v2393
        %v2410 = vadd.f32 %v1039, %v2394
        %v2411 = vadd.f32 %v1040, %v2395
        %v2412 = vxor.u32 %v2404, 2147483648
        %v2413 = vxor.u32 %v2405, 2147483648
        %v2414 = vxor.u32 %v2408, 2147483648
        %v2415 = vxor.u32 %v2409, 2147483648
        %v2416 = vmul.f32 %v2412, 1.442695
        %v2417 = vpow.pop %v2416
        %v2418 = vmul.f32 %v2413, 1.442695
        %v2419 = vpow.pop %v2418
        %v2420 = vmul.f32 %v2414, 1.442695
        %v2421 = vpow.pop %v2420
        %v2422 = vmul.f32 %v2415, 1.442695
        %v2423 = vpow.pop %v2422
        %v2424 = vadd.f32 %v2417, 1.0
        %v2425 = vadd.f32 %v2419, 1.0
        %v2426 = vadd.f32 %v2421, 1.0
        %v2427 = vadd.f32 %v2423, 1.0
        %v2428 = vrcp.pop %v2424
        %v2429 = vmul.f32 1.0, %v2428
        %v2430 = vrcp.pop %v2425
        %v2431 = vmul.f32 1.0, %v2430
        %v2432 = vrcp.pop %v2426
        %v2433 = vmul.f32 1.0, %v2432
        %v2434 = vrcp.pop %v2427
        %v2435 = vmul.f32 1.0, %v2434
        %v2436 = vtanh.pop %v2406
        %v2437 = vtanh.pop %v2410
        %v2438 = vxor.u32 %v2407, 2147483648
        %v2439 = vxor.u32 %v2411, 2147483648
        %v2440 = vmul.f32 %v2438, 1.442695
        %v2441 = vpow.pop %v2440
        %v2442 = vmul.f32 %v2439, 1.442695
        %v2443 = vpow.pop %v2442
        %v2444 = vadd.f32 %v2441, 1.0
        %v2445 = vadd.f32 %v2443, 1.0
        %v2446 = vrcp.pop %v2444
        %v2447 = vmul.f32 1.0, %v2446
        %v2448 = vrcp.pop %v2445
        %v2449 = vmul.f32 1.0, %v2448
        %v2452 = vrot.slane %v2055, 7
        %v2453 = vrot.slane %v2056, 7
        %v2456 = vmul.f32 %v2431, %v2452
        %v2457 = vmul.f32 %v2435, %v2453
        %v2458 = vmul.f32 %v2429, %v2436
        %v2459 = vmul.f32 %v2433, %v2437
        %v2460 = vadd.f32 %v2456, %v2458
        %v2461 = vadd.f32 %v2457, %v2459
        %v2462 = vtanh.pop %v2460
        %v2463 = vtanh.pop %v2461
        %v2464 = vmul.f32 %v2447, %v2462
        %v2465 = vmul.f32 %v2449, %v2463
        %v2468 = vrot.slane %v2465, 7
        %vm2469 = vcmask 1044484
        %v2470 = vsel %vm2469, %v2468, %v2464
        %v2472 = vrot.slane %v2237, 5
        %v2473 = vrot.slane %v2470, 3
        %v2474 = vrot.slane %v2472, 3
        %2477 = vmatprep.subr.mxu0 %v670
        %2478 = vmatpush1.msra.mxu0 %v669
        %2479 = vmatprep.subr.mxu0 %v666
        %2480 = vmatpush1.msra.mxu0 %v665
        %2481 = vmatprep.subr.mxu0 %v662
        %2482 = vmatpush1.msra.mxu0 %v661
        %2483 = vmatprep.subr.mxu0 %v658
        %2484 = vmatpush1.msra.mxu0 %v657
        %2485 = vmatprep.subr.mxu0 %v654
        %2486 = vmatpush1.msra.mxu0 %v653
        %2487 = vmatprep.subr.mxu0 %v650
        %2488 = vmatpush1.msra.mxu0 %v649
        %2489 = vmatprep.subr.mxu0 %v646
        %2490 = vmatpush1.msra.mxu0 %v645
        %2491 = vmatprep.subr.mxu0 %v642
        %2492 = vmatpush1.msra.mxu0 %v641
        %2493 = vmatprep.subr.mxu0 %v638
        %2494 = vmatpush1.msra.mxu0 %v637
        %2495 = vmatprep.subr.mxu0 %v634
        %2496 = vmatpush1.msra.mxu0 %v633
        %2497 = vmatprep.subr.mxu0 %v630
        %2498 = vmatpush1.msra.mxu0 %v629
        %2499 = vmatprep.subr.mxu0 %v626
        %2500 = vmatpush1.msra.mxu0 %v625
        %2501 = vmatprep.subr.mxu0 %v622
        %2502 = vmatpush1.msra.mxu0 %v621
        %2503 = vmatprep.subr.mxu0 %v618
        %2504 = vmatpush1.msra.mxu0 %v617
        %2505 = vmatprep.subr.mxu0 %v614
        %2506 = vmatpush1.msra.mxu0 %v613
        %2507 = vmatprep.subr.mxu0 %v610
        %2508 = vmatpush1.msra.mxu0 %v609
        %2509 = vmatprep.subr.mxu0 %v734
        %2510 = vmatpush2.msra.mxu0 %v733
        %2511 = vmatprep.subr.mxu0 %v730
        %2512 = vmatpush2.msra.mxu0 %v729
        %2513 = vmatprep.subr.mxu0 %v726
        %2514 = vmatpush2.msra.mxu0 %v725
        %2515 = vmatprep.subr.mxu0 %v722
        %2516 = vmatpush2.msra.mxu0 %v721
        %2517 = vmatprep.subr.mxu0 %v718
        %2518 = vmatpush2.msra.mxu0 %v717
        %2519 = vmatprep.subr.mxu0 %v714
        %2520 = vmatpush2.msra.mxu0 %v713
        %2521 = vmatprep.subr.mxu0 %v710
        %2522 = vmatpush2.msra.mxu0 %v709
        %2523 = vmatprep.subr.mxu0 %v706
        %2524 = vmatpush2.msra.mxu0 %v705
        %2525 = vmatprep.subr.mxu0 %v702
        %2526 = vmatpush2.msra.mxu0 %v701
        %2527 = vmatprep.subr.mxu0 %v698
        %2528 = vmatpush2.msra.mxu0 %v697
        %2529 = vmatprep.subr.mxu0 %v694
        %2530 = vmatpush2.msra.mxu0 %v693
        %2531 = vmatprep.subr.mxu0 %v690
        %2532 = vmatpush2.msra.mxu0 %v689
        %2533 = vmatprep.subr.mxu0 %v686
        %2534 = vmatpush2.msra.mxu0 %v685
        %2535 = vmatprep.subr.mxu0 %v682
        %2536 = vmatpush2.msra.mxu0 %v681
        %2537 = vmatprep.subr.mxu0 %v678
        %2538 = vmatpush2.msra.mxu0 %v677
        %2539 = vmatprep.subr.mxu0 %v674
        %2540 = vmatpush2.msra.mxu0 %v673
        %2541 = vmatprep.mubr.f32.mxu0 %v2474
        %2542 = vmatmul.mubr.f32.gmra.mxu0 %v2473
        %v2543 = vpop.f32.mrf.mxu0
        %v2544 = vadd.f32 %v742, %v2543
        %v2545 = vpop.f32.mrf.mxu0
        %v2546 = vadd.f32 %v746, %v2545
        %2547 = vdwg.mxu0
        %2548 = vmatprep.subr.mxu0 %v672
        %2549 = vmatpush1.msra.mxu0 %v671
        %2550 = vmatprep.subr.mxu0 %v668
        %2551 = vmatpush1.msra.mxu0 %v667
        %2552 = vmatprep.subr.mxu0 %v664
        %2553 = vmatpush1.msra.mxu0 %v663
        %2554 = vmatprep.subr.mxu0 %v660
        %2555 = vmatpush1.msra.mxu0 %v659
        %2556 = vmatprep.subr.mxu0 %v656
        %2557 = vmatpush1.msra.mxu0 %v655
        %2558 = vmatprep.subr.mxu0 %v652
        %2559 = vmatpush1.msra.mxu0 %v651
        %2560 = vmatprep.subr.mxu0 %v648
        %2561 = vmatpush1.msra.mxu0 %v647
        %2562 = vmatprep.subr.mxu0 %v644
        %2563 = vmatpush1.msra.mxu0 %v643
        %2564 = vmatprep.subr.mxu0 %v640
        %2565 = vmatpush1.msra.mxu0 %v639
        %2566 = vmatprep.subr.mxu0 %v636
        %2567 = vmatpush1.msra.mxu0 %v635
        %2568 = vmatprep.subr.mxu0 %v632
        %2569 = vmatpush1.msra.mxu0 %v631
        %2570 = vmatprep.subr.mxu0 %v628
        %2571 = vmatpush1.msra.mxu0 %v627
        %2572 = vmatprep.subr.mxu0 %v624
        %2573 = vmatpush1.msra.mxu0 %v623
        %2574 = vmatprep.subr.mxu0 %v620
        %2575 = vmatpush1.msra.mxu0 %v619
        %2576 = vmatprep.subr.mxu0 %v616
        %2577 = vmatpush1.msra.mxu0 %v615
        %2578 = vmatprep.subr.mxu0 %v612
        %2579 = vmatpush1.msra.mxu0 %v611
        %2580 = vmatprep.subr.mxu0 %v736
        %2581 = vmatpush2.msra.mxu0 %v735
        %2582 = vmatprep.subr.mxu0 %v732
        %2583 = vmatpush2.msra.mxu0 %v731
        %2584 = vmatprep.subr.mxu0 %v728
        %2585 = vmatpush2.msra.mxu0 %v727
        %2586 = vmatprep.subr.mxu0 %v724
        %2587 = vmatpush2.msra.mxu0 %v723
        %2588 = vmatprep.subr.mxu0 %v720
        %2589 = vmatpush2.msra.mxu0 %v719
        %2590 = vmatprep.subr.mxu0 %v716
        %2591 = vmatpush2.msra.mxu0 %v715
        %2592 = vmatprep.subr.mxu0 %v712
        %2593 = vmatpush2.msra.mxu0 %v711
        %2594 = vmatprep.subr.mxu0 %v708
        %2595 = vmatpush2.msra.mxu0 %v707
        %2596 = vmatprep.subr.mxu0 %v704
        %2597 = vmatpush2.msra.mxu0 %v703
        %2598 = vmatprep.subr.mxu0 %v700
        %2599 = vmatpush2.msra.mxu0 %v699
        %2600 = vmatprep.subr.mxu0 %v696
        %2601 = vmatpush2.msra.mxu0 %v695
        %2602 = vmatprep.subr.mxu0 %v692
        %2603 = vmatpush2.msra.mxu0 %v691
        %2604 = vmatprep.subr.mxu0 %v688
        %2605 = vmatpush2.msra.mxu0 %v687
        %2606 = vmatprep.subr.mxu0 %v684
        %2607 = vmatpush2.msra.mxu0 %v683
        %2608 = vmatprep.subr.mxu0 %v680
        %2609 = vmatpush2.msra.mxu0 %v679
        %2610 = vmatprep.subr.mxu0 %v676
        %2611 = vmatpush2.msra.mxu0 %v675
        %2612 = vmatprep.mubr.f32.mxu0 %v2474
        %2613 = vmatmul.mubr.f32.gmra.mxu0 %v2473
        %v2614 = vpop.f32.mrf.mxu0
        %v2615 = vadd.f32 %v750, %v2614
        %v2616 = vpop.f32.mrf.mxu0
        %v2617 = vadd.f32 %v754, %v2616
        %2618 = vdwg.mxu0
        %v2619 = vxor.u32 %v2544, 2147483648
        %v2620 = vxor.u32 %v2546, 2147483648
        %v2621 = vmul.f32 %v2619, 1.442695
        %v2622 = vpow.pop %v2621
        %v2623 = vmul.f32 %v2620, 1.442695
        %v2624 = vpow.pop %v2623
        %v2625 = vadd.f32 %v2622, 1.0
        %v2626 = vadd.f32 %v2624, 1.0
        %v2627 = vrcp.pop %v2625
        %v2628 = vmul.f32 1.0, %v2627
        %v2629 = vrcp.pop %v2626
        %v2630 = vmul.f32 1.0, %v2629
        %v2631 = vtanh.pop %v2615
        %v2632 = vxor.u32 %v2617, 2147483648
        %v2633 = vmul.f32 %v2632, 1.442695
        %v2634 = vpow.pop %v2633
        %v2635 = vadd.f32 %v2634, 1.0
        %v2636 = vrcp.pop %v2635
        %v2637 = vmul.f32 1.0, %v2636
        %v2638 = vmul.f32 %v2630, %v2235
        %v2639 = vmul.f32 %v2628, %v2631
        %v2640 = vadd.f32 %v2638, %v2639
        %v2641 = vtanh.pop %v2640
        %v2642 = vmul.f32 %v2637, %v2641
        %v2643 = vrot.slane %v2464, 3
        %v2644 = vrot.slane %v2465, 2
        %v2645 = vsel %vm1268, %v2644, %v2643
        %2647 = vmatprep.subr.mxu0 %v605
        %2648 = vmatpush1.msra.mxu0 %v604
        %2649 = vmatprep.subr.mxu0 %v601
        %2650 = vmatpush1.msra.mxu0 %v600
        %2651 = vmatprep.subr.mxu0 %v597
        %2652 = vmatpush1.msra.mxu0 %v596
        %2653 = vmatprep.subr.mxu0 %v593
        %2654 = vmatpush1.msra.mxu0 %v592
        %2655 = vmatprep.subr.mxu0 %v589
        %2656 = vmatpush1.msra.mxu0 %v588
        %2657 = vmatprep.subr.mxu0 %v585
        %2658 = vmatpush1.msra.mxu0 %v584
        %2659 = vmatprep.subr.mxu0 %v581
        %2660 = vmatpush1.msra.mxu0 %v580
        %2661 = vmatprep.subr.mxu0 %v577
        %2662 = vmatpush1.msra.mxu0 %v576
        %2663 = vmatprep.subr.mxu0 %v573
        %2664 = vmatpush1.msra.mxu0 %v572
        %2665 = vmatprep.subr.mxu0 %v569
        %2666 = vmatpush1.msra.mxu0 %v568
        %2667 = vmatprep.subr.mxu0 %v565
        %2668 = vmatpush1.msra.mxu0 %v564
        %2669 = vmatprep.subr.mxu0 %v561
        %2670 = vmatpush1.msra.mxu0 %v560
        %2671 = vmatprep.subr.mxu0 %v557
        %2672 = vmatpush1.msra.mxu0 %v556
        %2673 = vmatprep.subr.mxu0 %v553
        %2674 = vmatpush1.msra.mxu0 %v552
        %2675 = vmatprep.subr.mxu0 %v549
        %2676 = vmatpush1.msra.mxu0 %v548
        %2677 = vmatprep.subr.mxu0 %v545
        %2678 = vmatpush1.msra.mxu0 %v544
        %2679 = vmatprep.subr.mxu0 0.0
        %2680 = vmatpush2.msra.mxu0 0.0
        %2681 = vmatprep.subr.mxu0 0.0
        %2682 = vmatpush2.msra.mxu0 0.0
        %2683 = vmatprep.subr.mxu0 0.0
        %2684 = vmatpush2.msra.mxu0 0.0
        %2685 = vmatprep.subr.mxu0 0.0
        %2686 = vmatpush2.msra.mxu0 0.0
        %2687 = vmatprep.subr.mxu0 0.0
        %2688 = vmatpush2.msra.mxu0 0.0
        %2689 = vmatprep.subr.mxu0 0.0
        %2690 = vmatpush2.msra.mxu0 0.0
        %2691 = vmatprep.subr.mxu0 0.0
        %2692 = vmatpush2.msra.mxu0 0.0
        %2693 = vmatprep.subr.mxu0 0.0
        %2694 = vmatpush2.msra.mxu0 0.0
        %2695 = vmatprep.subr.mxu0 0.0
        %2696 = vmatpush2.msra.mxu0 0.0
        %2697 = vmatprep.subr.mxu0 0.0
        %2698 = vmatpush2.msra.mxu0 0.0
        %2699 = vmatprep.subr.mxu0 0.0
        %2700 = vmatpush2.msra.mxu0 0.0
        %2701 = vmatprep.subr.mxu0 0.0
        %2702 = vmatpush2.msra.mxu0 0.0
        %2703 = vmatprep.subr.mxu0 0.0
        %2704 = vmatpush2.msra.mxu0 0.0
        %2705 = vmatprep.subr.mxu0 0.0
        %2706 = vmatpush2.msra.mxu0 0.0
        %2707 = vmatprep.subr.mxu0 0.0
        %2708 = vmatpush2.msra.mxu0 0.0
        %2709 = vmatprep.subr.mxu0 0.0
        %2710 = vmatpush2.msra.mxu0 0.0
        %2711 = vmatprep.mubr.f32.mxu0 0.0
        %2712 = vmatmul.mubr.f32.gmra.mxu0 %v2645
        %v2713 = vpop.f32.mrf.mxu0
        %v2714 = vadd.f32 0.0, %v2713
        %v2715 = vpop.f32.mrf.mxu0
        %v2716 = vadd.f32 0.0, %v2715
        %2717 = vdwg.mxu0
        %2718 = vmatprep.subr.mxu0 %v607
        %2719 = vmatpush1.msra.mxu0 %v606
        %2720 = vmatprep.subr.mxu0 %v603
        %2721 = vmatpush1.msra.mxu0 %v602
        %2722 = vmatprep.subr.mxu0 %v599
        %2723 = vmatpush1.msra.mxu0 %v598
        %2724 = vmatprep.subr.mxu0 %v595
        %2725 = vmatpush1.msra.mxu0 %v594
        %2726 = vmatprep.subr.mxu0 %v591
        %2727 = vmatpush1.msra.mxu0 %v590
        %2728 = vmatprep.subr.mxu0 %v587
        %2729 = vmatpush1.msra.mxu0 %v586
        %2730 = vmatprep.subr.mxu0 %v583
        %2731 = vmatpush1.msra.mxu0 %v582
        %2732 = vmatprep.subr.mxu0 %v579
        %2733 = vmatpush1.msra.mxu0 %v578
        %2734 = vmatprep.subr.mxu0 %v575
        %2735 = vmatpush1.msra.mxu0 %v574
        %2736 = vmatprep.subr.mxu0 %v571
        %2737 = vmatpush1.msra.mxu0 %v570
        %2738 = vmatprep.subr.mxu0 %v567
        %2739 = vmatpush1.msra.mxu0 %v566
        %2740 = vmatprep.subr.mxu0 %v563
        %2741 = vmatpush1.msra.mxu0 %v562
        %2742 = vmatprep.subr.mxu0 %v559
        %2743 = vmatpush1.msra.mxu0 %v558
        %2744 = vmatprep.subr.mxu0 %v555
        %2745 = vmatpush1.msra.mxu0 %v554
        %2746 = vmatprep.subr.mxu0 %v551
        %2747 = vmatpush1.msra.mxu0 %v550
        %2748 = vmatprep.subr.mxu0 %v547
        %2749 = vmatpush1.msra.mxu0 %v546
        %2750 = vmatprep.subr.mxu0 0.0
        %2751 = vmatpush2.msra.mxu0 0.0
        %2752 = vmatprep.subr.mxu0 0.0
        %2753 = vmatpush2.msra.mxu0 0.0
        %2754 = vmatprep.subr.mxu0 0.0
        %2755 = vmatpush2.msra.mxu0 0.0
        %2756 = vmatprep.subr.mxu0 0.0
        %2757 = vmatpush2.msra.mxu0 0.0
        %2758 = vmatprep.subr.mxu0 0.0
        %2759 = vmatpush2.msra.mxu0 0.0
        %2760 = vmatprep.subr.mxu0 0.0
        %2761 = vmatpush2.msra.mxu0 0.0
        %2762 = vmatprep.subr.mxu0 0.0
        %2763 = vmatpush2.msra.mxu0 0.0
        %2764 = vmatprep.subr.mxu0 0.0
        %2765 = vmatpush2.msra.mxu0 0.0
        %2766 = vmatprep.subr.mxu0 0.0
        %2767 = vmatpush2.msra.mxu0 0.0
        %2768 = vmatprep.subr.mxu0 0.0
        %2769 = vmatpush2.msra.mxu0 0.0
        %2770 = vmatprep.subr.mxu0 0.0
        %2771 = vmatpush2.msra.mxu0 0.0
        %2772 = vmatprep.subr.mxu0 0.0
        %2773 = vmatpush2.msra.mxu0 0.0
        %2774 = vmatprep.subr.mxu0 0.0
        %2775 = vmatpush2.msra.mxu0 0.0
        %2776 = vmatprep.subr.mxu0 0.0
        %2777 = vmatpush2.msra.mxu0 0.0
        %2778 = vmatprep.subr.mxu0 0.0
        %2779 = vmatpush2.msra.mxu0 0.0
        %2780 = vmatprep.subr.mxu0 0.0
        %2781 = vmatpush2.msra.mxu0 0.0
        %2782 = vmatprep.mubr.f32.mxu0 0.0
        %2783 = vmatmul.mubr.f32.gmra.mxu0 %v2645
        %v2784 = vpop.f32.mrf.mxu0
        %v2785 = vadd.f32 0.0, %v2784
        %v2786 = vpop.f32.mrf.mxu0
        %v2787 = vadd.f32 0.0, %v2786
        %2788 = vdwg.mxu0
        %v2793 = vrot.slane %v2714, 4
        %v2794 = vrot.slane %v2716, 4
        %v2795 = vrot.slane %v2785, 4
        %v2796 = vrot.slane %v2787, 4
        %v2797 = vrot.slane %v2714, 5
        %v2798 = vrot.slane %v2716, 5
        %v2799 = vrot.slane %v2785, 5
        %v2800 = vrot.slane %v2787, 5
        %v2809 = vadd.f32 %v1033, %v2793
        %v2810 = vadd.f32 %v1034, %v2794
        %v2811 = vadd.f32 %v1035, %v2795
        %v2812 = vadd.f32 %v1036, %v2796
        %v2813 = vadd.f32 %v1037, %v2797
        %v2814 = vadd.f32 %v1038, %v2798
        %v2815 = vadd.f32 %v1039, %v2799
        %v2816 = vadd.f32 %v1040, %v2800
        %v2817 = vxor.u32 %v2809, 2147483648
        %v2818 = vxor.u32 %v2810, 2147483648
        %v2819 = vxor.u32 %v2813, 2147483648
        %v2820 = vxor.u32 %v2814, 2147483648
        %v2821 = vmul.f32 %v2817, 1.442695
        %v2822 = vpow.pop %v2821
        %v2823 = vmul.f32 %v2818, 1.442695
        %v2824 = vpow.pop %v2823
        %v2825 = vmul.f32 %v2819, 1.442695
        %v2826 = vpow.pop %v2825
        %v2827 = vmul.f32 %v2820, 1.442695
        %v2828 = vpow.pop %v2827
        %v2829 = vadd.f32 %v2822, 1.0
        %v2830 = vadd.f32 %v2824, 1.0
        %v2831 = vadd.f32 %v2826, 1.0
        %v2832 = vadd.f32 %v2828, 1.0
        %v2833 = vrcp.pop %v2829
        %v2834 = vmul.f32 1.0, %v2833
        %v2835 = vrcp.pop %v2830
        %v2836 = vmul.f32 1.0, %v2835
        %v2837 = vrcp.pop %v2831
        %v2838 = vmul.f32 1.0, %v2837
        %v2839 = vrcp.pop %v2832
        %v2840 = vmul.f32 1.0, %v2839
        %v2841 = vtanh.pop %v2811
        %v2842 = vtanh.pop %v2815
        %v2843 = vxor.u32 %v2812, 2147483648
        %v2844 = vxor.u32 %v2816, 2147483648
        %v2845 = vmul.f32 %v2843, 1.442695
        %v2846 = vpow.pop %v2845
        %v2847 = vmul.f32 %v2844, 1.442695
        %v2848 = vpow.pop %v2847
        %v2849 = vadd.f32 %v2846, 1.0
        %v2850 = vadd.f32 %v2848, 1.0
        %v2851 = vrcp.pop %v2849
        %v2852 = vmul.f32 1.0, %v2851
        %v2853 = vrcp.pop %v2850
        %v2854 = vmul.f32 1.0, %v2853
        %v2857 = vrot.slane %v2460, 7
        %v2858 = vrot.slane %v2461, 7
        %v2861 = vmul.f32 %v2836, %v2857
        %v2862 = vmul.f32 %v2840, %v2858
        %v2863 = vmul.f32 %v2834, %v2841
        %v2864 = vmul.f32 %v2838, %v2842
        %v2865 = vadd.f32 %v2861, %v2863
        %v2866 = vadd.f32 %v2862, %v2864
        %v2867 = vtanh.pop %v2865
        %v2868 = vtanh.pop %v2866
        %v2869 = vmul.f32 %v2852, %v2867
        %v2870 = vmul.f32 %v2854, %v2868
        %v2873 = vrot.slane %v2870, 7
        %vm2874 = vcmask 1045509
        %v2875 = vsel %vm2874, %v2873, %v2869
        %v2877 = vrot.slane %v2642, 4
        %v2878 = vrot.slane %v2875, 4
        %v2879 = vrot.slane %v2877, 4
        %2882 = vmatprep.subr.mxu0 %v670
        %2883 = vmatpush1.msra.mxu0 %v669
        %2884 = vmatprep.subr.mxu0 %v666
        %2885 = vmatpush1.msra.mxu0 %v665
        %2886 = vmatprep.subr.mxu0 %v662
        %2887 = vmatpush1.msra.mxu0 %v661
        %2888 = vmatprep.subr.mxu0 %v658
        %2889 = vmatpush1.msra.mxu0 %v657
        %2890 = vmatprep.subr.mxu0 %v654
        %2891 = vmatpush1.msra.mxu0 %v653
        %2892 = vmatprep.subr.mxu0 %v650
        %2893 = vmatpush1.msra.mxu0 %v649
        %2894 = vmatprep.subr.mxu0 %v646
        %2895 = vmatpush1.msra.mxu0 %v645
        %2896 = vmatprep.subr.mxu0 %v642
        %2897 = vmatpush1.msra.mxu0 %v641
        %2898 = vmatprep.subr.mxu0 %v638
        %2899 = vmatpush1.msra.mxu0 %v637
        %2900 = vmatprep.subr.mxu0 %v634
        %2901 = vmatpush1.msra.mxu0 %v633
        %2902 = vmatprep.subr.mxu0 %v630
        %2903 = vmatpush1.msra.mxu0 %v629
        %2904 = vmatprep.subr.mxu0 %v626
        %2905 = vmatpush1.msra.mxu0 %v625
        %2906 = vmatprep.subr.mxu0 %v622
        %2907 = vmatpush1.msra.mxu0 %v621
        %2908 = vmatprep.subr.mxu0 %v618
        %2909 = vmatpush1.msra.mxu0 %v617
        %2910 = vmatprep.subr.mxu0 %v614
        %2911 = vmatpush1.msra.mxu0 %v613
        %2912 = vmatprep.subr.mxu0 %v610
        %2913 = vmatpush1.msra.mxu0 %v609
        %2914 = vmatprep.subr.mxu0 %v734
        %2915 = vmatpush2.msra.mxu0 %v733
        %2916 = vmatprep.subr.mxu0 %v730
        %2917 = vmatpush2.msra.mxu0 %v729
        %2918 = vmatprep.subr.mxu0 %v726
        %2919 = vmatpush2.msra.mxu0 %v725
        %2920 = vmatprep.subr.mxu0 %v722
        %2921 = vmatpush2.msra.mxu0 %v721
        %2922 = vmatprep.subr.mxu0 %v718
        %2923 = vmatpush2.msra.mxu0 %v717
        %2924 = vmatprep.subr.mxu0 %v714
        %2925 = vmatpush2.msra.mxu0 %v713
        %2926 = vmatprep.subr.mxu0 %v710
        %2927 = vmatpush2.msra.mxu0 %v709
        %2928 = vmatprep.subr.mxu0 %v706
        %2929 = vmatpush2.msra.mxu0 %v705
        %2930 = vmatprep.subr.mxu0 %v702
        %2931 = vmatpush2.msra.mxu0 %v701
        %2932 = vmatprep.subr.mxu0 %v698
        %2933 = vmatpush2.msra.mxu0 %v697
        %2934 = vmatprep.subr.mxu0 %v694
        %2935 = vmatpush2.msra.mxu0 %v693
        %2936 = vmatprep.subr.mxu0 %v690
        %2937 = vmatpush2.msra.mxu0 %v689
        %2938 = vmatprep.subr.mxu0 %v686
        %2939 = vmatpush2.msra.mxu0 %v685
        %2940 = vmatprep.subr.mxu0 %v682
        %2941 = vmatpush2.msra.mxu0 %v681
        %2942 = vmatprep.subr.mxu0 %v678
        %2943 = vmatpush2.msra.mxu0 %v677
        %2944 = vmatprep.subr.mxu0 %v674
        %2945 = vmatpush2.msra.mxu0 %v673
        %2946 = vmatprep.mubr.f32.mxu0 %v2879
        %2947 = vmatmul.mubr.f32.gmra.mxu0 %v2878
        %v2948 = vpop.f32.mrf.mxu0
        %v2949 = vadd.f32 %v742, %v2948
        %v2950 = vpop.f32.mrf.mxu0
        %v2951 = vadd.f32 %v746, %v2950
        %2952 = vdwg.mxu0
        %2953 = vmatprep.subr.mxu0 %v672
        %2954 = vmatpush1.msra.mxu0 %v671
        %2955 = vmatprep.subr.mxu0 %v668
        %2956 = vmatpush1.msra.mxu0 %v667
        %2957 = vmatprep.subr.mxu0 %v664
        %2958 = vmatpush1.msra.mxu0 %v663
        %2959 = vmatprep.subr.mxu0 %v660
        %2960 = vmatpush1.msra.mxu0 %v659
        %2961 = vmatprep.subr.mxu0 %v656
        %2962 = vmatpush1.msra.mxu0 %v655
        %2963 = vmatprep.subr.mxu0 %v652
        %2964 = vmatpush1.msra.mxu0 %v651
        %2965 = vmatprep.subr.mxu0 %v648
        %2966 = vmatpush1.msra.mxu0 %v647
        %2967 = vmatprep.subr.mxu0 %v644
        %2968 = vmatpush1.msra.mxu0 %v643
        %2969 = vmatprep.subr.mxu0 %v640
        %2970 = vmatpush1.msra.mxu0 %v639
        %2971 = vmatprep.subr.mxu0 %v636
        %2972 = vmatpush1.msra.mxu0 %v635
        %2973 = vmatprep.subr.mxu0 %v632
        %2974 = vmatpush1.msra.mxu0 %v631
        %2975 = vmatprep.subr.mxu0 %v628
        %2976 = vmatpush1.msra.mxu0 %v627
        %2977 = vmatprep.subr.mxu0 %v624
        %2978 = vmatpush1.msra.mxu0 %v623
        %2979 = vmatprep.subr.mxu0 %v620
        %2980 = vmatpush1.msra.mxu0 %v619
        %2981 = vmatprep.subr.mxu0 %v616
        %2982 = vmatpush1.msra.mxu0 %v615
        %2983 = vmatprep.subr.mxu0 %v612
        %2984 = vmatpush1.msra.mxu0 %v611
        %2985 = vmatprep.subr.mxu0 %v736
        %2986 = vmatpush2.msra.mxu0 %v735
        %2987 = vmatprep.subr.mxu0 %v732
        %2988 = vmatpush2.msra.mxu0 %v731
        %2989 = vmatprep.subr.mxu0 %v728
        %2990 = vmatpush2.msra.mxu0 %v727
        %2991 = vmatprep.subr.mxu0 %v724
        %2992 = vmatpush2.msra.mxu0 %v723
        %2993 = vmatprep.subr.mxu0 %v720
        %2994 = vmatpush2.msra.mxu0 %v719
        %2995 = vmatprep.subr.mxu0 %v716
        %2996 = vmatpush2.msra.mxu0 %v715
        %2997 = vmatprep.subr.mxu0 %v712
        %2998 = vmatpush2.msra.mxu0 %v711
        %2999 = vmatprep.subr.mxu0 %v708
        %3000 = vmatpush2.msra.mxu0 %v707
        %3001 = vmatprep.subr.mxu0 %v704
        %3002 = vmatpush2.msra.mxu0 %v703
        %3003 = vmatprep.subr.mxu0 %v700
        %3004 = vmatpush2.msra.mxu0 %v699
        %3005 = vmatprep.subr.mxu0 %v696
        %3006 = vmatpush2.msra.mxu0 %v695
        %3007 = vmatprep.subr.mxu0 %v692
        %3008 = vmatpush2.msra.mxu0 %v691
        %3009 = vmatprep.subr.mxu0 %v688
        %3010 = vmatpush2.msra.mxu0 %v687
        %3011 = vmatprep.subr.mxu0 %v684
        %3012 = vmatpush2.msra.mxu0 %v683
        %3013 = vmatprep.subr.mxu0 %v680
        %3014 = vmatpush2.msra.mxu0 %v679
        %3015 = vmatprep.subr.mxu0 %v676
        %3016 = vmatpush2.msra.mxu0 %v675
        %3017 = vmatprep.mubr.f32.mxu0 %v2879
        %3018 = vmatmul.mubr.f32.gmra.mxu0 %v2878
        %v3019 = vpop.f32.mrf.mxu0
        %v3020 = vadd.f32 %v750, %v3019
        %v3021 = vpop.f32.mrf.mxu0
        %v3022 = vadd.f32 %v754, %v3021
        %3023 = vdwg.mxu0
        %v3024 = vxor.u32 %v2949, 2147483648
        %v3025 = vxor.u32 %v2951, 2147483648
        %v3026 = vmul.f32 %v3024, 1.442695
        %v3027 = vpow.pop %v3026
        %v3028 = vmul.f32 %v3025, 1.442695
        %v3029 = vpow.pop %v3028
        %v3030 = vadd.f32 %v3027, 1.0
        %v3031 = vadd.f32 %v3029, 1.0
        %v3032 = vrcp.pop %v3030
        %v3033 = vmul.f32 1.0, %v3032
        %v3034 = vrcp.pop %v3031
        %v3035 = vmul.f32 1.0, %v3034
        %v3036 = vtanh.pop %v3020
        %v3037 = vxor.u32 %v3022, 2147483648
        %v3038 = vmul.f32 %v3037, 1.442695
        %v3039 = vpow.pop %v3038
        %v3040 = vadd.f32 %v3039, 1.0
        %v3041 = vrcp.pop %v3040
        %v3042 = vmul.f32 1.0, %v3041
        %v3043 = vmul.f32 %v3035, %v2640
        %v3044 = vmul.f32 %v3033, %v3036
        %v3045 = vadd.f32 %v3043, %v3044
        %v3046 = vtanh.pop %v3045
        %v3047 = vmul.f32 %v3042, %v3046
        %v3048 = vrot.slane %v2869, 4
        %v3049 = vrot.slane %v2870, 3
        %v3050 = vsel %vm1268, %v3049, %v3048
        %3052 = vmatprep.subr.mxu0 %v605
        %3053 = vmatpush1.msra.mxu0 %v604
        %3054 = vmatprep.subr.mxu0 %v601
        %3055 = vmatpush1.msra.mxu0 %v600
        %3056 = vmatprep.subr.mxu0 %v597
        %3057 = vmatpush1.msra.mxu0 %v596
        %3058 = vmatprep.subr.mxu0 %v593
        %3059 = vmatpush1.msra.mxu0 %v592
        %3060 = vmatprep.subr.mxu0 %v589
        %3061 = vmatpush1.msra.mxu0 %v588
        %3062 = vmatprep.subr.mxu0 %v585
        %3063 = vmatpush1.msra.mxu0 %v584
        %3064 = vmatprep.subr.mxu0 %v581
        %3065 = vmatpush1.msra.mxu0 %v580
        %3066 = vmatprep.subr.mxu0 %v577
        %3067 = vmatpush1.msra.mxu0 %v576
        %3068 = vmatprep.subr.mxu0 %v573
        %3069 = vmatpush1.msra.mxu0 %v572
        %3070 = vmatprep.subr.mxu0 %v569
        %3071 = vmatpush1.msra.mxu0 %v568
        %3072 = vmatprep.subr.mxu0 %v565
        %3073 = vmatpush1.msra.mxu0 %v564
        %3074 = vmatprep.subr.mxu0 %v561
        %3075 = vmatpush1.msra.mxu0 %v560
        %3076 = vmatprep.subr.mxu0 %v557
        %3077 = vmatpush1.msra.mxu0 %v556
        %3078 = vmatprep.subr.mxu0 %v553
        %3079 = vmatpush1.msra.mxu0 %v552
        %3080 = vmatprep.subr.mxu0 %v549
        %3081 = vmatpush1.msra.mxu0 %v548
        %3082 = vmatprep.subr.mxu0 %v545
        %3083 = vmatpush1.msra.mxu0 %v544
        %3084 = vmatprep.subr.mxu0 0.0
        %3085 = vmatpush2.msra.mxu0 0.0
        %3086 = vmatprep.subr.mxu0 0.0
        %3087 = vmatpush2.msra.mxu0 0.0
        %3088 = vmatprep.subr.mxu0 0.0
        %3089 = vmatpush2.msra.mxu0 0.0
        %3090 = vmatprep.subr.mxu0 0.0
        %3091 = vmatpush2.msra.mxu0 0.0
        %3092 = vmatprep.subr.mxu0 0.0
        %3093 = vmatpush2.msra.mxu0 0.0
        %3094 = vmatprep.subr.mxu0 0.0
        %3095 = vmatpush2.msra.mxu0 0.0
        %3096 = vmatprep.subr.mxu0 0.0
        %3097 = vmatpush2.msra.mxu0 0.0
        %3098 = vmatprep.subr.mxu0 0.0
        %3099 = vmatpush2.msra.mxu0 0.0
        %3100 = vmatprep.subr.mxu0 0.0
        %3101 = vmatpush2.msra.mxu0 0.0
        %3102 = vmatprep.subr.mxu0 0.0
        %3103 = vmatpush2.msra.mxu0 0.0
        %3104 = vmatprep.subr.mxu0 0.0
        %3105 = vmatpush2.msra.mxu0 0.0
        %3106 = vmatprep.subr.mxu0 0.0
        %3107 = vmatpush2.msra.mxu0 0.0
        %3108 = vmatprep.subr.mxu0 0.0
        %3109 = vmatpush2.msra.mxu0 0.0
        %3110 = vmatprep.subr.mxu0 0.0
        %3111 = vmatpush2.msra.mxu0 0.0
        %3112 = vmatprep.subr.mxu0 0.0
        %3113 = vmatpush2.msra.mxu0 0.0
        %3114 = vmatprep.subr.mxu0 0.0
        %3115 = vmatpush2.msra.mxu0 0.0
        %3116 = vmatprep.mubr.f32.mxu0 0.0
        %3117 = vmatmul.mubr.f32.gmra.mxu0 %v3050
        %v3118 = vpop.f32.mrf.mxu0
        %v3119 = vadd.f32 0.0, %v3118
        %v3120 = vpop.f32.mrf.mxu0
        %v3121 = vadd.f32 0.0, %v3120
        %3122 = vdwg.mxu0
        %3123 = vmatprep.subr.mxu0 %v607
        %3124 = vmatpush1.msra.mxu0 %v606
        %3125 = vmatprep.subr.mxu0 %v603
        %3126 = vmatpush1.msra.mxu0 %v602
        %3127 = vmatprep.subr.mxu0 %v599
        %3128 = vmatpush1.msra.mxu0 %v598
        %3129 = vmatprep.subr.mxu0 %v595
        %3130 = vmatpush1.msra.mxu0 %v594
        %3131 = vmatprep.subr.mxu0 %v591
        %3132 = vmatpush1.msra.mxu0 %v590
        %3133 = vmatprep.subr.mxu0 %v587
        %3134 = vmatpush1.msra.mxu0 %v586
        %3135 = vmatprep.subr.mxu0 %v583
        %3136 = vmatpush1.msra.mxu0 %v582
        %3137 = vmatprep.subr.mxu0 %v579
        %3138 = vmatpush1.msra.mxu0 %v578
        %3139 = vmatprep.subr.mxu0 %v575
        %3140 = vmatpush1.msra.mxu0 %v574
        %3141 = vmatprep.subr.mxu0 %v571
        %3142 = vmatpush1.msra.mxu0 %v570
        %3143 = vmatprep.subr.mxu0 %v567
        %3144 = vmatpush1.msra.mxu0 %v566
        %3145 = vmatprep.subr.mxu0 %v563
        %3146 = vmatpush1.msra.mxu0 %v562
        %3147 = vmatprep.subr.mxu0 %v559
        %3148 = vmatpush1.msra.mxu0 %v558
        %3149 = vmatprep.subr.mxu0 %v555
        %3150 = vmatpush1.msra.mxu0 %v554
        %3151 = vmatprep.subr.mxu0 %v551
        %3152 = vmatpush1.msra.mxu0 %v550
        %3153 = vmatprep.subr.mxu0 %v547
        %3154 = vmatpush1.msra.mxu0 %v546
        %3155 = vmatprep.subr.mxu0 0.0
        %3156 = vmatpush2.msra.mxu0 0.0
        %3157 = vmatprep.subr.mxu0 0.0
        %3158 = vmatpush2.msra.mxu0 0.0
        %3159 = vmatprep.subr.mxu0 0.0
        %3160 = vmatpush2.msra.mxu0 0.0
        %3161 = vmatprep.subr.mxu0 0.0
        %3162 = vmatpush2.msra.mxu0 0.0
        %3163 = vmatprep.subr.mxu0 0.0
        %3164 = vmatpush2.msra.mxu0 0.0
        %3165 = vmatprep.subr.mxu0 0.0
        %3166 = vmatpush2.msra.mxu0 0.0
        %3167 = vmatprep.subr.mxu0 0.0
        %3168 = vmatpush2.msra.mxu0 0.0
        %3169 = vmatprep.subr.mxu0 0.0
        %3170 = vmatpush2.msra.mxu0 0.0
        %3171 = vmatprep.subr.mxu0 0.0
        %3172 = vmatpush2.msra.mxu0 0.0
        %3173 = vmatprep.subr.mxu0 0.0
        %3174 = vmatpush2.msra.mxu0 0.0
        %3175 = vmatprep.subr.mxu0 0.0
        %3176 = vmatpush2.msra.mxu0 0.0
        %3177 = vmatprep.subr.mxu0 0.0
        %3178 = vmatpush2.msra.mxu0 0.0
        %3179 = vmatprep.subr.mxu0 0.0
        %3180 = vmatpush2.msra.mxu0 0.0
        %3181 = vmatprep.subr.mxu0 0.0
        %3182 = vmatpush2.msra.mxu0 0.0
        %3183 = vmatprep.subr.mxu0 0.0
        %3184 = vmatpush2.msra.mxu0 0.0
        %3185 = vmatprep.subr.mxu0 0.0
        %3186 = vmatpush2.msra.mxu0 0.0
        %3187 = vmatprep.mubr.f32.mxu0 0.0
        %3188 = vmatmul.mubr.f32.gmra.mxu0 %v3050
        %v3189 = vpop.f32.mrf.mxu0
        %v3190 = vadd.f32 0.0, %v3189
        %v3191 = vpop.f32.mrf.mxu0
        %v3192 = vadd.f32 0.0, %v3191
        %3193 = vdwg.mxu0
        %v3198 = vrot.slane %v3119, 3
        %v3199 = vrot.slane %v3121, 3
        %v3200 = vrot.slane %v3190, 3
        %v3201 = vrot.slane %v3192, 3
        %v3202 = vrot.slane %v3119, 4
        %v3203 = vrot.slane %v3121, 4
        %v3204 = vrot.slane %v3190, 4
        %v3205 = vrot.slane %v3192, 4
        %v3214 = vadd.f32 %v1033, %v3198
        %v3215 = vadd.f32 %v1034, %v3199
        %v3216 = vadd.f32 %v1035, %v3200
        %v3217 = vadd.f32 %v1036, %v3201
        %v3218 = vadd.f32 %v1037, %v3202
        %v3219 = vadd.f32 %v1038, %v3203
        %v3220 = vadd.f32 %v1039, %v3204
        %v3221 = vadd.f32 %v1040, %v3205
        %v3222 = vxor.u32 %v3214, 2147483648
        %v3223 = vxor.u32 %v3215, 2147483648
        %v3224 = vxor.u32 %v3218, 2147483648
        %v3225 = vxor.u32 %v3219, 2147483648
        %v3226 = vmul.f32 %v3222, 1.442695
        %v3227 = vpow.pop %v3226
        %v3228 = vmul.f32 %v3223, 1.442695
        %v3229 = vpow.pop %v3228
        %v3230 = vmul.f32 %v3224, 1.442695
        %v3231 = vpow.pop %v3230
        %v3232 = vmul.f32 %v3225, 1.442695
        %v3233 = vpow.pop %v3232
        %v3234 = vadd.f32 %v3227, 1.0
        %v3235 = vadd.f32 %v3229, 1.0
        %v3236 = vadd.f32 %v3231, 1.0
        %v3237 = vadd.f32 %v3233, 1.0
        %v3238 = vrcp.pop %v3234
        %v3239 = vmul.f32 1.0, %v3238
        %v3240 = vrcp.pop %v3235
        %v3241 = vmul.f32 1.0, %v3240
        %v3242 = vrcp.pop %v3236
        %v3243 = vmul.f32 1.0, %v3242
        %v3244 = vrcp.pop %v3237
        %v3245 = vmul.f32 1.0, %v3244
        %v3246 = vtanh.pop %v3216
        %v3247 = vtanh.pop %v3220
        %v3248 = vxor.u32 %v3217, 2147483648
        %v3249 = vxor.u32 %v3221, 2147483648
        %v3250 = vmul.f32 %v3248, 1.442695
        %v3251 = vpow.pop %v3250
        %v3252 = vmul.f32 %v3249, 1.442695
        %v3253 = vpow.pop %v3252
        %v3254 = vadd.f32 %v3251, 1.0
        %v3255 = vadd.f32 %v3253, 1.0
        %v3256 = vrcp.pop %v3254
        %v3257 = vmul.f32 1.0, %v3256
        %v3258 = vrcp.pop %v3255
        %v3259 = vmul.f32 1.0, %v3258
        %v3262 = vrot.slane %v2865, 7
        %v3263 = vrot.slane %v2866, 7
        %v3266 = vmul.f32 %v3241, %v3262
        %v3267 = vmul.f32 %v3245, %v3263
        %v3268 = vmul.f32 %v3239, %v3246
        %v3269 = vmul.f32 %v3243, %v3247
        %v3270 = vadd.f32 %v3266, %v3268
        %v3271 = vadd.f32 %v3267, %v3269
        %v3272 = vtanh.pop %v3270
        %v3273 = vtanh.pop %v3271
        %v3274 = vmul.f32 %v3257, %v3272
        %v3275 = vmul.f32 %v3259, %v3273
        %v3278 = vrot.slane %v3275, 7
        %vm3279 = vcmask 1046534
        %v3280 = vsel %vm3279, %v3278, %v3274
        %v3282 = vrot.slane %v3047, 3
        %v3283 = vrot.slane %v3280, 5
        %v3284 = vrot.slane %v3282, 5
        %3287 = vmatprep.subr.mxu0 %v670
        %3288 = vmatpush1.msra.mxu0 %v669
        %3289 = vmatprep.subr.mxu0 %v666
        %3290 = vmatpush1.msra.mxu0 %v665
        %3291 = vmatprep.subr.mxu0 %v662
        %3292 = vmatpush1.msra.mxu0 %v661
        %3293 = vmatprep.subr.mxu0 %v658
        %3294 = vmatpush1.msra.mxu0 %v657
        %3295 = vmatprep.subr.mxu0 %v654
        %3296 = vmatpush1.msra.mxu0 %v653
        %3297 = vmatprep.subr.mxu0 %v650
        %3298 = vmatpush1.msra.mxu0 %v649
        %3299 = vmatprep.subr.mxu0 %v646
        %3300 = vmatpush1.msra.mxu0 %v645
        %3301 = vmatprep.subr.mxu0 %v642
        %3302 = vmatpush1.msra.mxu0 %v641
        %3303 = vmatprep.subr.mxu0 %v638
        %3304 = vmatpush1.msra.mxu0 %v637
        %3305 = vmatprep.subr.mxu0 %v634
        %3306 = vmatpush1.msra.mxu0 %v633
        %3307 = vmatprep.subr.mxu0 %v630
        %3308 = vmatpush1.msra.mxu0 %v629
        %3309 = vmatprep.subr.mxu0 %v626
        %3310 = vmatpush1.msra.mxu0 %v625
        %3311 = vmatprep.subr.mxu0 %v622
        %3312 = vmatpush1.msra.mxu0 %v621
        %3313 = vmatprep.subr.mxu0 %v618
        %3314 = vmatpush1.msra.mxu0 %v617
        %3315 = vmatprep.subr.mxu0 %v614
        %3316 = vmatpush1.msra.mxu0 %v613
        %3317 = vmatprep.subr.mxu0 %v610
        %3318 = vmatpush1.msra.mxu0 %v609
        %3319 = vmatprep.subr.mxu0 %v734
        %3320 = vmatpush2.msra.mxu0 %v733
        %3321 = vmatprep.subr.mxu0 %v730
        %3322 = vmatpush2.msra.mxu0 %v729
        %3323 = vmatprep.subr.mxu0 %v726
        %3324 = vmatpush2.msra.mxu0 %v725
        %3325 = vmatprep.subr.mxu0 %v722
        %3326 = vmatpush2.msra.mxu0 %v721
        %3327 = vmatprep.subr.mxu0 %v718
        %3328 = vmatpush2.msra.mxu0 %v717
        %3329 = vmatprep.subr.mxu0 %v714
        %3330 = vmatpush2.msra.mxu0 %v713
        %3331 = vmatprep.subr.mxu0 %v710
        %3332 = vmatpush2.msra.mxu0 %v709
        %3333 = vmatprep.subr.mxu0 %v706
        %3334 = vmatpush2.msra.mxu0 %v705
        %3335 = vmatprep.subr.mxu0 %v702
        %3336 = vmatpush2.msra.mxu0 %v701
        %3337 = vmatprep.subr.mxu0 %v698
        %3338 = vmatpush2.msra.mxu0 %v697
        %3339 = vmatprep.subr.mxu0 %v694
        %3340 = vmatpush2.msra.mxu0 %v693
        %3341 = vmatprep.subr.mxu0 %v690
        %3342 = vmatpush2.msra.mxu0 %v689
        %3343 = vmatprep.subr.mxu0 %v686
        %3344 = vmatpush2.msra.mxu0 %v685
        %3345 = vmatprep.subr.mxu0 %v682
        %3346 = vmatpush2.msra.mxu0 %v681
        %3347 = vmatprep.subr.mxu0 %v678
        %3348 = vmatpush2.msra.mxu0 %v677
        %3349 = vmatprep.subr.mxu0 %v674
        %3350 = vmatpush2.msra.mxu0 %v673
        %3351 = vmatprep.mubr.f32.mxu0 %v3284
        %3352 = vmatmul.mubr.f32.gmra.mxu0 %v3283
        %v3353 = vpop.f32.mrf.mxu0
        %v3354 = vadd.f32 %v742, %v3353
        %v3355 = vpop.f32.mrf.mxu0
        %v3356 = vadd.f32 %v746, %v3355
        %3357 = vdwg.mxu0
        %3358 = vmatprep.subr.mxu0 %v672
        %3359 = vmatpush1.msra.mxu0 %v671
        %3360 = vmatprep.subr.mxu0 %v668
        %3361 = vmatpush1.msra.mxu0 %v667
        %3362 = vmatprep.subr.mxu0 %v664
        %3363 = vmatpush1.msra.mxu0 %v663
        %3364 = vmatprep.subr.mxu0 %v660
        %3365 = vmatpush1.msra.mxu0 %v659
        %3366 = vmatprep.subr.mxu0 %v656
        %3367 = vmatpush1.msra.mxu0 %v655
        %3368 = vmatprep.subr.mxu0 %v652
        %3369 = vmatpush1.msra.mxu0 %v651
        %3370 = vmatprep.subr.mxu0 %v648
        %3371 = vmatpush1.msra.mxu0 %v647
        %3372 = vmatprep.subr.mxu0 %v644
        %3373 = vmatpush1.msra.mxu0 %v643
        %3374 = vmatprep.subr.mxu0 %v640
        %3375 = vmatpush1.msra.mxu0 %v639
        %3376 = vmatprep.subr.mxu0 %v636
        %3377 = vmatpush1.msra.mxu0 %v635
        %3378 = vmatprep.subr.mxu0 %v632
        %3379 = vmatpush1.msra.mxu0 %v631
        %3380 = vmatprep.subr.mxu0 %v628
        %3381 = vmatpush1.msra.mxu0 %v627
        %3382 = vmatprep.subr.mxu0 %v624
        %3383 = vmatpush1.msra.mxu0 %v623
        %3384 = vmatprep.subr.mxu0 %v620
        %3385 = vmatpush1.msra.mxu0 %v619
        %3386 = vmatprep.subr.mxu0 %v616
        %3387 = vmatpush1.msra.mxu0 %v615
        %3388 = vmatprep.subr.mxu0 %v612
        %3389 = vmatpush1.msra.mxu0 %v611
        %3390 = vmatprep.subr.mxu0 %v736
        %3391 = vmatpush2.msra.mxu0 %v735
        %3392 = vmatprep.subr.mxu0 %v732
        %3393 = vmatpush2.msra.mxu0 %v731
        %3394 = vmatprep.subr.mxu0 %v728
        %3395 = vmatpush2.msra.mxu0 %v727
        %3396 = vmatprep.subr.mxu0 %v724
        %3397 = vmatpush2.msra.mxu0 %v723
        %3398 = vmatprep.subr.mxu0 %v720
        %3399 = vmatpush2.msra.mxu0 %v719
        %3400 = vmatprep.subr.mxu0 %v716
        %3401 = vmatpush2.msra.mxu0 %v715
        %3402 = vmatprep.subr.mxu0 %v712
        %3403 = vmatpush2.msra.mxu0 %v711
        %3404 = vmatprep.subr.mxu0 %v708
        %3405 = vmatpush2.msra.mxu0 %v707
        %3406 = vmatprep.subr.mxu0 %v704
        %3407 = vmatpush2.msra.mxu0 %v703
        %3408 = vmatprep.subr.mxu0 %v700
        %3409 = vmatpush2.msra.mxu0 %v699
        %3410 = vmatprep.subr.mxu0 %v696
        %3411 = vmatpush2.msra.mxu0 %v695
        %3412 = vmatprep.subr.mxu0 %v692
        %3413 = vmatpush2.msra.mxu0 %v691
        %3414 = vmatprep.subr.mxu0 %v688
        %3415 = vmatpush2.msra.mxu0 %v687
        %3416 = vmatprep.subr.mxu0 %v684
        %3417 = vmatpush2.msra.mxu0 %v683
        %3418 = vmatprep.subr.mxu0 %v680
        %3419 = vmatpush2.msra.mxu0 %v679
        %3420 = vmatprep.subr.mxu0 %v676
        %3421 = vmatpush2.msra.mxu0 %v675
        %3422 = vmatprep.mubr.f32.mxu0 %v3284
        %3423 = vmatmul.mubr.f32.gmra.mxu0 %v3283
        %v3424 = vpop.f32.mrf.mxu0
        %v3425 = vadd.f32 %v750, %v3424
        %v3426 = vpop.f32.mrf.mxu0
        %v3427 = vadd.f32 %v754, %v3426
        %3428 = vdwg.mxu0
        %v3429 = vxor.u32 %v3354, 2147483648
        %v3430 = vxor.u32 %v3356, 2147483648
        %v3431 = vmul.f32 %v3429, 1.442695
        %v3432 = vpow.pop %v3431
        %v3433 = vmul.f32 %v3430, 1.442695
        %v3434 = vpow.pop %v3433
        %v3435 = vadd.f32 %v3432, 1.0
        %v3436 = vadd.f32 %v3434, 1.0
        %v3437 = vrcp.pop %v3435
        %v3438 = vmul.f32 1.0, %v3437
        %v3439 = vrcp.pop %v3436
        %v3440 = vmul.f32 1.0, %v3439
        %v3441 = vtanh.pop %v3425
        %v3442 = vxor.u32 %v3427, 2147483648
        %v3443 = vmul.f32 %v3442, 1.442695
        %v3444 = vpow.pop %v3443
        %v3445 = vadd.f32 %v3444, 1.0
        %v3446 = vrcp.pop %v3445
        %v3447 = vmul.f32 1.0, %v3446
        %v3448 = vmul.f32 %v3440, %v3045
        %v3449 = vmul.f32 %v3438, %v3441
        %v3450 = vadd.f32 %v3448, %v3449
        %v3451 = vtanh.pop %v3450
        %v3452 = vmul.f32 %v3447, %v3451
        %v3453 = vrot.slane %v3274, 5
        %v3454 = vrot.slane %v3275, 4
        %v3455 = vsel %vm1268, %v3454, %v3453
        %3457 = vmatprep.subr.mxu0 %v605
        %3458 = vmatpush1.msra.mxu0 %v604
        %3459 = vmatprep.subr.mxu0 %v601
        %3460 = vmatpush1.msra.mxu0 %v600
        %3461 = vmatprep.subr.mxu0 %v597
        %3462 = vmatpush1.msra.mxu0 %v596
        %3463 = vmatprep.subr.mxu0 %v593
        %3464 = vmatpush1.msra.mxu0 %v592
        %3465 = vmatprep.subr.mxu0 %v589
        %3466 = vmatpush1.msra.mxu0 %v588
        %3467 = vmatprep.subr.mxu0 %v585
        %3468 = vmatpush1.msra.mxu0 %v584
        %3469 = vmatprep.subr.mxu0 %v581
        %3470 = vmatpush1.msra.mxu0 %v580
        %3471 = vmatprep.subr.mxu0 %v577
        %3472 = vmatpush1.msra.mxu0 %v576
        %3473 = vmatprep.subr.mxu0 %v573
        %3474 = vmatpush1.msra.mxu0 %v572
        %3475 = vmatprep.subr.mxu0 %v569
        %3476 = vmatpush1.msra.mxu0 %v568
        %3477 = vmatprep.subr.mxu0 %v565
        %3478 = vmatpush1.msra.mxu0 %v564
        %3479 = vmatprep.subr.mxu0 %v561
        %3480 = vmatpush1.msra.mxu0 %v560
        %3481 = vmatprep.subr.mxu0 %v557
        %3482 = vmatpush1.msra.mxu0 %v556
        %3483 = vmatprep.subr.mxu0 %v553
        %3484 = vmatpush1.msra.mxu0 %v552
        %3485 = vmatprep.subr.mxu0 %v549
        %3486 = vmatpush1.msra.mxu0 %v548
        %3487 = vmatprep.subr.mxu0 %v545
        %3488 = vmatpush1.msra.mxu0 %v544
        %3489 = vmatprep.subr.mxu0 0.0
        %3490 = vmatpush2.msra.mxu0 0.0
        %3491 = vmatprep.subr.mxu0 0.0
        %3492 = vmatpush2.msra.mxu0 0.0
        %3493 = vmatprep.subr.mxu0 0.0
        %3494 = vmatpush2.msra.mxu0 0.0
        %3495 = vmatprep.subr.mxu0 0.0
        %3496 = vmatpush2.msra.mxu0 0.0
        %3497 = vmatprep.subr.mxu0 0.0
        %3498 = vmatpush2.msra.mxu0 0.0
        %3499 = vmatprep.subr.mxu0 0.0
        %3500 = vmatpush2.msra.mxu0 0.0
        %3501 = vmatprep.subr.mxu0 0.0
        %3502 = vmatpush2.msra.mxu0 0.0
        %3503 = vmatprep.subr.mxu0 0.0
        %3504 = vmatpush2.msra.mxu0 0.0
        %3505 = vmatprep.subr.mxu0 0.0
        %3506 = vmatpush2.msra.mxu0 0.0
        %3507 = vmatprep.subr.mxu0 0.0
        %3508 = vmatpush2.msra.mxu0 0.0
        %3509 = vmatprep.subr.mxu0 0.0
        %3510 = vmatpush2.msra.mxu0 0.0
        %3511 = vmatprep.subr.mxu0 0.0
        %3512 = vmatpush2.msra.mxu0 0.0
        %3513 = vmatprep.subr.mxu0 0.0
        %3514 = vmatpush2.msra.mxu0 0.0
        %3515 = vmatprep.subr.mxu0 0.0
        %3516 = vmatpush2.msra.mxu0 0.0
        %3517 = vmatprep.subr.mxu0 0.0
        %3518 = vmatpush2.msra.mxu0 0.0
        %3519 = vmatprep.subr.mxu0 0.0
        %3520 = vmatpush2.msra.mxu0 0.0
        %3521 = vmatprep.mubr.f32.mxu0 0.0
        %3522 = vmatmul.mubr.f32.gmra.mxu0 %v3455
        %v3523 = vpop.f32.mrf.mxu0
        %v3524 = vadd.f32 0.0, %v3523
        %v3525 = vpop.f32.mrf.mxu0
        %v3526 = vadd.f32 0.0, %v3525
        %3527 = vdwg.mxu0
        %3528 = vmatprep.subr.mxu0 %v607
        %3529 = vmatpush1.msra.mxu0 %v606
        %3530 = vmatprep.subr.mxu0 %v603
        %3531 = vmatpush1.msra.mxu0 %v602
        %3532 = vmatprep.subr.mxu0 %v599
        %3533 = vmatpush1.msra.mxu0 %v598
        %3534 = vmatprep.subr.mxu0 %v595
        %3535 = vmatpush1.msra.mxu0 %v594
        %3536 = vmatprep.subr.mxu0 %v591
        %3537 = vmatpush1.msra.mxu0 %v590
        %3538 = vmatprep.subr.mxu0 %v587
        %3539 = vmatpush1.msra.mxu0 %v586
        %3540 = vmatprep.subr.mxu0 %v583
        %3541 = vmatpush1.msra.mxu0 %v582
        %3542 = vmatprep.subr.mxu0 %v579
        %3543 = vmatpush1.msra.mxu0 %v578
        %3544 = vmatprep.subr.mxu0 %v575
        %3545 = vmatpush1.msra.mxu0 %v574
        %3546 = vmatprep.subr.mxu0 %v571
        %3547 = vmatpush1.msra.mxu0 %v570
        %3548 = vmatprep.subr.mxu0 %v567
        %3549 = vmatpush1.msra.mxu0 %v566
        %3550 = vmatprep.subr.mxu0 %v563
        %3551 = vmatpush1.msra.mxu0 %v562
        %3552 = vmatprep.subr.mxu0 %v559
        %3553 = vmatpush1.msra.mxu0 %v558
        %3554 = vmatprep.subr.mxu0 %v555
        %3555 = vmatpush1.msra.mxu0 %v554
        %3556 = vmatprep.subr.mxu0 %v551
        %3557 = vmatpush1.msra.mxu0 %v550
        %3558 = vmatprep.subr.mxu0 %v547
        %3559 = vmatpush1.msra.mxu0 %v546
        %3560 = vmatprep.subr.mxu0 0.0
        %3561 = vmatpush2.msra.mxu0 0.0
        %3562 = vmatprep.subr.mxu0 0.0
        %3563 = vmatpush2.msra.mxu0 0.0
        %3564 = vmatprep.subr.mxu0 0.0
        %3565 = vmatpush2.msra.mxu0 0.0
        %3566 = vmatprep.subr.mxu0 0.0
        %3567 = vmatpush2.msra.mxu0 0.0
        %3568 = vmatprep.subr.mxu0 0.0
        %3569 = vmatpush2.msra.mxu0 0.0
        %3570 = vmatprep.subr.mxu0 0.0
        %3571 = vmatpush2.msra.mxu0 0.0
        %3572 = vmatprep.subr.mxu0 0.0
        %3573 = vmatpush2.msra.mxu0 0.0
        %3574 = vmatprep.subr.mxu0 0.0
        %3575 = vmatpush2.msra.mxu0 0.0
        %3576 = vmatprep.subr.mxu0 0.0
        %3577 = vmatpush2.msra.mxu0 0.0
        %3578 = vmatprep.subr.mxu0 0.0
        %3579 = vmatpush2.msra.mxu0 0.0
        %3580 = vmatprep.subr.mxu0 0.0
        %3581 = vmatpush2.msra.mxu0 0.0
        %3582 = vmatprep.subr.mxu0 0.0
        %3583 = vmatpush2.msra.mxu0 0.0
        %3584 = vmatprep.subr.mxu0 0.0
        %3585 = vmatpush2.msra.mxu0 0.0
        %3586 = vmatprep.subr.mxu0 0.0
        %3587 = vmatpush2.msra.mxu0 0.0
        %3588 = vmatprep.subr.mxu0 0.0
        %3589 = vmatpush2.msra.mxu0 0.0
        %3590 = vmatprep.subr.mxu0 0.0
        %3591 = vmatpush2.msra.mxu0 0.0
        %3592 = vmatprep.mubr.f32.mxu0 0.0
        %3593 = vmatmul.mubr.f32.gmra.mxu0 %v3455
        %v3594 = vpop.f32.mrf.mxu0
        %v3595 = vadd.f32 0.0, %v3594
        %v3596 = vpop.f32.mrf.mxu0
        %v3597 = vadd.f32 0.0, %v3596
        %3598 = vdwg.mxu0
        %v3603 = vrot.slane %v3524, 2
        %v3604 = vrot.slane %v3526, 2
        %v3605 = vrot.slane %v3595, 2
        %v3606 = vrot.slane %v3597, 2
        %v3607 = vrot.slane %v3524, 3
        %v3608 = vrot.slane %v3526, 3
        %v3609 = vrot.slane %v3595, 3
        %v3610 = vrot.slane %v3597, 3
        %v3619 = vadd.f32 %v1033, %v3603
        %v3620 = vadd.f32 %v1034, %v3604
        %v3621 = vadd.f32 %v1035, %v3605
        %v3622 = vadd.f32 %v1036, %v3606
        %v3623 = vadd.f32 %v1037, %v3607
        %v3624 = vadd.f32 %v1038, %v3608
        %v3625 = vadd.f32 %v1039, %v3609
        %v3626 = vadd.f32 %v1040, %v3610
        %v3627 = vxor.u32 %v3619, 2147483648
        %v3628 = vxor.u32 %v3620, 2147483648
        %v3629 = vxor.u32 %v3623, 2147483648
        %v3630 = vxor.u32 %v3624, 2147483648
        %v3631 = vmul.f32 %v3627, 1.442695
        %v3632 = vpow.pop %v3631
        %v3633 = vmul.f32 %v3628, 1.442695
        %v3634 = vpow.pop %v3633
        %v3635 = vmul.f32 %v3629, 1.442695
        %v3636 = vpow.pop %v3635
        %v3637 = vmul.f32 %v3630, 1.442695
        %v3638 = vpow.pop %v3637
        %v3639 = vadd.f32 %v3632, 1.0
        %v3640 = vadd.f32 %v3634, 1.0
        %v3641 = vadd.f32 %v3636, 1.0
        %v3642 = vadd.f32 %v3638, 1.0
        %v3643 = vrcp.pop %v3639
        %v3644 = vmul.f32 1.0, %v3643
        %v3645 = vrcp.pop %v3640
        %v3646 = vmul.f32 1.0, %v3645
        %v3647 = vrcp.pop %v3641
        %v3648 = vmul.f32 1.0, %v3647
        %v3649 = vrcp.pop %v3642
        %v3650 = vmul.f32 1.0, %v3649
        %v3651 = vtanh.pop %v3621
        %v3652 = vtanh.pop %v3625
        %v3653 = vxor.u32 %v3622, 2147483648
        %v3654 = vxor.u32 %v3626, 2147483648
        %v3655 = vmul.f32 %v3653, 1.442695
        %v3656 = vpow.pop %v3655
        %v3657 = vmul.f32 %v3654, 1.442695
        %v3658 = vpow.pop %v3657
        %v3659 = vadd.f32 %v3656, 1.0
        %v3660 = vadd.f32 %v3658, 1.0
        %v3661 = vrcp.pop %v3659
        %v3662 = vmul.f32 1.0, %v3661
        %v3663 = vrcp.pop %v3660
        %v3664 = vmul.f32 1.0, %v3663
        %v3667 = vrot.slane %v3270, 7
        %v3668 = vrot.slane %v3271, 7
        %v3671 = vmul.f32 %v3646, %v3667
        %v3672 = vmul.f32 %v3650, %v3668
        %v3673 = vmul.f32 %v3644, %v3651
        %v3674 = vmul.f32 %v3648, %v3652
        %v3675 = vadd.f32 %v3671, %v3673
        %v3676 = vadd.f32 %v3672, %v3674
        %v3677 = vtanh.pop %v3675
        %v3678 = vtanh.pop %v3676
        %v3679 = vmul.f32 %v3662, %v3677
        %v3680 = vmul.f32 %v3664, %v3678
        %v3683 = vrot.slane %v3680, 7
        %vm3684 = vcmask 1047559
        %v3685 = vsel %vm3684, %v3683, %v3679
        %v3687 = vrot.slane %v3452, 2
        %v3688 = vrot.slane %v3685, 6
        %v3689 = vrot.slane %v3687, 6
        %3692 = vmatprep.subr.mxu0 %v670
        %3693 = vmatpush1.msra.mxu0 %v669
        %3694 = vmatprep.subr.mxu0 %v666
        %3695 = vmatpush1.msra.mxu0 %v665
        %3696 = vmatprep.subr.mxu0 %v662
        %3697 = vmatpush1.msra.mxu0 %v661
        %3698 = vmatprep.subr.mxu0 %v658
        %3699 = vmatpush1.msra.mxu0 %v657
        %3700 = vmatprep.subr.mxu0 %v654
        %3701 = vmatpush1.msra.mxu0 %v653
        %3702 = vmatprep.subr.mxu0 %v650
        %3703 = vmatpush1.msra.mxu0 %v649
        %3704 = vmatprep.subr.mxu0 %v646
        %3705 = vmatpush1.msra.mxu0 %v645
        %3706 = vmatprep.subr.mxu0 %v642
        %3707 = vmatpush1.msra.mxu0 %v641
        %3708 = vmatprep.subr.mxu0 %v638
        %3709 = vmatpush1.msra.mxu0 %v637
        %3710 = vmatprep.subr.mxu0 %v634
        %3711 = vmatpush1.msra.mxu0 %v633
        %3712 = vmatprep.subr.mxu0 %v630
        %3713 = vmatpush1.msra.mxu0 %v629
        %3714 = vmatprep.subr.mxu0 %v626
        %3715 = vmatpush1.msra.mxu0 %v625
        %3716 = vmatprep.subr.mxu0 %v622
        %3717 = vmatpush1.msra.mxu0 %v621
        %3718 = vmatprep.subr.mxu0 %v618
        %3719 = vmatpush1.msra.mxu0 %v617
        %3720 = vmatprep.subr.mxu0 %v614
        %3721 = vmatpush1.msra.mxu0 %v613
        %3722 = vmatprep.subr.mxu0 %v610
        %3723 = vmatpush1.msra.mxu0 %v609
        %3724 = vmatprep.subr.mxu0 %v734
        %3725 = vmatpush2.msra.mxu0 %v733
        %3726 = vmatprep.subr.mxu0 %v730
        %3727 = vmatpush2.msra.mxu0 %v729
        %3728 = vmatprep.subr.mxu0 %v726
        %3729 = vmatpush2.msra.mxu0 %v725
        %3730 = vmatprep.subr.mxu0 %v722
        %3731 = vmatpush2.msra.mxu0 %v721
        %3732 = vmatprep.subr.mxu0 %v718
        %3733 = vmatpush2.msra.mxu0 %v717
        %3734 = vmatprep.subr.mxu0 %v714
        %3735 = vmatpush2.msra.mxu0 %v713
        %3736 = vmatprep.subr.mxu0 %v710
        %3737 = vmatpush2.msra.mxu0 %v709
        %3738 = vmatprep.subr.mxu0 %v706
        %3739 = vmatpush2.msra.mxu0 %v705
        %3740 = vmatprep.subr.mxu0 %v702
        %3741 = vmatpush2.msra.mxu0 %v701
        %3742 = vmatprep.subr.mxu0 %v698
        %3743 = vmatpush2.msra.mxu0 %v697
        %3744 = vmatprep.subr.mxu0 %v694
        %3745 = vmatpush2.msra.mxu0 %v693
        %3746 = vmatprep.subr.mxu0 %v690
        %3747 = vmatpush2.msra.mxu0 %v689
        %3748 = vmatprep.subr.mxu0 %v686
        %3749 = vmatpush2.msra.mxu0 %v685
        %3750 = vmatprep.subr.mxu0 %v682
        %3751 = vmatpush2.msra.mxu0 %v681
        %3752 = vmatprep.subr.mxu0 %v678
        %3753 = vmatpush2.msra.mxu0 %v677
        %3754 = vmatprep.subr.mxu0 %v674
        %3755 = vmatpush2.msra.mxu0 %v673
        %3756 = vmatprep.mubr.f32.mxu0 %v3689
        %3757 = vmatmul.mubr.f32.gmra.mxu0 %v3688
        %v3758 = vpop.f32.mrf.mxu0
        %v3759 = vadd.f32 %v742, %v3758
        %v3760 = vpop.f32.mrf.mxu0
        %v3761 = vadd.f32 %v746, %v3760
        %3762 = vdwg.mxu0
        %3763 = vmatprep.subr.mxu0 %v672
        %3764 = vmatpush1.msra.mxu0 %v671
        %3765 = vmatprep.subr.mxu0 %v668
        %3766 = vmatpush1.msra.mxu0 %v667
        %3767 = vmatprep.subr.mxu0 %v664
        %3768 = vmatpush1.msra.mxu0 %v663
        %3769 = vmatprep.subr.mxu0 %v660
        %3770 = vmatpush1.msra.mxu0 %v659
        %3771 = vmatprep.subr.mxu0 %v656
        %3772 = vmatpush1.msra.mxu0 %v655
        %3773 = vmatprep.subr.mxu0 %v652
        %3774 = vmatpush1.msra.mxu0 %v651
        %3775 = vmatprep.subr.mxu0 %v648
        %3776 = vmatpush1.msra.mxu0 %v647
        %3777 = vmatprep.subr.mxu0 %v644
        %3778 = vmatpush1.msra.mxu0 %v643
        %3779 = vmatprep.subr.mxu0 %v640
        %3780 = vmatpush1.msra.mxu0 %v639
        %3781 = vmatprep.subr.mxu0 %v636
        %3782 = vmatpush1.msra.mxu0 %v635
        %3783 = vmatprep.subr.mxu0 %v632
        %3784 = vmatpush1.msra.mxu0 %v631
        %3785 = vmatprep.subr.mxu0 %v628
        %3786 = vmatpush1.msra.mxu0 %v627
        %3787 = vmatprep.subr.mxu0 %v624
        %3788 = vmatpush1.msra.mxu0 %v623
        %3789 = vmatprep.subr.mxu0 %v620
        %3790 = vmatpush1.msra.mxu0 %v619
        %3791 = vmatprep.subr.mxu0 %v616
        %3792 = vmatpush1.msra.mxu0 %v615
        %3793 = vmatprep.subr.mxu0 %v612
        %3794 = vmatpush1.msra.mxu0 %v611
        %3795 = vmatprep.subr.mxu0 %v736
        %3796 = vmatpush2.msra.mxu0 %v735
        %3797 = vmatprep.subr.mxu0 %v732
        %3798 = vmatpush2.msra.mxu0 %v731
        %3799 = vmatprep.subr.mxu0 %v728
        %3800 = vmatpush2.msra.mxu0 %v727
        %3801 = vmatprep.subr.mxu0 %v724
        %3802 = vmatpush2.msra.mxu0 %v723
        %3803 = vmatprep.subr.mxu0 %v720
        %3804 = vmatpush2.msra.mxu0 %v719
        %3805 = vmatprep.subr.mxu0 %v716
        %3806 = vmatpush2.msra.mxu0 %v715
        %3807 = vmatprep.subr.mxu0 %v712
        %3808 = vmatpush2.msra.mxu0 %v711
        %3809 = vmatprep.subr.mxu0 %v708
        %3810 = vmatpush2.msra.mxu0 %v707
        %3811 = vmatprep.subr.mxu0 %v704
        %3812 = vmatpush2.msra.mxu0 %v703
        %3813 = vmatprep.subr.mxu0 %v700
        %3814 = vmatpush2.msra.mxu0 %v699
        %3815 = vmatprep.subr.mxu0 %v696
        %3816 = vmatpush2.msra.mxu0 %v695
        %3817 = vmatprep.subr.mxu0 %v692
        %3818 = vmatpush2.msra.mxu0 %v691
        %3819 = vmatprep.subr.mxu0 %v688
        %3820 = vmatpush2.msra.mxu0 %v687
        %3821 = vmatprep.subr.mxu0 %v684
        %3822 = vmatpush2.msra.mxu0 %v683
        %3823 = vmatprep.subr.mxu0 %v680
        %3824 = vmatpush2.msra.mxu0 %v679
        %3825 = vmatprep.subr.mxu0 %v676
        %3826 = vmatpush2.msra.mxu0 %v675
        %3827 = vmatprep.mubr.f32.mxu0 %v3689
        %3828 = vmatmul.mubr.f32.gmra.mxu0 %v3688
        %v3829 = vpop.f32.mrf.mxu0
        %v3830 = vadd.f32 %v750, %v3829
        %v3831 = vpop.f32.mrf.mxu0
        %v3832 = vadd.f32 %v754, %v3831
        %3833 = vdwg.mxu0
        %v3834 = vxor.u32 %v3759, 2147483648
        %v3835 = vxor.u32 %v3761, 2147483648
        %v3836 = vmul.f32 %v3834, 1.442695
        %v3837 = vpow.pop %v3836
        %v3838 = vmul.f32 %v3835, 1.442695
        %v3839 = vpow.pop %v3838
        %v3840 = vadd.f32 %v3837, 1.0
        %v3841 = vadd.f32 %v3839, 1.0
        %v3842 = vrcp.pop %v3840
        %v3843 = vmul.f32 1.0, %v3842
        %v3844 = vrcp.pop %v3841
        %v3845 = vmul.f32 1.0, %v3844
        %v3846 = vtanh.pop %v3830
        %v3847 = vxor.u32 %v3832, 2147483648
        %v3848 = vmul.f32 %v3847, 1.442695
        %v3849 = vpow.pop %v3848
        %v3850 = vadd.f32 %v3849, 1.0
        %v3851 = vrcp.pop %v3850
        %v3852 = vmul.f32 1.0, %v3851
        %v3853 = vmul.f32 %v3845, %v3450
        %v3854 = vmul.f32 %v3843, %v3846
        %v3855 = vadd.f32 %v3853, %v3854
        %v3856 = vtanh.pop %v3855
        %v3857 = vmul.f32 %v3852, %v3856
        %v3858 = vrot.slane %v3679, 6
        %v3859 = vrot.slane %v3680, 5
        %v3860 = vsel %vm1268, %v3859, %v3858
        %3862 = vmatprep.subr.mxu0 %v605
        %3863 = vmatpush1.msra.mxu0 %v604
        %3864 = vmatprep.subr.mxu0 %v601
        %3865 = vmatpush1.msra.mxu0 %v600
        %3866 = vmatprep.subr.mxu0 %v597
        %3867 = vmatpush1.msra.mxu0 %v596
        %3868 = vmatprep.subr.mxu0 %v593
        %3869 = vmatpush1.msra.mxu0 %v592
        %3870 = vmatprep.subr.mxu0 %v589
        %3871 = vmatpush1.msra.mxu0 %v588
        %3872 = vmatprep.subr.mxu0 %v585
        %3873 = vmatpush1.msra.mxu0 %v584
        %3874 = vmatprep.subr.mxu0 %v581
        %3875 = vmatpush1.msra.mxu0 %v580
        %3876 = vmatprep.subr.mxu0 %v577
        %3877 = vmatpush1.msra.mxu0 %v576
        %3878 = vmatprep.subr.mxu0 %v573
        %3879 = vmatpush1.msra.mxu0 %v572
        %3880 = vmatprep.subr.mxu0 %v569
        %3881 = vmatpush1.msra.mxu0 %v568
        %3882 = vmatprep.subr.mxu0 %v565
        %3883 = vmatpush1.msra.mxu0 %v564
        %3884 = vmatprep.subr.mxu0 %v561
        %3885 = vmatpush1.msra.mxu0 %v560
        %3886 = vmatprep.subr.mxu0 %v557
        %3887 = vmatpush1.msra.mxu0 %v556
        %3888 = vmatprep.subr.mxu0 %v553
        %3889 = vmatpush1.msra.mxu0 %v552
        %3890 = vmatprep.subr.mxu0 %v549
        %3891 = vmatpush1.msra.mxu0 %v548
        %3892 = vmatprep.subr.mxu0 %v545
        %3893 = vmatpush1.msra.mxu0 %v544
        %3894 = vmatprep.subr.mxu0 0.0
        %3895 = vmatpush2.msra.mxu0 0.0
        %3896 = vmatprep.subr.mxu0 0.0
        %3897 = vmatpush2.msra.mxu0 0.0
        %3898 = vmatprep.subr.mxu0 0.0
        %3899 = vmatpush2.msra.mxu0 0.0
        %3900 = vmatprep.subr.mxu0 0.0
        %3901 = vmatpush2.msra.mxu0 0.0
        %3902 = vmatprep.subr.mxu0 0.0
        %3903 = vmatpush2.msra.mxu0 0.0
        %3904 = vmatprep.subr.mxu0 0.0
        %3905 = vmatpush2.msra.mxu0 0.0
        %3906 = vmatprep.subr.mxu0 0.0
        %3907 = vmatpush2.msra.mxu0 0.0
        %3908 = vmatprep.subr.mxu0 0.0
        %3909 = vmatpush2.msra.mxu0 0.0
        %3910 = vmatprep.subr.mxu0 0.0
        %3911 = vmatpush2.msra.mxu0 0.0
        %3912 = vmatprep.subr.mxu0 0.0
        %3913 = vmatpush2.msra.mxu0 0.0
        %3914 = vmatprep.subr.mxu0 0.0
        %3915 = vmatpush2.msra.mxu0 0.0
        %3916 = vmatprep.subr.mxu0 0.0
        %3917 = vmatpush2.msra.mxu0 0.0
        %3918 = vmatprep.subr.mxu0 0.0
        %3919 = vmatpush2.msra.mxu0 0.0
        %3920 = vmatprep.subr.mxu0 0.0
        %3921 = vmatpush2.msra.mxu0 0.0
        %3922 = vmatprep.subr.mxu0 0.0
        %3923 = vmatpush2.msra.mxu0 0.0
        %3924 = vmatprep.subr.mxu0 0.0
        %3925 = vmatpush2.msra.mxu0 0.0
        %3926 = vmatprep.mubr.f32.mxu0 0.0
        %3927 = vmatmul.mubr.f32.gmra.mxu0 %v3860
        %v3928 = vpop.f32.mrf.mxu0
        %v3929 = vadd.f32 0.0, %v3928
        %v3930 = vpop.f32.mrf.mxu0
        %v3931 = vadd.f32 0.0, %v3930
        %3932 = vdwg.mxu0
        %3933 = vmatprep.subr.mxu0 %v607
        %3934 = vmatpush1.msra.mxu0 %v606
        %3935 = vmatprep.subr.mxu0 %v603
        %3936 = vmatpush1.msra.mxu0 %v602
        %3937 = vmatprep.subr.mxu0 %v599
        %3938 = vmatpush1.msra.mxu0 %v598
        %3939 = vmatprep.subr.mxu0 %v595
        %3940 = vmatpush1.msra.mxu0 %v594
        %3941 = vmatprep.subr.mxu0 %v591
        %3942 = vmatpush1.msra.mxu0 %v590
        %3943 = vmatprep.subr.mxu0 %v587
        %3944 = vmatpush1.msra.mxu0 %v586
        %3945 = vmatprep.subr.mxu0 %v583
        %3946 = vmatpush1.msra.mxu0 %v582
        %3947 = vmatprep.subr.mxu0 %v579
        %3948 = vmatpush1.msra.mxu0 %v578
        %3949 = vmatprep.subr.mxu0 %v575
        %3950 = vmatpush1.msra.mxu0 %v574
        %3951 = vmatprep.subr.mxu0 %v571
        %3952 = vmatpush1.msra.mxu0 %v570
        %3953 = vmatprep.subr.mxu0 %v567
        %3954 = vmatpush1.msra.mxu0 %v566
        %3955 = vmatprep.subr.mxu0 %v563
        %3956 = vmatpush1.msra.mxu0 %v562
        %3957 = vmatprep.subr.mxu0 %v559
        %3958 = vmatpush1.msra.mxu0 %v558
        %3959 = vmatprep.subr.mxu0 %v555
        %3960 = vmatpush1.msra.mxu0 %v554
        %3961 = vmatprep.subr.mxu0 %v551
        %3962 = vmatpush1.msra.mxu0 %v550
        %3963 = vmatprep.subr.mxu0 %v547
        %3964 = vmatpush1.msra.mxu0 %v546
        %3965 = vmatprep.subr.mxu0 0.0
        %3966 = vmatpush2.msra.mxu0 0.0
        %3967 = vmatprep.subr.mxu0 0.0
        %3968 = vmatpush2.msra.mxu0 0.0
        %3969 = vmatprep.subr.mxu0 0.0
        %3970 = vmatpush2.msra.mxu0 0.0
        %3971 = vmatprep.subr.mxu0 0.0
        %3972 = vmatpush2.msra.mxu0 0.0
        %3973 = vmatprep.subr.mxu0 0.0
        %3974 = vmatpush2.msra.mxu0 0.0
        %3975 = vmatprep.subr.mxu0 0.0
        %3976 = vmatpush2.msra.mxu0 0.0
        %3977 = vmatprep.subr.mxu0 0.0
        %3978 = vmatpush2.msra.mxu0 0.0
        %3979 = vmatprep.subr.mxu0 0.0
        %3980 = vmatpush2.msra.mxu0 0.0
        %3981 = vmatprep.subr.mxu0 0.0
        %3982 = vmatpush2.msra.mxu0 0.0
        %3983 = vmatprep.subr.mxu0 0.0
        %3984 = vmatpush2.msra.mxu0 0.0
        %3985 = vmatprep.subr.mxu0 0.0
        %3986 = vmatpush2.msra.mxu0 0.0
        %3987 = vmatprep.subr.mxu0 0.0
        %3988 = vmatpush2.msra.mxu0 0.0
        %3989 = vmatprep.subr.mxu0 0.0
        %3990 = vmatpush2.msra.mxu0 0.0
        %3991 = vmatprep.subr.mxu0 0.0
        %3992 = vmatpush2.msra.mxu0 0.0
        %3993 = vmatprep.subr.mxu0 0.0
        %3994 = vmatpush2.msra.mxu0 0.0
        %3995 = vmatprep.subr.mxu0 0.0
        %3996 = vmatpush2.msra.mxu0 0.0
        %3997 = vmatprep.mubr.f32.mxu0 0.0
        %3998 = vmatmul.mubr.f32.gmra.mxu0 %v3860
        %v3999 = vpop.f32.mrf.mxu0
        %v4000 = vadd.f32 0.0, %v3999
        %v4001 = vpop.f32.mrf.mxu0
        %v4002 = vadd.f32 0.0, %v4001
        %4003 = vdwg.mxu0
        %v4008 = vrot.slane %v3929, 1
        %v4009 = vrot.slane %v3931, 1
        %v4010 = vrot.slane %v4000, 1
        %v4011 = vrot.slane %v4002, 1
        %v4012 = vrot.slane %v3929, 2
        %v4013 = vrot.slane %v3931, 2
        %v4014 = vrot.slane %v4000, 2
        %v4015 = vrot.slane %v4002, 2
        %v4024 = vadd.f32 %v1033, %v4008
        %v4025 = vadd.f32 %v1034, %v4009
        %v4026 = vadd.f32 %v1035, %v4010
        %v4027 = vadd.f32 %v1036, %v4011
        %v4028 = vadd.f32 %v1037, %v4012
        %v4029 = vadd.f32 %v1038, %v4013
        %v4030 = vadd.f32 %v1039, %v4014
        %v4031 = vadd.f32 %v1040, %v4015
        %v4032 = vxor.u32 %v4024, 2147483648
        %v4033 = vxor.u32 %v4025, 2147483648
        %v4034 = vxor.u32 %v4028, 2147483648
        %v4035 = vxor.u32 %v4029, 2147483648
        %v4036 = vmul.f32 %v4032, 1.442695
        %v4037 = vpow.pop %v4036
        %v4038 = vmul.f32 %v4033, 1.442695
        %v4039 = vpow.pop %v4038
        %v4040 = vmul.f32 %v4034, 1.442695
        %v4041 = vpow.pop %v4040
        %v4042 = vmul.f32 %v4035, 1.442695
        %v4043 = vpow.pop %v4042
        %v4044 = vadd.f32 %v4037, 1.0
        %v4045 = vadd.f32 %v4039, 1.0
        %v4046 = vadd.f32 %v4041, 1.0
        %v4047 = vadd.f32 %v4043, 1.0
        %v4048 = vrcp.pop %v4044
        %v4049 = vmul.f32 1.0, %v4048
        %v4050 = vrcp.pop %v4045
        %v4051 = vmul.f32 1.0, %v4050
        %v4052 = vrcp.pop %v4046
        %v4053 = vmul.f32 1.0, %v4052
        %v4054 = vrcp.pop %v4047
        %v4055 = vmul.f32 1.0, %v4054
        %v4056 = vtanh.pop %v4026
        %v4057 = vtanh.pop %v4030
        %v4058 = vxor.u32 %v4027, 2147483648
        %v4059 = vxor.u32 %v4031, 2147483648
        %v4060 = vmul.f32 %v4058, 1.442695
        %v4061 = vpow.pop %v4060
        %v4062 = vmul.f32 %v4059, 1.442695
        %v4063 = vpow.pop %v4062
        %v4064 = vadd.f32 %v4061, 1.0
        %v4065 = vadd.f32 %v4063, 1.0
        %v4066 = vrcp.pop %v4064
        %v4067 = vmul.f32 1.0, %v4066
        %v4068 = vrcp.pop %v4065
        %v4069 = vmul.f32 1.0, %v4068
        %v4072 = vrot.slane %v3675, 7
        %v4073 = vrot.slane %v3676, 7
        %v4076 = vmul.f32 %v4051, %v4072
        %v4077 = vmul.f32 %v4055, %v4073
        %v4078 = vmul.f32 %v4049, %v4056
        %v4079 = vmul.f32 %v4053, %v4057
        %v4080 = vadd.f32 %v4076, %v4078
        %v4081 = vadd.f32 %v4077, %v4079
        %v4082 = vtanh.pop %v4080
        %v4083 = vtanh.pop %v4081
        %v4084 = vmul.f32 %v4067, %v4082
        %v4085 = vmul.f32 %v4069, %v4083
        %v4088 = vrot.slane %v4085, 7
        %v4090 = vrot.slane %v3857, 1
        %vm4091 = vcmask 1040384
        %v4092 = vrot.slane %v4084, 7
        %v4093 = vrot.slane %v4088, 7
        %v4094 = vsel %vm4091, %v4092, %v4093
        %v4095 = vrot.slane %v4090, 7
        %v4096 = vsel %vm4091, %v4095, %v4095
        %4099 = vmatprep.subr.mxu0 %v670
        %4100 = vmatpush1.msra.mxu0 %v669
        %4101 = vmatprep.subr.mxu0 %v666
        %4102 = vmatpush1.msra.mxu0 %v665
        %4103 = vmatprep.subr.mxu0 %v662
        %4104 = vmatpush1.msra.mxu0 %v661
        %4105 = vmatprep.subr.mxu0 %v658
        %4106 = vmatpush1.msra.mxu0 %v657
        %4107 = vmatprep.subr.mxu0 %v654
        %4108 = vmatpush1.msra.mxu0 %v653
        %4109 = vmatprep.subr.mxu0 %v650
        %4110 = vmatpush1.msra.mxu0 %v649
        %4111 = vmatprep.subr.mxu0 %v646
        %4112 = vmatpush1.msra.mxu0 %v645
        %4113 = vmatprep.subr.mxu0 %v642
        %4114 = vmatpush1.msra.mxu0 %v641
        %4115 = vmatprep.subr.mxu0 %v638
        %4116 = vmatpush1.msra.mxu0 %v637
        %4117 = vmatprep.subr.mxu0 %v634
        %4118 = vmatpush1.msra.mxu0 %v633
        %4119 = vmatprep.subr.mxu0 %v630
        %4120 = vmatpush1.msra.mxu0 %v629
        %4121 = vmatprep.subr.mxu0 %v626
        %4122 = vmatpush1.msra.mxu0 %v625
        %4123 = vmatprep.subr.mxu0 %v622
        %4124 = vmatpush1.msra.mxu0 %v621
        %4125 = vmatprep.subr.mxu0 %v618
        %4126 = vmatpush1.msra.mxu0 %v617
        %4127 = vmatprep.subr.mxu0 %v614
        %4128 = vmatpush1.msra.mxu0 %v613
        %4129 = vmatprep.subr.mxu0 %v610
        %4130 = vmatpush1.msra.mxu0 %v609
        %4131 = vmatprep.subr.mxu0 %v734
        %4132 = vmatpush2.msra.mxu0 %v733
        %4133 = vmatprep.subr.mxu0 %v730
        %4134 = vmatpush2.msra.mxu0 %v729
        %4135 = vmatprep.subr.mxu0 %v726
        %4136 = vmatpush2.msra.mxu0 %v725
        %4137 = vmatprep.subr.mxu0 %v722
        %4138 = vmatpush2.msra.mxu0 %v721
        %4139 = vmatprep.subr.mxu0 %v718
        %4140 = vmatpush2.msra.mxu0 %v717
        %4141 = vmatprep.subr.mxu0 %v714
        %4142 = vmatpush2.msra.mxu0 %v713
        %4143 = vmatprep.subr.mxu0 %v710
        %4144 = vmatpush2.msra.mxu0 %v709
        %4145 = vmatprep.subr.mxu0 %v706
        %4146 = vmatpush2.msra.mxu0 %v705
        %4147 = vmatprep.subr.mxu0 %v702
        %4148 = vmatpush2.msra.mxu0 %v701
        %4149 = vmatprep.subr.mxu0 %v698
        %4150 = vmatpush2.msra.mxu0 %v697
        %4151 = vmatprep.subr.mxu0 %v694
        %4152 = vmatpush2.msra.mxu0 %v693
        %4153 = vmatprep.subr.mxu0 %v690
        %4154 = vmatpush2.msra.mxu0 %v689
        %4155 = vmatprep.subr.mxu0 %v686
        %4156 = vmatpush2.msra.mxu0 %v685
        %4157 = vmatprep.subr.mxu0 %v682
        %4158 = vmatpush2.msra.mxu0 %v681
        %4159 = vmatprep.subr.mxu0 %v678
        %4160 = vmatpush2.msra.mxu0 %v677
        %4161 = vmatprep.subr.mxu0 %v674
        %4162 = vmatpush2.msra.mxu0 %v673
        %4163 = vmatprep.mubr.f32.mxu0 %v4096
        %4164 = vmatmul.mubr.f32.gmra.mxu0 %v4094
        %v4165 = vpop.f32.mrf.mxu0
        %v4166 = vadd.f32 %v742, %v4165
        %v4167 = vpop.f32.mrf.mxu0
        %v4168 = vadd.f32 %v746, %v4167
        %4169 = vdwg.mxu0
        %4170 = vmatprep.subr.mxu0 %v672
        %4171 = vmatpush1.msra.mxu0 %v671
        %4172 = vmatprep.subr.mxu0 %v668
        %4173 = vmatpush1.msra.mxu0 %v667
        %4174 = vmatprep.subr.mxu0 %v664
        %4175 = vmatpush1.msra.mxu0 %v663
        %4176 = vmatprep.subr.mxu0 %v660
        %4177 = vmatpush1.msra.mxu0 %v659
        %4178 = vmatprep.subr.mxu0 %v656
        %4179 = vmatpush1.msra.mxu0 %v655
        %4180 = vmatprep.subr.mxu0 %v652
        %4181 = vmatpush1.msra.mxu0 %v651
        %4182 = vmatprep.subr.mxu0 %v648
        %4183 = vmatpush1.msra.mxu0 %v647
        %4184 = vmatprep.subr.mxu0 %v644
        %4185 = vmatpush1.msra.mxu0 %v643
        %4186 = vmatprep.subr.mxu0 %v640
        %4187 = vmatpush1.msra.mxu0 %v639
        %4188 = vmatprep.subr.mxu0 %v636
        %4189 = vmatpush1.msra.mxu0 %v635
        %4190 = vmatprep.subr.mxu0 %v632
        %4191 = vmatpush1.msra.mxu0 %v631
        %4192 = vmatprep.subr.mxu0 %v628
        %4193 = vmatpush1.msra.mxu0 %v627
        %4194 = vmatprep.subr.mxu0 %v624
        %4195 = vmatpush1.msra.mxu0 %v623
        %4196 = vmatprep.subr.mxu0 %v620
        %4197 = vmatpush1.msra.mxu0 %v619
        %4198 = vmatprep.subr.mxu0 %v616
        %4199 = vmatpush1.msra.mxu0 %v615
        %4200 = vmatprep.subr.mxu0 %v612
        %4201 = vmatpush1.msra.mxu0 %v611
        %4202 = vmatprep.subr.mxu0 %v736
        %4203 = vmatpush2.msra.mxu0 %v735
        %4204 = vmatprep.subr.mxu0 %v732
        %4205 = vmatpush2.msra.mxu0 %v731
        %4206 = vmatprep.subr.mxu0 %v728
        %4207 = vmatpush2.msra.mxu0 %v727
        %4208 = vmatprep.subr.mxu0 %v724
        %4209 = vmatpush2.msra.mxu0 %v723
        %4210 = vmatprep.subr.mxu0 %v720
        %4211 = vmatpush2.msra.mxu0 %v719
        %4212 = vmatprep.subr.mxu0 %v716
        %4213 = vmatpush2.msra.mxu0 %v715
        %4214 = vmatprep.subr.mxu0 %v712
        %4215 = vmatpush2.msra.mxu0 %v711
        %4216 = vmatprep.subr.mxu0 %v708
        %4217 = vmatpush2.msra.mxu0 %v707
        %4218 = vmatprep.subr.mxu0 %v704
        %4219 = vmatpush2.msra.mxu0 %v703
        %4220 = vmatprep.subr.mxu0 %v700
        %4221 = vmatpush2.msra.mxu0 %v699
        %4222 = vmatprep.subr.mxu0 %v696
        %4223 = vmatpush2.msra.mxu0 %v695
        %4224 = vmatprep.subr.mxu0 %v692
        %4225 = vmatpush2.msra.mxu0 %v691
        %4226 = vmatprep.subr.mxu0 %v688
        %4227 = vmatpush2.msra.mxu0 %v687
        %4228 = vmatprep.subr.mxu0 %v684
        %4229 = vmatpush2.msra.mxu0 %v683
        %4230 = vmatprep.subr.mxu0 %v680
        %4231 = vmatpush2.msra.mxu0 %v679
        %4232 = vmatprep.subr.mxu0 %v676
        %4233 = vmatpush2.msra.mxu0 %v675
        %4234 = vmatprep.mubr.f32.mxu0 %v4096
        %4235 = vmatmul.mubr.f32.gmra.mxu0 %v4094
        %v4236 = vpop.f32.mrf.mxu0
        %v4237 = vadd.f32 %v750, %v4236
        %v4238 = vpop.f32.mrf.mxu0
        %v4239 = vadd.f32 %v754, %v4238
        %4240 = vdwg.mxu0
        %v4241 = vxor.u32 %v4166, 2147483648
        %v4242 = vxor.u32 %v4168, 2147483648
        %v4243 = vmul.f32 %v4241, 1.442695
        %v4244 = vpow.pop %v4243
        %v4245 = vmul.f32 %v4242, 1.442695
        %v4246 = vpow.pop %v4245
        %v4247 = vadd.f32 %v4244, 1.0
        %v4248 = vadd.f32 %v4246, 1.0
        %v4249 = vrcp.pop %v4247
        %v4250 = vmul.f32 1.0, %v4249
        %v4251 = vrcp.pop %v4248
        %v4252 = vmul.f32 1.0, %v4251
        %v4253 = vtanh.pop %v4237
        %v4254 = vxor.u32 %v4239, 2147483648
        %v4255 = vmul.f32 %v4254, 1.442695
        %v4256 = vpow.pop %v4255
        %v4257 = vadd.f32 %v4256, 1.0
        %v4258 = vrcp.pop %v4257
        %v4259 = vmul.f32 1.0, %v4258
        %v4260 = vmul.f32 %v4252, %v3855
        %v4261 = vmul.f32 %v4250, %v4253
        %v4262 = vadd.f32 %v4260, %v4261
        %v4263 = vtanh.pop %v4262
        %v4264 = vmul.f32 %v4259, %v4263
        %4267 = vst [vmem:[#allocation2 - $0x7] sm:$0x80] %v4084
        %4268 = vst [vmem:[#allocation2 + $0x1] sm:$0x1] %v4088
        %v4271 = vrot.slane %v4081, 7
        %4274 = vst [vmem:[#allocation3 - $0x7] sm:$0x80] %v4080
        %4275 = vst [vmem:[#allocation3 + $0x1] sm:$0x1] %v4271
        %4276 = vst [vmem:[%s1042] sm:$0x3] %v4264
        %4277 = vst [vmem:[%s1045] sm:$0x3] %v4262
        %v4279 = vunpack.c.l.s4 1966171168
        %v4280 = vunpack.c.0.s8 %v4279
        %v4281 = vlaneseq
        %v4282 = vshrl.u32 %v4281, 7
        %v4283 = vsub.s32 %v4280, %v4282
        %v4284 = vrot.slane %v1436, %v4283
        %v4285 = vcombine.high %v4284, %v4284
        %v4287 = vunpack.c.l.s4 1966171168
        %v4288 = vunpack.c.0.s8 %v4287
        %v4289 = vlaneseq
        %v4290 = vshrl.u32 %v4289, 7
        %v4291 = vsub.s32 %v4288, %v4290
        %v4292 = vrot.slane %v4284, %v4291
        %v4294 = vunpack.c.l.s4 1966171168
        %v4295 = vunpack.c.0.s8 %v4294
        %v4296 = vlaneseq
        %v4297 = vshrl.u32 %v4296, 7
        %v4298 = vsub.s32 %v4295, %v4297
        %v4299 = vrot.slane %v4285, %v4298
        %v4303 = vunpack.c.l.s4 1966171168
        %v4304 = vunpack.c.0.s8 %v4303
        %v4305 = vlaneseq
        %v4306 = vshrl.u32 %v4305, 7
        %v4307 = vsub.s32 %v4304, %v4306
        %v4308 = vrot.slane %v1833, %v4307
        %v4309 = vcombine.high %v4308, %v4308
        %v4311 = vunpack.c.l.s4 1966171168
        %v4312 = vunpack.c.0.s8 %v4311
        %v4313 = vlaneseq
        %v4314 = vshrl.u32 %v4313, 7
        %v4315 = vsub.s32 %v4312, %v4314
        %v4316 = vrot.slane %v4308, %v4315
        %v4318 = vunpack.c.l.s4 1966171168
        %v4319 = vunpack.c.0.s8 %v4318
        %v4320 = vlaneseq
        %v4321 = vshrl.u32 %v4320, 7
        %v4322 = vsub.s32 %v4319, %v4321
        %v4323 = vrot.slane %v4309, %v4322
        %v4325 = vunpack.c.l.s4 1966171168
        %v4326 = vunpack.c.0.s8 %v4325
        %v4327 = vlaneseq
        %v4328 = vshrl.u32 %v4327, 7
        %v4329 = vsub.s32 %v4326, %v4328
        %v4330 = vrot.slane %v2237, %v4329
        %v4331 = vcombine.high %v4330, %v4330
        %v4333 = vunpack.c.l.s4 1966171168
        %v4334 = vunpack.c.0.s8 %v4333
        %v4335 = vlaneseq
        %v4336 = vshrl.u32 %v4335, 7
        %v4337 = vsub.s32 %v4334, %v4336
        %v4338 = vrot.slane %v4330, %v4337
        %v4340 = vunpack.c.l.s4 1966171168
        %v4341 = vunpack.c.0.s8 %v4340
        %v4342 = vlaneseq
        %v4343 = vshrl.u32 %v4342, 7
        %v4344 = vsub.s32 %v4341, %v4343
        %v4345 = vrot.slane %v4331, %v4344
        %v4347 = vunpack.c.l.s4 1966171168
        %v4348 = vunpack.c.0.s8 %v4347
        %v4349 = vlaneseq
        %v4350 = vshrl.u32 %v4349, 7
        %v4351 = vsub.s32 %v4348, %v4350
        %v4352 = vrot.slane %v2642, %v4351
        %v4353 = vcombine.high %v4352, %v4352
        %v4355 = vunpack.c.l.s4 1966171168
        %v4356 = vunpack.c.0.s8 %v4355
        %v4357 = vlaneseq
        %v4358 = vshrl.u32 %v4357, 7
        %v4359 = vsub.s32 %v4356, %v4358
        %v4360 = vrot.slane %v4352, %v4359
        %v4362 = vunpack.c.l.s4 1966171168
        %v4363 = vunpack.c.0.s8 %v4362
        %v4364 = vlaneseq
        %v4365 = vshrl.u32 %v4364, 7
        %v4366 = vsub.s32 %v4363, %v4365
        %v4367 = vrot.slane %v4353, %v4366
        %v4369 = vunpack.c.l.s4 1966171168
        %v4370 = vunpack.c.0.s8 %v4369
        %v4371 = vlaneseq
        %v4372 = vshrl.u32 %v4371, 7
        %v4373 = vsub.s32 %v4370, %v4372
        %v4374 = vrot.slane %v3047, %v4373
        %v4375 = vcombine.high %v4374, %v4374
        %v4377 = vunpack.c.l.s4 1966171168
        %v4378 = vunpack.c.0.s8 %v4377
        %v4379 = vlaneseq
        %v4380 = vshrl.u32 %v4379, 7
        %v4381 = vsub.s32 %v4378, %v4380
        %v4382 = vrot.slane %v4374, %v4381
        %v4384 = vunpack.c.l.s4 1966171168
        %v4385 = vunpack.c.0.s8 %v4384
        %v4386 = vlaneseq
        %v4387 = vshrl.u32 %v4386, 7
        %v4388 = vsub.s32 %v4385, %v4387
        %v4389 = vrot.slane %v4375, %v4388
        %v4391 = vunpack.c.l.s4 1966171168
        %v4392 = vunpack.c.0.s8 %v4391
        %v4393 = vlaneseq
        %v4394 = vshrl.u32 %v4393, 7
        %v4395 = vsub.s32 %v4392, %v4394
        %v4396 = vrot.slane %v3452, %v4395
        %v4397 = vcombine.high %v4396, %v4396
        %v4399 = vunpack.c.l.s4 1966171168
        %v4400 = vunpack.c.0.s8 %v4399
        %v4401 = vlaneseq
        %v4402 = vshrl.u32 %v4401, 7
        %v4403 = vsub.s32 %v4400, %v4402
        %v4404 = vrot.slane %v4396, %v4403
        %v4406 = vunpack.c.l.s4 1966171168
        %v4407 = vunpack.c.0.s8 %v4406
        %v4408 = vlaneseq
        %v4409 = vshrl.u32 %v4408, 7
        %v4410 = vsub.s32 %v4407, %v4409
        %v4411 = vrot.slane %v4397, %v4410
        %v4413 = vunpack.c.l.s4 1966171168
        %v4414 = vunpack.c.0.s8 %v4413
        %v4415 = vlaneseq
        %v4416 = vshrl.u32 %v4415, 7
        %v4417 = vsub.s32 %v4414, %v4416
        %v4418 = vrot.slane %v3857, %v4417
        %v4419 = vcombine.high %v4418, %v4418
        %v4421 = vunpack.c.l.s4 1966171168
        %v4422 = vunpack.c.0.s8 %v4421
        %v4423 = vlaneseq
        %v4424 = vshrl.u32 %v4423, 7
        %v4425 = vsub.s32 %v4422, %v4424
        %v4426 = vrot.slane %v4418, %v4425
        %v4428 = vunpack.c.l.s4 1966171168
        %v4429 = vunpack.c.0.s8 %v4428
        %v4430 = vlaneseq
        %v4431 = vshrl.u32 %v4430, 7
        %v4432 = vsub.s32 %v4429, %v4431
        %v4433 = vrot.slane %v4419, %v4432
        %v4436 = vunpack.c.l.s4 1966171168
        %v4437 = vunpack.c.0.s8 %v4436
        %v4438 = vlaneseq
        %v4439 = vshrl.u32 %v4438, 7
        %v4440 = vsub.s32 %v4437, %v4439
        %v4441 = vrot.slane %v4264, %v4440
        %v4442 = vcombine.high %v4441, %v4441
        %v4444 = vunpack.c.l.s4 1966171168
        %v4445 = vunpack.c.0.s8 %v4444
        %v4446 = vlaneseq
        %v4447 = vshrl.u32 %v4446, 7
        %v4448 = vsub.s32 %v4445, %v4447
        %v4449 = vrot.slane %v4441, %v4448
        %v4451 = vunpack.c.l.s4 1966171168
        %v4452 = vunpack.c.0.s8 %v4451
        %v4453 = vlaneseq
        %v4454 = vshrl.u32 %v4453, 7
        %v4455 = vsub.s32 %v4452, %v4454
        %v4456 = vrot.slane %v4442, %v4455
        %v4457 = vlaneseq
        %v4458 = vshrl.u32 %v4457, 7
        %v4459 = vsub.s32 0, %v4458
        %v4460 = vrot.slane %v4316, %v4459
        %v4461 = vlaneseq
        %v4462 = vshrl.u32 %v4461, 7
        %v4463 = vsub.s32 0, %v4462
        %v4464 = vrot.slane %v4323, %v4463
        %v4467 = vlaneseq
        %v4468 = vshrl.u32 %v4467, 7
        %v4469 = vsub.s32 0, %v4468
        %v4470 = vrot.slane %v4338, %v4469
        %v4471 = vlaneseq
        %v4472 = vshrl.u32 %v4471, 7
        %v4473 = vsub.s32 0, %v4472
        %v4474 = vrot.slane %v4345, %v4473
        %v4477 = vlaneseq
        %v4478 = vshrl.u32 %v4477, 7
        %v4479 = vsub.s32 0, %v4478
        %v4480 = vrot.slane %v4360, %v4479
        %v4481 = vlaneseq
        %v4482 = vshrl.u32 %v4481, 7
        %v4483 = vsub.s32 0, %v4482
        %v4484 = vrot.slane %v4367, %v4483
        %v4487 = vlaneseq
        %v4488 = vshrl.u32 %v4487, 7
        %v4489 = vsub.s32 0, %v4488
        %v4490 = vrot.slane %v4382, %v4489
        %v4491 = vlaneseq
        %v4492 = vshrl.u32 %v4491, 7
        %v4493 = vsub.s32 0, %v4492
        %v4494 = vrot.slane %v4389, %v4493
        %v4497 = vlaneseq
        %v4498 = vshrl.u32 %v4497, 7
        %v4499 = vsub.s32 0, %v4498
        %v4500 = vrot.slane %v4404, %v4499
        %v4501 = vlaneseq
        %v4502 = vshrl.u32 %v4501, 7
        %v4503 = vsub.s32 0, %v4502
        %v4504 = vrot.slane %v4411, %v4503
        %v4507 = vlaneseq
        %v4508 = vshrl.u32 %v4507, 7
        %v4509 = vsub.s32 0, %v4508
        %v4510 = vrot.slane %v4426, %v4509
        %v4511 = vlaneseq
        %v4512 = vshrl.u32 %v4511, 7
        %v4513 = vsub.s32 0, %v4512
        %v4514 = vrot.slane %v4433, %v4513
        %v4517 = vlaneseq
        %v4518 = vshrl.u32 %v4517, 7
        %v4519 = vsub.s32 0, %v4518
        %v4520 = vrot.slane %v4449, %v4519
        %v4521 = vlaneseq
        %v4522 = vshrl.u32 %v4521, 7
        %v4523 = vsub.s32 0, %v4522
        %v4524 = vrot.slane %v4456, %v4523
        %v4527 = vsel %vm4091, %v4292, %v4460
        %v4528 = vsel %vm4091, %v4299, %v4464
        %vm4529 = vcmask 1041408
        %v4530 = vsel %vm4529, %v4527, %v4470
        %v4531 = vsel %vm4529, %v4528, %v4474
        %vm4532 = vcmask 1042432
        %v4533 = vsel %vm4532, %v4530, %v4480
        %v4534 = vsel %vm4532, %v4531, %v4484
        %vm4535 = vcmask 1043456
        %v4536 = vsel %vm4535, %v4533, %v4490
        %v4537 = vsel %vm4535, %v4534, %v4494
        %vm4538 = vcmask 1044480
        %v4539 = vsel %vm4538, %v4536, %v4500
        %v4540 = vsel %vm4538, %v4537, %v4504
        %vm4541 = vcmask 1045504
        %v4542 = vsel %vm4541, %v4539, %v4510
        %v4543 = vsel %vm4541, %v4540, %v4514
        %vm4544 = vcmask 1046528
        %v4545 = vsel %vm4544, %v4542, %v4520
        %v4546 = vsel %vm4544, %v4543, %v4524
        %s4547 = smul.u32 %s478, 16
        %s4548 = scalar_lea.vmem [#allocation4], %s4547
        %4549 = vst [vmem:[%s4548] sm:$0xff] %v4545
        %4550 = vst [vmem:[%s4548 + $0x8] sm:$0xff] %v4546
        %s4551 = sand.u32 %s239, 1
        %s4552 = scalar_lea.sflag [#allocation7], %s4551
        %s4553 = sand.u32 %s239, 1
        %s4554 = smul.addr %s4553, 16
        %s4555 = scalar_lea.vmem [#allocation17], %s4554
        // Predicated region
        $region89: #{tpu_custom_call.1} parent=55 // pred_check
          %p4556 = pneg %p249
        $region90: #{tpu_custom_call.1} parent=55 // pred_check_branch
          %4558 = sbr.rel (%p4556) target = $region92
        $region91: #{tpu_custom_call.1} parent=55 // pred_region
          %s4559 = ssub.s32 %s27, 1
          %p4560 = scmp.gt.s32.totalorder %s4559, 0
          %s4561 = scalar_select %p4560, %s4559, 0
          %s4563 = ssub.s32 256, 256
          %4564 = vsyncadd %s4552, %s4563
          %s4565 = smul.addr %s4561, 128
          %s4566 = scalar_lea.hbm %s9, %s4565
          %s4567 = sshll.u32 %s4555, 4
          %s4568 = int_to_ptr.vmem [resolvable:$true] %s4567
          %4573 = dma.vmem_to_hbm [thread:$0]  %s4568, 256, %s4566, %s4552, 128, 256, 8
        $region92: #{tpu_custom_call.1} parent=55 // pred_fallthru
          _
      $region56: #{tpu_custom_call.1} parent=5 // pred_fallthru
        _
      %p4574 = scmp.le.s32.totalorder 2, %s22
      // Predicated region
      $region93: #{tpu_custom_call.1} parent=5 // pred_check
        %p4575 = pneg %p4574
      $region94: #{tpu_custom_call.1} parent=5 // pred_check_branch
        %4577 = sbr.rel (%p4575) target = $region96
      $region95: #{tpu_custom_call.1} parent=5 // pred_region
        %s4578 = ssub.s32 %s22, 2
        // Predicated region
        $region97: #{tpu_custom_call.1} parent=95 // pred_check
          %p4579 = pneg %p255
        $region98: #{tpu_custom_call.1} parent=95 // pred_check_branch
          %4581 = sbr.rel (%p4579) target = $region100
        $region99: #{tpu_custom_call.1} parent=95 // pred_region
          %s4582 = sand.u32 %s240, 1
          %s4583 = scalar_lea.sflag [#allocation7], %s4582
          %s4584 = sand.u32 %s240, 1
          %s4585 = smul.addr %s4584, 16
          %s4586 = scalar_lea.vmem [#allocation17], %s4585
          %4587 = dma.done %s4583, 256
        $region100: #{tpu_custom_call.1} parent=95 // pred_fallthru
          _
      $region96: #{tpu_custom_call.1} parent=5 // pred_fallthru
        _
    $region6: #{tpu_custom_call.1} parent=1 // loop_footer
      %s26 = sadd.s32 1, %s22
    $region7: #{tpu_custom_call.1} parent=1 // loop_footer_branch
      %21 = sbr.rel target = $region3
    $region8: #{tpu_custom_call.1} parent=1 // loop_exit
      _
    %4588 = vsyncpa [#allocation6], 1
    %s4589 = scalar_lea.sflag [#allocation6], 1
    %4590 = vsyncpa %s4589, 1
    %4591 = vsyncpa [#allocation9], 1
    %4592 = vsyncpa [#allocation13], 1
    %4593 = vsyncpa [#allocation16], 1
    %4594 = vsyncpa [#allocation7], 1
    %s4595 = scalar_lea.sflag [#allocation7], 1
    %4596 = vsyncpa %s4595, 1

</llo_original>
